<compile_context>
chip_gen: v7x
topology: tpu7x:2x2x1
jax: 0.10.0
libtpu: 0.0.40
codegen_flags: <defaults>
</compile_context>

<pallas_src>
import functools

import jax
import jax.numpy as jnp
from jax.experimental import pallas as pl
from jax.experimental.pallas import tpu as pltpu

BN_EPS = 1e-5
LANE = 128


def conv_stats_kernel(x_ref, w_ref, conv_ref, sum_ref, ssq_ref, acc_ref,
                      *, compute_dtype):
    # x_ref:    (1, Hp, Wp, Cin_p)   spatially pre-padded, channel-padded input
    # w_ref:    (KH, KW, Cin_p, Cout_p)  (already cast to compute_dtype)
    # conv_ref: (1, Ho, Wo, Cout_p)  f32 conv output for this batch tile
    # sum_ref:  (1, 1, Cout_p)       f32 per-tile per-channel sum
    # ssq_ref:  (1, 1, Cout_p)       f32 per-tile per-channel sum of squares
    # acc_ref:  VMEM scratch (Ho*Wo, Cout_p) f32 accumulator
    _, Hp, Wp, Cin_p = x_ref.shape
    KH, KW, _, Cout_p = w_ref.shape
    _, Ho, Wo, _ = conv_ref.shape

    # Cast the whole input tile once (bf16 on v6e/v7x fast path, f32 otherwise).
    x = x_ref[...].astype(compute_dtype)

    acc_ref[...] = jnp.zeros_like(acc_ref)
    # Per-tap matmuls on the MXU.  With Cin padded to 128 every tap is a
    # (Ho*Wo, 128) x (128, Cout_p) contraction; the reshape keeps the 128-lane
    # last dim so it is layout-preserving.
    for kh in range(KH):          # static, unrolled
        for kw in range(KW):
            patch = x[0, kh:kh + Ho, kw:kw + Wo, :].reshape(Ho * Wo, Cin_p)
            acc_ref[...] += jnp.dot(patch, w_ref[kh, kw],
                                    preferred_element_type=jnp.float32)

    acc = acc_ref[...]
    conv_ref[...] = acc.reshape(1, Ho, Wo, Cout_p)
    # One-pass BN stats for this tile (var = E[x^2] - E[x]^2 finalized outside).
    sum_ref[...] = jnp.sum(acc, axis=0, keepdims=True)[None]
    ssq_ref[...] = jnp.sum(acc * acc, axis=0, keepdims=True)[None]


def bn_relu_kernel(y_ref, scale_ref, shift_ref, o_ref):
    # y_ref:     (TM, Cout_p) f32 conv rows
    # scale_ref: (1, Cout_p)  gamma * rsqrt(var + eps)   (precomputed once)
    # shift_ref: (1, Cout_p)  beta - mean * scale        (precomputed once)
    # o_ref:     (TM, Cout_p) output dtype, lane-dense store
    y = y_ref[...] * scale_ref[...] + shift_ref[...]
    o_ref[...] = jnp.maximum(y, 0.0).astype(o_ref.dtype)


def _round_up(x, m):
    return (x + m - 1) // m * m


def conv_block_forward(x_nchw, weight_oihw, gamma, beta, *, padding=1,
                       use_bf16_mxu=True, row_tile=256):
    """ConvBlock.forward for mode='conv', kernel_size=3, stride=1."""
    N, Cin, H, W = x_nchw.shape
    Cout, _, KH, KW = weight_oihw.shape
    Cin_p = _round_up(Cin, LANE)
    Cout_p = _round_up(Cout, LANE)
    Hp, Wp = H + 2 * padding, W + 2 * padding
    Ho, Wo = Hp - KH + 1, Wp - KW + 1
    compute_dtype = jnp.bfloat16 if use_bf16_mxu else jnp.float32

    # NCHW -> NHWC, spatial halo + channel pad to the 128-lane width in one pad.
    # TODO(synk): handle the 1-px halo inside the kernel (masked edge taps) to
    # avoid this extra HBM round trip at production feature-map sizes.
    x_nhwc = jnp.transpose(x_nchw, (0, 2, 3, 1))
    x_pad = jnp.pad(x_nhwc, ((0, 0), (padding, padding), (padding, padding),
                             (0, Cin_p - Cin)))
    w_hwio = jnp.transpose(weight_oihw, (2, 3, 1, 0))           # (KH,KW,Cin,Cout)
    w_pad = jnp.pad(w_hwio, ((0, 0), (0, 0), (0, Cin_p - Cin),
                             (0, Cout_p - Cout))).astype(compute_dtype)

    # ---- Pass 1: conv + per-tile BN partial stats, tiled over batch. ----
    conv_f32, csum, cssq = pl.pallas_call(
        functools.partial(conv_stats_kernel, compute_dtype=compute_dtype),
        out_shape=(
            jax.ShapeDtypeStruct((N, Ho, Wo, Cout_p), jnp.float32),
            jax.ShapeDtypeStruct((N, 1, Cout_p), jnp.float32),
            jax.ShapeDtypeStruct((N, 1, Cout_p), jnp.float32),
        ),
        grid=(N,),
        in_specs=[
            pl.BlockSpec((1, Hp, Wp, Cin_p), lambda i: (i, 0, 0, 0)),
            pl.BlockSpec((KH, KW, Cin_p, Cout_p), lambda i: (0, 0, 0, 0)),
        ],
        out_specs=(
            pl.BlockSpec((1, Ho, Wo, Cout_p), lambda i: (i, 0, 0, 0)),
            pl.BlockSpec((1, 1, Cout_p), lambda i: (i, 0, 0)),
            pl.BlockSpec((1, 1, Cout_p), lambda i: (i, 0, 0)),
        ),
        scratch_shapes=[pltpu.VMEM((Ho * Wo, Cout_p), jnp.float32)],
        compiler_params=pltpu.CompilerParams(
            dimension_semantics=("parallel",)),
    )(x_pad, w_pad)

    # ---- Tiny cross-tile stat reduction + scale/shift fold (plain JAX). ----
    count = jnp.float32(N * Ho * Wo)
    mean = jnp.sum(csum[:, 0, :], axis=0) / count                # (Cout_p,)
    ex2 = jnp.sum(cssq[:, 0, :], axis=0) / count
    var = jnp.maximum(ex2 - mean * mean, 0.0)                    # biased var
    gamma_p = jnp.pad(gamma.astype(jnp.float32), (0, Cout_p - Cout))
    beta_p = jnp.pad(beta.astype(jnp.float32), (0, Cout_p - Cout))
    inv_std = jax.lax.rsqrt(var + BN_EPS)
    scale = (gamma_p * inv_std).reshape(1, Cout_p)
    shift = (beta_p - mean * gamma_p * inv_std).reshape(1, Cout_p)

    # ---- Pass 2: normalize + affine + ReLU, lane-dense row tiles. ----
    M = N * Ho * Wo
    TM = min(row_tile, M)
    conv_flat = conv_f32.reshape(M, Cout_p)
    out_flat = pl.pallas_call(
        bn_relu_kernel,
        out_shape=jax.ShapeDtypeStruct((M, Cout_p), x_nchw.dtype),
        grid=(pl.cdiv(M, TM),),
        in_specs=[
            pl.BlockSpec((TM, Cout_p), lambda i: (i, 0)),
            pl.BlockSpec((1, Cout_p), lambda i: (0, 0)),
            pl.BlockSpec((1, Cout_p), lambda i: (0, 0)),
        ],
        out_specs=pl.BlockSpec((TM, Cout_p), lambda i: (i, 0)),
        compiler_params=pltpu.CompilerParams(
            dimension_semantics=("parallel",)),
    )(conv_flat, scale, shift)

    out_nhwc = out_flat.reshape(N, Ho, Wo, Cout_p)[..., :Cout]
    return jnp.transpose(out_nhwc, (0, 3, 1, 2))                 # back to NCHW


def reference_forward(x, w, gamma, beta, *, padding=1):
    """Pure-JAX reference (matches PyTorch ConvBlock in training mode)."""
    conv = jax.lax.conv_general_dilated(
        x, w, window_strides=(1, 1),
        padding=((padding, padding), (padding, padding)),
        dimension_numbers=("NCHW", "OIHW", "NCHW"),
    )
    mean = conv.mean(axis=(0, 2, 3), keepdims=True)
    var = ((conv - mean) ** 2).mean(axis=(0, 2, 3), keepdims=True)
    xhat = (conv - mean) / jnp.sqrt(var + BN_EPS)
    y = xhat * gamma.reshape(1, -1, 1, 1) + beta.reshape(1, -1, 1, 1)
    return jnp.maximum(y, 0.0)


if __name__ == "__main__":
    key = jax.random.PRNGKey(0)
    k_x, k_w = jax.random.split(key)

    N, Cin, H, W = 2, 4, 16, 16
    Cout, K = 8, 3

    x = jax.random.normal(k_x, (N, Cin, H, W), dtype=jnp.float32)
    fan_in = Cin * K * K
    weight = jax.random.normal(k_w, (Cout, Cin, K, K), dtype=jnp.float32)
    weight = weight * (1.0 / jnp.sqrt(fan_in))
    gamma = jnp.ones((Cout,), dtype=jnp.float32)     # BatchNorm2d default init
    beta = jnp.zeros((Cout,), dtype=jnp.float32)

    ref = reference_forward(x, weight, gamma, beta, padding=(K - 1) // 2)

    # Exact path (f32 MXU inputs): tight tolerance.
    out = conv_block_forward(x, weight, gamma, beta, padding=(K - 1) // 2,
                             use_bf16_mxu=False)
    out = jax.block_until_ready(out)
    assert out.shape == (N, Cout, H, W)
    assert jnp.allclose(out, ref, atol=1e-4, rtol=1e-4), (
        float(jnp.max(jnp.abs(out - ref))))

    # v6e/v7x fast path (bf16 MXU inputs, f32 accumulation): looser tolerance.
    out_bf16 = conv_block_forward(x, weight, gamma, beta, padding=(K - 1) // 2,
                                  use_bf16_mxu=True)
    out_bf16 = jax.block_until_ready(out_bf16)
    assert out_bf16.shape == (N, Cout, H, W)
    assert jnp.allclose(out_bf16, ref, atol=5e-2, rtol=5e-2), (
        float(jnp.max(jnp.abs(out_bf16 - ref))))

    print("KERNEL_OK")
</pallas_src>

<mosaic_0001>
module attributes {stable_mosaic.version = 11 : i64} {
  func.func @conv_stats_kernel(%arg0: i32, %arg1: memref<1x18x18x128xf32, #tpu.memory_space<vmem>>, %arg2: memref<3x3x128x128xf32, #tpu.memory_space<vmem>>, %arg3: memref<1x16x16x128xf32, #tpu.memory_space<vmem>>, %arg4: memref<1x1x128xf32, #tpu.memory_space<vmem>>, %arg5: memref<1x1x128xf32, #tpu.memory_space<vmem>>, %arg6: memref<256x128xf32, #tpu.memory_space<vmem>>) attributes {dimension_semantics = [#tpu.dimension_semantics<parallel>], iteration_bounds = array<i64: 2>, scalar_prefetch = 0 : i64, scratch_operands = 1 : i64, tpu.core_type = #tpu.core_type<tc>, window_params = [{transform_indices = @transform_0, window_bounds = array<i64: 1, 18, 18, 128>}, {pipeline_mode = #tpu.pipeline_mode<synchronous>, transform_indices = @transform_1, window_bounds = array<i64: 3, 3, 128, 128>}, {transform_indices = @transform_2, window_bounds = array<i64: 1, 16, 16, 128>}, {transform_indices = @transform_3, window_bounds = array<i64: 1, 1, 128>}, {transform_indices = @transform_4, window_bounds = array<i64: 1, 1, 128>}]} {
    %c0 = arith.constant 0 : index
    %c0_0 = arith.constant 0 : index
    %c0_1 = arith.constant 0 : index
    %c0_2 = arith.constant 0 : index
    %0 = vector.load %arg1[%c0, %c0_0, %c0_1, %c0_2] : memref<1x18x18x128xf32, #tpu.memory_space<vmem>>, vector<1x18x18x128xf32>
    %cst = arith.constant 0.000000e+00 : f32
    %1 = vector.broadcast %cst : f32 to vector<256x128xf32>
    %c0_3 = arith.constant 0 : index
    %c0_4 = arith.constant 0 : index
    %2 = vector.load %arg6[%c0_3, %c0_4] : memref<256x128xf32, #tpu.memory_space<vmem>>, vector<256x128xf32>
    tpu.vector_store %arg6[%c0_3, %c0_4], %1 {strides = array<i32>} : memref<256x128xf32, #tpu.memory_space<vmem>>, vector<256x128xf32>,
    %3 = vector.extract_strided_slice %0 {offsets = [0, 0, 0, 0], sizes = [1, 16, 16, 128], strides = [1, 1, 1, 1]} : vector<1x18x18x128xf32> to vector<1x16x16x128xf32>
    %4 = vector.shape_cast %3 : vector<1x16x16x128xf32> to vector<16x16x128xf32>
    %5 = vector.shape_cast %4 : vector<16x16x128xf32> to vector<256x128xf32>
    %c0_5 = arith.constant 0 : index
    %c0_6 = arith.constant 0 : index
    %6 = vector.load %arg6[%c0_5, %c0_6] : memref<256x128xf32, #tpu.memory_space<vmem>>, vector<256x128xf32>
    %c0_7 = arith.constant 0 : index
    %c0_8 = arith.constant 0 : index
    %c0_9 = arith.constant 0 : index
    %c0_10 = arith.constant 0 : index
    %7 = vector.load %arg2[%c0_7, %c0_8, %c0_9, %c0_10] : memref<3x3x128x128xf32, #tpu.memory_space<vmem>>, vector<1x1x128x128xf32>
    %8 = vector.shape_cast %7 : vector<1x1x128x128xf32> to vector<128x128xf32>
    %cst_11 = arith.constant dense<0.000000e+00> : vector<256x128xf32>
    %9 = tpu.matmul %5, %8, %cst_11 {dimension_numbers = #tpu.dot_dimension_numbers<[1], [0], [0], [1], [0, 0, 1, 1], [], []>} : vector<256x128xf32>, vector<128x128xf32>, vector<256x128xf32> -> vector<256x128xf32>
    %10 = arith.addf %6, %9 : vector<256x128xf32>
    %c0_12 = arith.constant 0 : index
    %c0_13 = arith.constant 0 : index
    %11 = vector.load %arg6[%c0_12, %c0_13] : memref<256x128xf32, #tpu.memory_space<vmem>>, vector<256x128xf32>
    tpu.vector_store %arg6[%c0_12, %c0_13], %10 {strides = array<i32>} : memref<256x128xf32, #tpu.memory_space<vmem>>, vector<256x128xf32>,
    %12 = vector.extract_strided_slice %0 {offsets = [0, 0, 1, 0], sizes = [1, 16, 16, 128], strides = [1, 1, 1, 1]} : vector<1x18x18x128xf32> to vector<1x16x16x128xf32>
    %13 = vector.shape_cast %12 : vector<1x16x16x128xf32> to vector<16x16x128xf32>
    %14 = vector.shape_cast %13 : vector<16x16x128xf32> to vector<256x128xf32>
    %c0_14 = arith.constant 0 : index
    %c0_15 = arith.constant 0 : index
    %15 = vector.load %arg6[%c0_14, %c0_15] : memref<256x128xf32, #tpu.memory_space<vmem>>, vector<256x128xf32>
    %c0_16 = arith.constant 0 : index
    %c1 = arith.constant 1 : index
    %c0_17 = arith.constant 0 : index
    %c0_18 = arith.constant 0 : index
    %16 = vector.load %arg2[%c0_16, %c1, %c0_17, %c0_18] : memref<3x3x128x128xf32, #tpu.memory_space<vmem>>, vector<1x1x128x128xf32>
    %17 = vector.shape_cast %16 : vector<1x1x128x128xf32> to vector<128x128xf32>
    %cst_19 = arith.constant dense<0.000000e+00> : vector<256x128xf32>
    %18 = tpu.matmul %14, %17, %cst_19 {dimension_numbers = #tpu.dot_dimension_numbers<[1], [0], [0], [1], [0, 0, 1, 1], [], []>} : vector<256x128xf32>, vector<128x128xf32>, vector<256x128xf32> -> vector<256x128xf32>
    %19 = arith.addf %15, %18 : vector<256x128xf32>
    %c0_20 = arith.constant 0 : index
    %c0_21 = arith.constant 0 : index
    %20 = vector.load %arg6[%c0_20, %c0_21] : memref<256x128xf32, #tpu.memory_space<vmem>>, vector<256x128xf32>
    tpu.vector_store %arg6[%c0_20, %c0_21], %19 {strides = array<i32>} : memref<256x128xf32, #tpu.memory_space<vmem>>, vector<256x128xf32>,
    %21 = vector.extract_strided_slice %0 {offsets = [0, 0, 2, 0], sizes = [1, 16, 16, 128], strides = [1, 1, 1, 1]} : vector<1x18x18x128xf32> to vector<1x16x16x128xf32>
    %22 = vector.shape_cast %21 : vector<1x16x16x128xf32> to vector<16x16x128xf32>
    %23 = vector.shape_cast %22 : vector<16x16x128xf32> to vector<256x128xf32>
    %c0_22 = arith.constant 0 : index
    %c0_23 = arith.constant 0 : index
    %24 = vector.load %arg6[%c0_22, %c0_23] : memref<256x128xf32, #tpu.memory_space<vmem>>, vector<256x128xf32>
    %c0_24 = arith.constant 0 : index
    %c2 = arith.constant 2 : index
    %c0_25 = arith.constant 0 : index
    %c0_26 = arith.constant 0 : index
    %25 = vector.load %arg2[%c0_24, %c2, %c0_25, %c0_26] : memref<3x3x128x128xf32, #tpu.memory_space<vmem>>, vector<1x1x128x128xf32>
    %26 = vector.shape_cast %25 : vector<1x1x128x128xf32> to vector<128x128xf32>
    %cst_27 = arith.constant dense<0.000000e+00> : vector<256x128xf32>
    %27 = tpu.matmul %23, %26, %cst_27 {dimension_numbers = #tpu.dot_dimension_numbers<[1], [0], [0], [1], [0, 0, 1, 1], [], []>} : vector<256x128xf32>, vector<128x128xf32>, vector<256x128xf32> -> vector<256x128xf32>
    %28 = arith.addf %24, %27 : vector<256x128xf32>
    %c0_28 = arith.constant 0 : index
    %c0_29 = arith.constant 0 : index
    %29 = vector.load %arg6[%c0_28, %c0_29] : memref<256x128xf32, #tpu.memory_space<vmem>>, vector<256x128xf32>
    tpu.vector_store %arg6[%c0_28, %c0_29], %28 {strides = array<i32>} : memref<256x128xf32, #tpu.memory_space<vmem>>, vector<256x128xf32>,
    %30 = vector.extract_strided_slice %0 {offsets = [0, 1, 0, 0], sizes = [1, 16, 16, 128], strides = [1, 1, 1, 1]} : vector<1x18x18x128xf32> to vector<1x16x16x128xf32>
    %31 = vector.shape_cast %30 : vector<1x16x16x128xf32> to vector<16x16x128xf32>
    %32 = vector.shape_cast %31 : vector<16x16x128xf32> to vector<256x128xf32>
    %c0_30 = arith.constant 0 : index
    %c0_31 = arith.constant 0 : index
    %33 = vector.load %arg6[%c0_30, %c0_31] : memref<256x128xf32, #tpu.memory_space<vmem>>, vector<256x128xf32>
    %c1_32 = arith.constant 1 : index
    %c0_33 = arith.constant 0 : index
    %c0_34 = arith.constant 0 : index
    %c0_35 = arith.constant 0 : index
    %34 = vector.load %arg2[%c1_32, %c0_33, %c0_34, %c0_35] : memref<3x3x128x128xf32, #tpu.memory_space<vmem>>, vector<1x1x128x128xf32>
    %35 = vector.shape_cast %34 : vector<1x1x128x128xf32> to vector<128x128xf32>
    %cst_36 = arith.constant dense<0.000000e+00> : vector<256x128xf32>
    %36 = tpu.matmul %32, %35, %cst_36 {dimension_numbers = #tpu.dot_dimension_numbers<[1], [0], [0], [1], [0, 0, 1, 1], [], []>} : vector<256x128xf32>, vector<128x128xf32>, vector<256x128xf32> -> vector<256x128xf32>
    %37 = arith.addf %33, %36 : vector<256x128xf32>
    %c0_37 = arith.constant 0 : index
    %c0_38 = arith.constant 0 : index
    %38 = vector.load %arg6[%c0_37, %c0_38] : memref<256x128xf32, #tpu.memory_space<vmem>>, vector<256x128xf32>
    tpu.vector_store %arg6[%c0_37, %c0_38], %37 {strides = array<i32>} : memref<256x128xf32, #tpu.memory_space<vmem>>, vector<256x128xf32>,
    %39 = vector.extract_strided_slice %0 {offsets = [0, 1, 1, 0], sizes = [1, 16, 16, 128], strides = [1, 1, 1, 1]} : vector<1x18x18x128xf32> to vector<1x16x16x128xf32>
    %40 = vector.shape_cast %39 : vector<1x16x16x128xf32> to vector<16x16x128xf32>
    %41 = vector.shape_cast %40 : vector<16x16x128xf32> to vector<256x128xf32>
    %c0_39 = arith.constant 0 : index
    %c0_40 = arith.constant 0 : index
    %42 = vector.load %arg6[%c0_39, %c0_40] : memref<256x128xf32, #tpu.memory_space<vmem>>, vector<256x128xf32>
    %c1_41 = arith.constant 1 : index
    %c1_42 = arith.constant 1 : index
    %c0_43 = arith.constant 0 : index
    %c0_44 = arith.constant 0 : index
    %43 = vector.load %arg2[%c1_41, %c1_42, %c0_43, %c0_44] : memref<3x3x128x128xf32, #tpu.memory_space<vmem>>, vector<1x1x128x128xf32>
    %44 = vector.shape_cast %43 : vector<1x1x128x128xf32> to vector<128x128xf32>
    %cst_45 = arith.constant dense<0.000000e+00> : vector<256x128xf32>
    %45 = tpu.matmul %41, %44, %cst_45 {dimension_numbers = #tpu.dot_dimension_numbers<[1], [0], [0], [1], [0, 0, 1, 1], [], []>} : vector<256x128xf32>, vector<128x128xf32>, vector<256x128xf32> -> vector<256x128xf32>
    %46 = arith.addf %42, %45 : vector<256x128xf32>
    %c0_46 = arith.constant 0 : index
    %c0_47 = arith.constant 0 : index
    %47 = vector.load %arg6[%c0_46, %c0_47] : memref<256x128xf32, #tpu.memory_space<vmem>>, vector<256x128xf32>
    tpu.vector_store %arg6[%c0_46, %c0_47], %46 {strides = array<i32>} : memref<256x128xf32, #tpu.memory_space<vmem>>, vector<256x128xf32>,
    %48 = vector.extract_strided_slice %0 {offsets = [0, 1, 2, 0], sizes = [1, 16, 16, 128], strides = [1, 1, 1, 1]} : vector<1x18x18x128xf32> to vector<1x16x16x128xf32>
    %49 = vector.shape_cast %48 : vector<1x16x16x128xf32> to vector<16x16x128xf32>
    %50 = vector.shape_cast %49 : vector<16x16x128xf32> to vector<256x128xf32>
    %c0_48 = arith.constant 0 : index
    %c0_49 = arith.constant 0 : index
    %51 = vector.load %arg6[%c0_48, %c0_49] : memref<256x128xf32, #tpu.memory_space<vmem>>, vector<256x128xf32>
    %c1_50 = arith.constant 1 : index
    %c2_51 = arith.constant 2 : index
    %c0_52 = arith.constant 0 : index
    %c0_53 = arith.constant 0 : index
    %52 = vector.load %arg2[%c1_50, %c2_51, %c0_52, %c0_53] : memref<3x3x128x128xf32, #tpu.memory_space<vmem>>, vector<1x1x128x128xf32>
    %53 = vector.shape_cast %52 : vector<1x1x128x128xf32> to vector<128x128xf32>
    %cst_54 = arith.constant dense<0.000000e+00> : vector<256x128xf32>
    %54 = tpu.matmul %50, %53, %cst_54 {dimension_numbers = #tpu.dot_dimension_numbers<[1], [0], [0], [1], [0, 0, 1, 1], [], []>} : vector<256x128xf32>, vector<128x128xf32>, vector<256x128xf32> -> vector<256x128xf32>
    %55 = arith.addf %51, %54 : vector<256x128xf32>
    %c0_55 = arith.constant 0 : index
    %c0_56 = arith.constant 0 : index
    %56 = vector.load %arg6[%c0_55, %c0_56] : memref<256x128xf32, #tpu.memory_space<vmem>>, vector<256x128xf32>
    tpu.vector_store %arg6[%c0_55, %c0_56], %55 {strides = array<i32>} : memref<256x128xf32, #tpu.memory_space<vmem>>, vector<256x128xf32>,
    %57 = vector.extract_strided_slice %0 {offsets = [0, 2, 0, 0], sizes = [1, 16, 16, 128], strides = [1, 1, 1, 1]} : vector<1x18x18x128xf32> to vector<1x16x16x128xf32>
    %58 = vector.shape_cast %57 : vector<1x16x16x128xf32> to vector<16x16x128xf32>
    %59 = vector.shape_cast %58 : vector<16x16x128xf32> to vector<256x128xf32>
    %c0_57 = arith.constant 0 : index
    %c0_58 = arith.constant 0 : index
    %60 = vector.load %arg6[%c0_57, %c0_58] : memref<256x128xf32, #tpu.memory_space<vmem>>, vector<256x128xf32>
    %c2_59 = arith.constant 2 : index
    %c0_60 = arith.constant 0 : index
    %c0_61 = arith.constant 0 : index
    %c0_62 = arith.constant 0 : index
    %61 = vector.load %arg2[%c2_59, %c0_60, %c0_61, %c0_62] : memref<3x3x128x128xf32, #tpu.memory_space<vmem>>, vector<1x1x128x128xf32>
    %62 = vector.shape_cast %61 : vector<1x1x128x128xf32> to vector<128x128xf32>
    %cst_63 = arith.constant dense<0.000000e+00> : vector<256x128xf32>
    %63 = tpu.matmul %59, %62, %cst_63 {dimension_numbers = #tpu.dot_dimension_numbers<[1], [0], [0], [1], [0, 0, 1, 1], [], []>} : vector<256x128xf32>, vector<128x128xf32>, vector<256x128xf32> -> vector<256x128xf32>
    %64 = arith.addf %60, %63 : vector<256x128xf32>
    %c0_64 = arith.constant 0 : index
    %c0_65 = arith.constant 0 : index
    %65 = vector.load %arg6[%c0_64, %c0_65] : memref<256x128xf32, #tpu.memory_space<vmem>>, vector<256x128xf32>
    tpu.vector_store %arg6[%c0_64, %c0_65], %64 {strides = array<i32>} : memref<256x128xf32, #tpu.memory_space<vmem>>, vector<256x128xf32>,
    %66 = vector.extract_strided_slice %0 {offsets = [0, 2, 1, 0], sizes = [1, 16, 16, 128], strides = [1, 1, 1, 1]} : vector<1x18x18x128xf32> to vector<1x16x16x128xf32>
    %67 = vector.shape_cast %66 : vector<1x16x16x128xf32> to vector<16x16x128xf32>
    %68 = vector.shape_cast %67 : vector<16x16x128xf32> to vector<256x128xf32>
    %c0_66 = arith.constant 0 : index
    %c0_67 = arith.constant 0 : index
    %69 = vector.load %arg6[%c0_66, %c0_67] : memref<256x128xf32, #tpu.memory_space<vmem>>, vector<256x128xf32>
    %c2_68 = arith.constant 2 : index
    %c1_69 = arith.constant 1 : index
    %c0_70 = arith.constant 0 : index
    %c0_71 = arith.constant 0 : index
    %70 = vector.load %arg2[%c2_68, %c1_69, %c0_70, %c0_71] : memref<3x3x128x128xf32, #tpu.memory_space<vmem>>, vector<1x1x128x128xf32>
    %71 = vector.shape_cast %70 : vector<1x1x128x128xf32> to vector<128x128xf32>
    %cst_72 = arith.constant dense<0.000000e+00> : vector<256x128xf32>
    %72 = tpu.matmul %68, %71, %cst_72 {dimension_numbers = #tpu.dot_dimension_numbers<[1], [0], [0], [1], [0, 0, 1, 1], [], []>} : vector<256x128xf32>, vector<128x128xf32>, vector<256x128xf32> -> vector<256x128xf32>
    %73 = arith.addf %69, %72 : vector<256x128xf32>
    %c0_73 = arith.constant 0 : index
    %c0_74 = arith.constant 0 : index
    %74 = vector.load %arg6[%c0_73, %c0_74] : memref<256x128xf32, #tpu.memory_space<vmem>>, vector<256x128xf32>
    tpu.vector_store %arg6[%c0_73, %c0_74], %73 {strides = array<i32>} : memref<256x128xf32, #tpu.memory_space<vmem>>, vector<256x128xf32>,
    %75 = vector.extract_strided_slice %0 {offsets = [0, 2, 2, 0], sizes = [1, 16, 16, 128], strides = [1, 1, 1, 1]} : vector<1x18x18x128xf32> to vector<1x16x16x128xf32>
    %76 = vector.shape_cast %75 : vector<1x16x16x128xf32> to vector<16x16x128xf32>
    %77 = vector.shape_cast %76 : vector<16x16x128xf32> to vector<256x128xf32>
    %c0_75 = arith.constant 0 : index
    %c0_76 = arith.constant 0 : index
    %78 = vector.load %arg6[%c0_75, %c0_76] : memref<256x128xf32, #tpu.memory_space<vmem>>, vector<256x128xf32>
    %c2_77 = arith.constant 2 : index
    %c2_78 = arith.constant 2 : index
    %c0_79 = arith.constant 0 : index
    %c0_80 = arith.constant 0 : index
    %79 = vector.load %arg2[%c2_77, %c2_78, %c0_79, %c0_80] : memref<3x3x128x128xf32, #tpu.memory_space<vmem>>, vector<1x1x128x128xf32>
    %80 = vector.shape_cast %79 : vector<1x1x128x128xf32> to vector<128x128xf32>
    %cst_81 = arith.constant dense<0.000000e+00> : vector<256x128xf32>
    %81 = tpu.matmul %77, %80, %cst_81 {dimension_numbers = #tpu.dot_dimension_numbers<[1], [0], [0], [1], [0, 0, 1, 1], [], []>} : vector<256x128xf32>, vector<128x128xf32>, vector<256x128xf32> -> vector<256x128xf32>
    %82 = arith.addf %78, %81 : vector<256x128xf32>
    %c0_82 = arith.constant 0 : index
    %c0_83 = arith.constant 0 : index
    %83 = vector.load %arg6[%c0_82, %c0_83] : memref<256x128xf32, #tpu.memory_space<vmem>>, vector<256x128xf32>
    tpu.vector_store %arg6[%c0_82, %c0_83], %82 {strides = array<i32>} : memref<256x128xf32, #tpu.memory_space<vmem>>, vector<256x128xf32>,
    %c0_84 = arith.constant 0 : index
    %c0_85 = arith.constant 0 : index
    %84 = vector.load %arg6[%c0_84, %c0_85] : memref<256x128xf32, #tpu.memory_space<vmem>>, vector<256x128xf32>
    %85 = vector.shape_cast %84 : vector<256x128xf32> to vector<1x16x16x128xf32>
    %c0_86 = arith.constant 0 : index
    %c0_87 = arith.constant 0 : index
    %c0_88 = arith.constant 0 : index
    %c0_89 = arith.constant 0 : index
    %86 = vector.load %arg3[%c0_86, %c0_87, %c0_88, %c0_89] : memref<1x16x16x128xf32, #tpu.memory_space<vmem>>, vector<1x16x16x128xf32>
    tpu.vector_store %arg3[%c0_86, %c0_87, %c0_88, %c0_89], %85 {strides = array<i32>} : memref<1x16x16x128xf32, #tpu.memory_space<vmem>>, vector<1x16x16x128xf32>,
    %cst_90 = arith.constant dense<0.000000e+00> : vector<128xf32>
    %87 = vector.multi_reduction <add>, %84, %cst_90 [0] : vector<256x128xf32> to vector<128xf32>
    %88 = vector.shape_cast %87 : vector<128xf32> to vector<1x128xf32>
    %89 = vector.shape_cast %88 : vector<1x128xf32> to vector<1x1x128xf32>
    %c0_91 = arith.constant 0 : index
    %c0_92 = arith.constant 0 : index
    %c0_93 = arith.constant 0 : index
    %90 = vector.load %arg4[%c0_91, %c0_92, %c0_93] : memref<1x1x128xf32, #tpu.memory_space<vmem>>, vector<1x1x128xf32>
    tpu.vector_store %arg4[%c0_91, %c0_92, %c0_93], %89 {strides = array<i32>} : memref<1x1x128xf32, #tpu.memory_space<vmem>>, vector<1x1x128xf32>,
    %91 = arith.mulf %84, %84 : vector<256x128xf32>
    %cst_94 = arith.constant dense<0.000000e+00> : vector<128xf32>
    %92 = vector.multi_reduction <add>, %91, %cst_94 [0] : vector<256x128xf32> to vector<128xf32>
    %93 = vector.shape_cast %92 : vector<128xf32> to vector<1x128xf32>
    %94 = vector.shape_cast %93 : vector<1x128xf32> to vector<1x1x128xf32>
    %c0_95 = arith.constant 0 : index
    %c0_96 = arith.constant 0 : index
    %c0_97 = arith.constant 0 : index
    %95 = vector.load %arg5[%c0_95, %c0_96, %c0_97] : memref<1x1x128xf32, #tpu.memory_space<vmem>>, vector<1x1x128xf32>
    tpu.vector_store %arg5[%c0_95, %c0_96, %c0_97], %94 {strides = array<i32>} : memref<1x1x128xf32, #tpu.memory_space<vmem>>, vector<1x1x128xf32>,
    return
  }
  func.func @transform_0(%arg0: i32) -> (i32, i32, i32, i32) {
    %c0_i32 = arith.constant 0 : i32
    %c0_i32_0 = arith.constant 0 : i32
    %c0_i32_1 = arith.constant 0 : i32
    %c0_i32_2 = arith.constant 0 : i32
    return %arg0, %c0_i32, %c0_i32_0, %c0_i32_1 : i32, i32, i32, i32
  }
  func.func @transform_1(%arg0: i32) -> (i32, i32, i32, i32) {
    %c0_i32 = arith.constant 0 : i32
    %c0_i32_0 = arith.constant 0 : i32
    %c0_i32_1 = arith.constant 0 : i32
    %c0_i32_2 = arith.constant 0 : i32
    %c0_i32_3 = arith.constant 0 : i32
    return %c0_i32, %c0_i32_0, %c0_i32_1, %c0_i32_2 : i32, i32, i32, i32
  }
  func.func @transform_2(%arg0: i32) -> (i32, i32, i32, i32) {
    %c0_i32 = arith.constant 0 : i32
    %c0_i32_0 = arith.constant 0 : i32
    %c0_i32_1 = arith.constant 0 : i32
    %c0_i32_2 = arith.constant 0 : i32
    return %arg0, %c0_i32, %c0_i32_0, %c0_i32_1 : i32, i32, i32, i32
  }
  func.func @transform_3(%arg0: i32) -> (i32, i32, i32) {
    %c0_i32 = arith.constant 0 : i32
    %c0_i32_0 = arith.constant 0 : i32
    %c0_i32_1 = arith.constant 0 : i32
    return %arg0, %c0_i32, %c0_i32_0 : i32, i32, i32
  }
  func.func @transform_4(%arg0: i32) -> (i32, i32, i32) {
    %c0_i32 = arith.constant 0 : i32
    %c0_i32_0 = arith.constant 0 : i32
    %c0_i32_1 = arith.constant 0 : i32
    return %arg0, %c0_i32, %c0_i32_0 : i32, i32, i32
  }
}

</mosaic_0001>

<llo_original>
// kernel: tpu_custom_call.1
$region0: #{tpu_custom_call.1}
  #allocation0 [shape = 'u32[]', space=smem, size = 0x4, offset = 0x4, fixed_abs, tag = 'smem constant byte address 0x4 - core index']
  #allocation1 [shape = 'u32[144,128]{1,0:T(1,128)}', space=vmem, size = 0x12000, scoped, tag = 'internal scratch']
  #allocation2 [shape = 'f32[256,128]{1,0:T(8,128)}', space=vmem, size = 0x20000, scoped, tag = 'scratch operand']
  %s0 = inlined_call_operand.vmem [shape: f32[2,18,18,128], index: 0, kind: input, shape index: {}]
  %s1 = inlined_call_operand.vmem [shape: f32[3,3,128,128], index: 1, kind: input, shape index: {}]
  %s2 = inlined_call_operand.hbm [shape: f32[2,16,16,128], index: 2, kind: output, shape index: {0}]
  %s3 = inlined_call_operand.hbm [shape: f32[2,1,128], index: 3, kind: output, shape index: {1}]
  %s4 = inlined_call_operand.hbm [shape: f32[2,1,128], index: 4, kind: output, shape index: {2}]
  %5 = xla_tuple %s2, %s3, %s4
  %s6 = sld [smem:[#allocation0]]
  $region57: #{tpu_custom_call.1} parent=0
    _
  %s8 = ssub.s32 1, %s6
  %s9 = scalar_select 0, %s8, %s6
  $region1: #{tpu_custom_call.1} parent=0
    #allocation3 [shape = 'u8[262144]{0}', space=vmem, size = 0x40000, scoped, tag = 'output window, operand 0']
    #allocation4 [shape = 's32[2]{0}', space=sflag, size = 0x8, scoped, tag = 'scoped memory for tpu_custom_call.1']
    #allocation5 [shape = 'u8[1024]{0}', space=vmem, size = 0x400, scoped, tag = 'output window, operand 1']
    #allocation6 [shape = 's32[2]{0}', space=sflag, size = 0x8, scoped, tag = 'scoped memory for tpu_custom_call.1']
    #allocation7 [shape = 'u8[1024]{0}', space=vmem, size = 0x400, scoped, tag = 'output window, operand 2']
    %10 = vsyncpa [#allocation4], 0
    %s11 = scalar_lea.sflag [#allocation4], 1
    %12 = vsyncpa %s11, 0
    %13 = vsyncpa [#allocation6], 0
    %s14 = scalar_lea.sflag [#allocation6], 1
    %15 = vsyncpa %s14, 0
    loop: start=0, step=1, limit=4
    $region2: #{tpu_custom_call.1} parent=1 // loop_pre_header
      _
    $region3: #{tpu_custom_call.1} parent=1 // loop_header
      %s17 = sphi 0, %s21
      %p18 = scmp.ge.s32.totalorder %s17, 4
      %s27 = sphi 0, %s29
      %s30 = sphi 0, %s27
      %s31 = sphi 0, %s30
      %s47 = sphi 0, %s31
      %s51 = sphi 0, %s51
      %s53 = sphi 0, %s51
      %s54 = sphi 0, %s53
      %s68 = sphi 0, %s54
      %s74 = sphi 0, %s76
      %s77 = sphi 0, %s74
      %s78 = sphi 0, %s77
      %s94 = sphi 0, %s78
      %s100 = sphi 0, %s102
      %s103 = sphi 0, %s100
      %s104 = sphi 0, %s103
      %s120 = sphi 0, %s104
      %s126 = sphi 0, %s128
      %s129 = sphi 0, %s126
      %s130 = sphi 0, %s129
      %s146 = sphi 0, %s130
    $region4: #{tpu_custom_call.1} parent=1 // loop_header_branch
      %20 = sbr.rel (%p18) target = $region8
    $region5: #{tpu_custom_call.1} parent=1 // loop_body
      %s22 = ssub.s32 %s17, 1
      %s23 = ssub.s32 %s17, 2
      %s24 = sadd.s32 %s17, 1
      %s25 = ssub.s32 %s17, %s24
      %p26 = scmp.eq.s32.totalorder %s25, 0
      %s28 = sadd.s32 %s27, 1
      %s29 = scalar_select %p26, %s27, %s28
      %p32 = pneg %p26
      %p33 = scmp.eq.s32.totalorder %s17, 1
      %p34 = por %p32, %p33
      %p35 = scmp.ne.s32.totalorder %s27, %s30
      %p36 = scmp.eq.s32.totalorder %s17, 0
      %p37 = por %p35, %p36
      %p38 = scmp.ne.s32.totalorder %s27, %s30
      %p39 = scmp.eq.s32.totalorder %s22, 1
      %p40 = por %p38, %p39
      %p41 = scmp.ne.s32.totalorder %s30, %s31
      %p42 = scmp.eq.s32.totalorder %s22, 0
      %p43 = por %p41, %p42
      %p44 = scmp.ne.s32.totalorder %s30, %s31
      %p45 = scmp.eq.s32.totalorder %s23, 1
      %p46 = por %p44, %p45
      %p48 = scmp.ne.s32.totalorder %s31, %s47
      %p49 = scmp.eq.s32.totalorder %s23, 0
      %p50 = por %p48, %p49
      %s52 = sadd.s32 %s51, 1
      %p55 = scmp.eq.s32.totalorder %s17, 1
      %p56 = scmp.ne.s32.totalorder %s51, %s53
      %p57 = scmp.eq.s32.totalorder %s17, 0
      %p58 = por %p56, %p57
      %p59 = scmp.ne.s32.totalorder %s51, %s53
      %p60 = scmp.eq.s32.totalorder %s22, 1
      %p61 = por %p59, %p60
      %p62 = scmp.ne.s32.totalorder %s53, %s54
      %p63 = scmp.eq.s32.totalorder %s22, 0
      %p64 = por %p62, %p63
      %p65 = scmp.ne.s32.totalorder %s53, %s54
      %p66 = scmp.eq.s32.totalorder %s23, 1
      %p67 = por %p65, %p66
      %p69 = scmp.ne.s32.totalorder %s54, %s68
      %p70 = scmp.eq.s32.totalorder %s23, 0
      %p71 = por %p69, %p70
      %s72 = ssub.s32 %s17, %s24
      %p73 = scmp.eq.s32.totalorder %s72, 0
      %s75 = sadd.s32 %s74, 1
      %s76 = scalar_select %p73, %s74, %s75
      %p79 = pneg %p73
      %p80 = scmp.eq.s32.totalorder %s17, 1
      %p81 = por %p79, %p80
      %p82 = scmp.ne.s32.totalorder %s74, %s77
      %p83 = scmp.eq.s32.totalorder %s17, 0
      %p84 = por %p82, %p83
      %p85 = scmp.ne.s32.totalorder %s74, %s77
      %p86 = scmp.eq.s32.totalorder %s22, 1
      %p87 = por %p85, %p86
      %p88 = scmp.ne.s32.totalorder %s77, %s78
      %p89 = scmp.eq.s32.totalorder %s22, 0
      %p90 = por %p88, %p89
      %p91 = scmp.ne.s32.totalorder %s77, %s78
      %p92 = scmp.eq.s32.totalorder %s23, 1
      %p93 = por %p91, %p92
      %p95 = scmp.ne.s32.totalorder %s78, %s94
      %p96 = scmp.eq.s32.totalorder %s23, 0
      %p97 = por %p95, %p96
      %s98 = ssub.s32 %s17, %s24
      %p99 = scmp.eq.s32.totalorder %s98, 0
      %s101 = sadd.s32 %s100, 1
      %s102 = scalar_select %p99, %s100, %s101
      %p105 = pneg %p99
      %p106 = scmp.eq.s32.totalorder %s17, 1
      %p107 = por %p105, %p106
      %p108 = scmp.ne.s32.totalorder %s100, %s103
      %p109 = scmp.eq.s32.totalorder %s17, 0
      %p110 = por %p108, %p109
      %p111 = scmp.ne.s32.totalorder %s100, %s103
      %p112 = scmp.eq.s32.totalorder %s22, 1
      %p113 = por %p111, %p112
      %p114 = scmp.ne.s32.totalorder %s103, %s104
      %p115 = scmp.eq.s32.totalorder %s22, 0
      %p116 = por %p114, %p115
      %p117 = scmp.ne.s32.totalorder %s103, %s104
      %p118 = scmp.eq.s32.totalorder %s23, 1
      %p119 = por %p117, %p118
      %p121 = scmp.ne.s32.totalorder %s104, %s120
      %p122 = scmp.eq.s32.totalorder %s23, 0
      %p123 = por %p121, %p122
      %s124 = ssub.s32 %s17, %s24
      %p125 = scmp.eq.s32.totalorder %s124, 0
      %s127 = sadd.s32 %s126, 1
      %s128 = scalar_select %p125, %s126, %s127
      %p131 = pneg %p125
      %p132 = scmp.eq.s32.totalorder %s17, 1
      %p133 = por %p131, %p132
      %p134 = scmp.ne.s32.totalorder %s126, %s129
      %p135 = scmp.eq.s32.totalorder %s17, 0
      %p136 = por %p134, %p135
      %p137 = scmp.ne.s32.totalorder %s126, %s129
      %p138 = scmp.eq.s32.totalorder %s22, 1
      %p139 = por %p137, %p138
      %p140 = scmp.ne.s32.totalorder %s129, %s130
      %p141 = scmp.eq.s32.totalorder %s22, 0
      %p142 = por %p140, %p141
      %p143 = scmp.ne.s32.totalorder %s129, %s130
      %p144 = scmp.eq.s32.totalorder %s23, 1
      %p145 = por %p143, %p144
      %p147 = scmp.ne.s32.totalorder %s130, %s146
      %p148 = scmp.eq.s32.totalorder %s23, 0
      %p149 = por %p147, %p148
      %p150 = scmp.le.s32.totalorder 1, %s17
      %p151 = scmp.lt.s32.totalorder %s17, 3
      %p152 = pnand %p150, %p151
      %p153 = pneg %p152
      // Predicated region
      $region9: #{tpu_custom_call.1} parent=5 // pred_check
        _
      $region10: #{tpu_custom_call.1} parent=5 // pred_check_branch
        %155 = sbr.rel (%p152) target = $region12
      $region11: #{tpu_custom_call.1} parent=5 // pred_region
        %s156 = ssub.s32 %s17, 1
        // Predicated region
        $region13: #{tpu_custom_call.1} parent=11 // pred_check
          %p157 = pneg %p64
        $region14: #{tpu_custom_call.1} parent=11 // pred_check_branch
          %159 = sbr.rel (%p157) target = $region16
        $region15: #{tpu_custom_call.1} parent=11 // pred_region
          _
        $region16: #{tpu_custom_call.1} parent=11 // pred_fallthru
          _
      $region12: #{tpu_custom_call.1} parent=5 // pred_fallthru
        _
      %p160 = scmp.lt.s32.totalorder %s17, 2
      // Predicated region
      $region17: #{tpu_custom_call.1} parent=5 // pred_check
        %p161 = pneg %p160
      $region18: #{tpu_custom_call.1} parent=5 // pred_check_branch
        %163 = sbr.rel (%p161) target = $region20
      $region19: #{tpu_custom_call.1} parent=5 // pred_region
        // Predicated region
        $region21: #{tpu_custom_call.1} parent=19 // pred_check
          %p164 = pneg %p37
        $region22: #{tpu_custom_call.1} parent=19 // pred_check_branch
          %166 = sbr.rel (%p164) target = $region24
        $region23: #{tpu_custom_call.1} parent=19 // pred_region
          %p167 = scmp.lt.s32.totalorder %s17, 1
          %s168 = scalar_select %p167, %s17, 1
          %s169 = smul.addr %s168, 54
          %s170 = smul.addr %s169, 8
          %s171 = scalar_lea.vmem %s0, %s170
        $region24: #{tpu_custom_call.1} parent=19 // pred_fallthru
          _
      $region20: #{tpu_custom_call.1} parent=5 // pred_fallthru
        _
      %p172 = scmp.le.s32.totalorder 1, %s17
      %p173 = scmp.lt.s32.totalorder %s17, 3
      %p174 = pnand %p172, %p173
      %p175 = pneg %p174
      // Predicated region
      $region25: #{tpu_custom_call.1} parent=5 // pred_check
        _
      $region26: #{tpu_custom_call.1} parent=5 // pred_check_branch
        %177 = sbr.rel (%p174) target = $region28
      $region27: #{tpu_custom_call.1} parent=5 // pred_region
        %s178 = ssub.s32 %s17, 1
        %p179 = scmp.lt.s32.totalorder %s22, 1
        %s180 = scalar_select %p179, %s22, 1
        %s181 = smul.addr %s180, 54
        %s182 = smul.addr %s181, 8
        %s183 = scalar_lea.vmem %s0, %s182
        %p184 = pneg %p43
        %p185 = pneg %p40
        %p186 = pneg %p64
        %p187 = pneg %p61
        %p188 = pneg %p90
        %p189 = pneg %p87
        %s190 = sand.u32 %s77, 1
        %s191 = scalar_lea.sflag [#allocation4], %s190
        %s192 = sand.u32 %s77, 1
        %s193 = smul.addr %s192, 256
        %s194 = scalar_lea.vmem [#allocation3], %s193
        %p195 = pneg %p116
        %p196 = pneg %p113
        %s197 = sand.u32 %s22, 1
        %s198 = scalar_lea.sflag [#allocation6], %s197
        %s199 = sand.u32 %s103, 1
        %s200 = scalar_lea.vmem [#allocation5], %s199
        %p201 = pneg %p142
        %p202 = pneg %p139
        %s203 = sand.u32 %s22, 1
        %s204 = scalar_lea.sflag [#allocation6], %s203
        %s205 = sand.u32 %s129, 1
        %s206 = scalar_lea.vmem [#allocation7], %s205
        %p207 = scmp.lt.s32.totalorder %s22, 1
        %s208 = scalar_select %p207, %s22, 1
        %s209 = smul.addr %s208, 54
        %s210 = smul.addr %s209, 8
        %s211 = scalar_lea.vmem %s0, %s210
        %v212 = vld [vmem:[%s211] sm:$0xff]
        %v213 = vld [vmem:[%s211 + $0x8] sm:$0xff]
        %v214 = vld [vmem:[%s211 + $0x10] sm:$0x3]
        %v215 = vld [vmem:[%s211 + $0x18] sm:$0xff]
        %v216 = vld [vmem:[%s211 + $0x20] sm:$0xff]
        %v217 = vld [vmem:[%s211 + $0x28] sm:$0x3]
        %v218 = vld [vmem:[%s211 + $0x30] sm:$0xff]
        %v219 = vld [vmem:[%s211 + $0x38] sm:$0xff]
        %v220 = vld [vmem:[%s211 + $0x40] sm:$0x3]
        %v221 = vld [vmem:[%s211 + $0x48] sm:$0xff]
        %v222 = vld [vmem:[%s211 + $0x50] sm:$0xff]
        %v223 = vld [vmem:[%s211 + $0x58] sm:$0x3]
        %v224 = vld [vmem:[%s211 + $0x60] sm:$0xff]
        %v225 = vld [vmem:[%s211 + $0x68] sm:$0xff]
        %v226 = vld [vmem:[%s211 + $0x70] sm:$0x3]
        %v227 = vld [vmem:[%s211 + $0x78] sm:$0xff]
        %v228 = vld [vmem:[%s211 + $0x80] sm:$0xff]
        %v229 = vld [vmem:[%s211 + $0x88] sm:$0x3]
        %v230 = vld [vmem:[%s211 + $0x90] sm:$0xff]
        %v231 = vld [vmem:[%s211 + $0x98] sm:$0xff]
        %v232 = vld [vmem:[%s211 + $0xa0] sm:$0x3]
        %v233 = vld [vmem:[%s211 + $0xa8] sm:$0xff]
        %v234 = vld [vmem:[%s211 + $0xb0] sm:$0xff]
        %v235 = vld [vmem:[%s211 + $0xb8] sm:$0x3]
        %v236 = vld [vmem:[%s211 + $0xc0] sm:$0xff]
        %v237 = vld [vmem:[%s211 + $0xc8] sm:$0xff]
        %v238 = vld [vmem:[%s211 + $0xd0] sm:$0x3]
        %v239 = vld [vmem:[%s211 + $0xd8] sm:$0xff]
        %v240 = vld [vmem:[%s211 + $0xe0] sm:$0xff]
        %v241 = vld [vmem:[%s211 + $0xe8] sm:$0x3]
        %v242 = vld [vmem:[%s211 + $0xf0] sm:$0xff]
        %v243 = vld [vmem:[%s211 + $0xf8] sm:$0xff]
        %v244 = vld [vmem:[%s211 + $0x100] sm:$0x3]
        %v245 = vld [vmem:[%s211 + $0x108] sm:$0xff]
        %v246 = vld [vmem:[%s211 + $0x110] sm:$0xff]
        %v247 = vld [vmem:[%s211 + $0x118] sm:$0x3]
        %v248 = vld [vmem:[%s211 + $0x120] sm:$0xff]
        %v249 = vld [vmem:[%s211 + $0x128] sm:$0xff]
        %v250 = vld [vmem:[%s211 + $0x130] sm:$0x3]
        %v251 = vld [vmem:[%s211 + $0x138] sm:$0xff]
        %v252 = vld [vmem:[%s211 + $0x140] sm:$0xff]
        %v253 = vld [vmem:[%s211 + $0x148] sm:$0x3]
        %v254 = vld [vmem:[%s211 + $0x150] sm:$0xff]
        %v255 = vld [vmem:[%s211 + $0x158] sm:$0xff]
        %v256 = vld [vmem:[%s211 + $0x160] sm:$0x3]
        %v257 = vld [vmem:[%s211 + $0x168] sm:$0xff]
        %v258 = vld [vmem:[%s211 + $0x170] sm:$0xff]
        %v259 = vld [vmem:[%s211 + $0x178] sm:$0x3]
        %v260 = vld [vmem:[%s211 + $0x180] sm:$0xff]
        %v261 = vld [vmem:[%s211 + $0x188] sm:$0xff]
        %v262 = vld [vmem:[%s211 + $0x190] sm:$0x3]
        %v263 = vld [vmem:[%s211 + $0x198] sm:$0xff]
        %v264 = vld [vmem:[%s211 + $0x1a0] sm:$0xff]
        %v265 = vld [vmem:[%s211 + $0x1a8] sm:$0x3]
        %266 = vst [vmem:[#allocation2] sm:$0xff] 0.0
        %267 = vst [vmem:[#allocation2 + $0x8] sm:$0xff] 0.0
        %268 = vst [vmem:[#allocation2 + $0x10] sm:$0xff] 0.0
        %269 = vst [vmem:[#allocation2 + $0x18] sm:$0xff] 0.0
        %270 = vst [vmem:[#allocation2 + $0x20] sm:$0xff] 0.0
        %271 = vst [vmem:[#allocation2 + $0x28] sm:$0xff] 0.0
        %272 = vst [vmem:[#allocation2 + $0x30] sm:$0xff] 0.0
        %273 = vst [vmem:[#allocation2 + $0x38] sm:$0xff] 0.0
        %274 = vst [vmem:[#allocation2 + $0x40] sm:$0xff] 0.0
        %275 = vst [vmem:[#allocation2 + $0x48] sm:$0xff] 0.0
        %276 = vst [vmem:[#allocation2 + $0x50] sm:$0xff] 0.0
        %277 = vst [vmem:[#allocation2 + $0x58] sm:$0xff] 0.0
        %278 = vst [vmem:[#allocation2 + $0x60] sm:$0xff] 0.0
        %279 = vst [vmem:[#allocation2 + $0x68] sm:$0xff] 0.0
        %280 = vst [vmem:[#allocation2 + $0x70] sm:$0xff] 0.0
        %281 = vst [vmem:[#allocation2 + $0x78] sm:$0xff] 0.0
        %282 = vst [vmem:[#allocation2 + $0x80] sm:$0xff] 0.0
        %283 = vst [vmem:[#allocation2 + $0x88] sm:$0xff] 0.0
        %284 = vst [vmem:[#allocation2 + $0x90] sm:$0xff] 0.0
        %285 = vst [vmem:[#allocation2 + $0x98] sm:$0xff] 0.0
        %286 = vst [vmem:[#allocation2 + $0xa0] sm:$0xff] 0.0
        %287 = vst [vmem:[#allocation2 + $0xa8] sm:$0xff] 0.0
        %288 = vst [vmem:[#allocation2 + $0xb0] sm:$0xff] 0.0
        %289 = vst [vmem:[#allocation2 + $0xb8] sm:$0xff] 0.0
        %290 = vst [vmem:[#allocation2 + $0xc0] sm:$0xff] 0.0
        %291 = vst [vmem:[#allocation2 + $0xc8] sm:$0xff] 0.0
        %292 = vst [vmem:[#allocation2 + $0xd0] sm:$0xff] 0.0
        %293 = vst [vmem:[#allocation2 + $0xd8] sm:$0xff] 0.0
        %294 = vst [vmem:[#allocation2 + $0xe0] sm:$0xff] 0.0
        %295 = vst [vmem:[#allocation2 + $0xe8] sm:$0xff] 0.0
        %296 = vst [vmem:[#allocation2 + $0xf0] sm:$0xff] 0.0
        %297 = vst [vmem:[#allocation2 + $0xf8] sm:$0xff] 0.0
        %v298 = vld [vmem:[#allocation2] sm:$0xff]
        %v299 = vld [vmem:[#allocation2 + $0x8] sm:$0xff]
        %v300 = vld [vmem:[#allocation2 + $0x10] sm:$0xff]
        %v301 = vld [vmem:[#allocation2 + $0x18] sm:$0xff]
        %v302 = vld [vmem:[#allocation2 + $0x20] sm:$0xff]
        %v303 = vld [vmem:[#allocation2 + $0x28] sm:$0xff]
        %v304 = vld [vmem:[#allocation2 + $0x30] sm:$0xff]
        %v305 = vld [vmem:[#allocation2 + $0x38] sm:$0xff]
        %v306 = vld [vmem:[#allocation2 + $0x40] sm:$0xff]
        %v307 = vld [vmem:[#allocation2 + $0x48] sm:$0xff]
        %v308 = vld [vmem:[#allocation2 + $0x50] sm:$0xff]
        %v309 = vld [vmem:[#allocation2 + $0x58] sm:$0xff]
        %v310 = vld [vmem:[#allocation2 + $0x60] sm:$0xff]
        %v311 = vld [vmem:[#allocation2 + $0x68] sm:$0xff]
        %v312 = vld [vmem:[#allocation2 + $0x70] sm:$0xff]
        %v313 = vld [vmem:[#allocation2 + $0x78] sm:$0xff]
        %v314 = vld [vmem:[#allocation2 + $0x80] sm:$0xff]
        %v315 = vld [vmem:[#allocation2 + $0x88] sm:$0xff]
        %v316 = vld [vmem:[#allocation2 + $0x90] sm:$0xff]
        %v317 = vld [vmem:[#allocation2 + $0x98] sm:$0xff]
        %v318 = vld [vmem:[#allocation2 + $0xa0] sm:$0xff]
        %v319 = vld [vmem:[#allocation2 + $0xa8] sm:$0xff]
        %v320 = vld [vmem:[#allocation2 + $0xb0] sm:$0xff]
        %v321 = vld [vmem:[#allocation2 + $0xb8] sm:$0xff]
        %v322 = vld [vmem:[#allocation2 + $0xc0] sm:$0xff]
        %v323 = vld [vmem:[#allocation2 + $0xc8] sm:$0xff]
        %v324 = vld [vmem:[#allocation2 + $0xd0] sm:$0xff]
        %v325 = vld [vmem:[#allocation2 + $0xd8] sm:$0xff]
        %v326 = vld [vmem:[#allocation2 + $0xe0] sm:$0xff]
        %v327 = vld [vmem:[#allocation2 + $0xe8] sm:$0xff]
        %v328 = vld [vmem:[#allocation2 + $0xf0] sm:$0xff]
        %v329 = vld [vmem:[#allocation2 + $0xf8] sm:$0xff]
        %v330 = vld [vmem:[%s1] sm:$0xff]
        %v331 = vld [vmem:[%s1 + $0x8] sm:$0xff]
        %v332 = vld [vmem:[%s1 + $0x10] sm:$0xff]
        %v333 = vld [vmem:[%s1 + $0x18] sm:$0xff]
        %v334 = vld [vmem:[%s1 + $0x20] sm:$0xff]
        %v335 = vld [vmem:[%s1 + $0x28] sm:$0xff]
        %v336 = vld [vmem:[%s1 + $0x30] sm:$0xff]
        %v337 = vld [vmem:[%s1 + $0x38] sm:$0xff]
        %v338 = vld [vmem:[%s1 + $0x40] sm:$0xff]
        %v339 = vld [vmem:[%s1 + $0x48] sm:$0xff]
        %v340 = vld [vmem:[%s1 + $0x50] sm:$0xff]
        %v341 = vld [vmem:[%s1 + $0x58] sm:$0xff]
        %v342 = vld [vmem:[%s1 + $0x60] sm:$0xff]
        %v343 = vld [vmem:[%s1 + $0x68] sm:$0xff]
        %v344 = vld [vmem:[%s1 + $0x70] sm:$0xff]
        %v345 = vld [vmem:[%s1 + $0x78] sm:$0xff]
        %346 = vmatprep.subr.mxu0 0.0
        %347 = vmatpush1.msra.mxu0 %v330
        %348 = vmatprep.subr.mxu0 0.0
        %349 = vmatpush1.msra.mxu0 %v331
        %350 = vmatprep.subr.mxu0 0.0
        %351 = vmatpush1.msra.mxu0 %v332
        %352 = vmatprep.subr.mxu0 0.0
        %353 = vmatpush1.msra.mxu0 %v333
        %354 = vmatprep.subr.mxu0 0.0
        %355 = vmatpush1.msra.mxu0 %v334
        %356 = vmatprep.subr.mxu0 0.0
        %357 = vmatpush1.msra.mxu0 %v335
        %358 = vmatprep.subr.mxu0 0.0
        %359 = vmatpush1.msra.mxu0 %v336
        %360 = vmatprep.subr.mxu0 0.0
        %361 = vmatpush1.msra.mxu0 %v337
        %362 = vmatprep.subr.mxu0 0.0
        %363 = vmatpush1.msra.mxu0 %v338
        %364 = vmatprep.subr.mxu0 0.0
        %365 = vmatpush1.msra.mxu0 %v339
        %366 = vmatprep.subr.mxu0 0.0
        %367 = vmatpush1.msra.mxu0 %v340
        %368 = vmatprep.subr.mxu0 0.0
        %369 = vmatpush1.msra.mxu0 %v341
        %370 = vmatprep.subr.mxu0 0.0
        %371 = vmatpush1.msra.mxu0 %v342
        %372 = vmatprep.subr.mxu0 0.0
        %373 = vmatpush1.msra.mxu0 %v343
        %374 = vmatprep.subr.mxu0 0.0
        %375 = vmatpush1.msra.mxu0 %v344
        %376 = vmatprep.subr.mxu0 0.0
        %377 = vmatpush1.msra.mxu0 %v345
        %378 = vmatprep.subr.mxu0 0.0
        %379 = vmatpush1.msra.mxu0 0.0
        %380 = vmatprep.subr.mxu0 0.0
        %381 = vmatpush1.msra.mxu0 0.0
        %382 = vmatprep.subr.mxu0 0.0
        %383 = vmatpush1.msra.mxu0 0.0
        %384 = vmatprep.subr.mxu0 0.0
        %385 = vmatpush1.msra.mxu0 0.0
        %386 = vmatprep.subr.mxu0 0.0
        %387 = vmatpush1.msra.mxu0 0.0
        %388 = vmatprep.subr.mxu0 0.0
        %389 = vmatpush1.msra.mxu0 0.0
        %390 = vmatprep.subr.mxu0 0.0
        %391 = vmatpush1.msra.mxu0 0.0
        %392 = vmatprep.subr.mxu0 0.0
        %393 = vmatpush1.msra.mxu0 0.0
        %394 = vmatprep.subr.mxu0 0.0
        %395 = vmatpush1.msra.mxu0 0.0
        %396 = vmatprep.subr.mxu0 0.0
        %397 = vmatpush1.msra.mxu0 0.0
        %398 = vmatprep.subr.mxu0 0.0
        %399 = vmatpush1.msra.mxu0 0.0
        %400 = vmatprep.subr.mxu0 0.0
        %401 = vmatpush1.msra.mxu0 0.0
        %402 = vmatprep.subr.mxu0 0.0
        %403 = vmatpush1.msra.mxu0 0.0
        %404 = vmatprep.subr.mxu0 0.0
        %405 = vmatpush1.msra.mxu0 0.0
        %406 = vmatprep.subr.mxu0 0.0
        %407 = vmatpush1.msra.mxu0 0.0
        %408 = vmatprep.subr.mxu0 0.0
        %409 = vmatpush1.msra.mxu0 0.0
        %410 = vmatprep.mubr.f32.mxu0 0.0
        %411 = vmatmul.mubr.f32.gmra.mrb[0].mxu0 %v212
        %v412 = vpop.f32.mrb[0].mxu0
        %v413 = vadd.f32 0.0, %v412
        %v414 = vpop.f32.mrb[0].mxu0
        %415 = vmatprep.mubr.f32.mxu0 0.0
        %416 = vmatmul.mubr.f32.gmra.mrb[0].mxu0 %v213
        %v417 = vpop.f32.mrb[0].mxu0
        %v418 = vadd.f32 0.0, %v417
        %v419 = vpop.f32.mrb[0].mxu0
        %420 = vmatprep.mubr.f32.mxu0 0.0
        %421 = vmatmul.mubr.f32.gmra.mrb[0].mxu0 %v215
        %v422 = vpop.f32.mrb[0].mxu0
        %v423 = vadd.f32 0.0, %v422
        %v424 = vpop.f32.mrb[0].mxu0
        %425 = vmatprep.mubr.f32.mxu0 0.0
        %426 = vmatmul.mubr.f32.gmra.mrb[0].mxu0 %v216
        %v427 = vpop.f32.mrb[0].mxu0
        %v428 = vadd.f32 0.0, %v427
        %v429 = vpop.f32.mrb[0].mxu0
        %430 = vmatprep.mubr.f32.mxu0 0.0
        %431 = vmatmul.mubr.f32.gmra.mrb[0].mxu0 %v218
        %v432 = vpop.f32.mrb[0].mxu0
        %v433 = vadd.f32 0.0, %v432
        %v434 = vpop.f32.mrb[0].mxu0
        %435 = vmatprep.mubr.f32.mxu0 0.0
        %436 = vmatmul.mubr.f32.gmra.mrb[0].mxu0 %v219
        %v437 = vpop.f32.mrb[0].mxu0
        %v438 = vadd.f32 0.0, %v437
        %v439 = vpop.f32.mrb[0].mxu0
        %440 = vmatprep.mubr.f32.mxu0 0.0
        %441 = vmatmul.mubr.f32.gmra.mrb[0].mxu0 %v221
        %v442 = vpop.f32.mrb[0].mxu0
        %v443 = vadd.f32 0.0, %v442
        %v444 = vpop.f32.mrb[0].mxu0
        %445 = vmatprep.mubr.f32.mxu0 0.0
        %446 = vmatmul.mubr.f32.gmra.mrb[0].mxu0 %v222
        %v447 = vpop.f32.mrb[0].mxu0
        %v448 = vadd.f32 0.0, %v447
        %v449 = vpop.f32.mrb[0].mxu0
        %450 = vmatprep.mubr.f32.mxu0 0.0
        %451 = vmatmul.mubr.f32.gmra.mrb[0].mxu0 %v224
        %v452 = vpop.f32.mrb[0].mxu0
        %v453 = vadd.f32 0.0, %v452
        %v454 = vpop.f32.mrb[0].mxu0
        %455 = vmatprep.mubr.f32.mxu0 0.0
        %456 = vmatmul.mubr.f32.gmra.mrb[0].mxu0 %v225
        %v457 = vpop.f32.mrb[0].mxu0
        %v458 = vadd.f32 0.0, %v457
        %v459 = vpop.f32.mrb[0].mxu0
        %460 = vmatprep.mubr.f32.mxu0 0.0
        %461 = vmatmul.mubr.f32.gmra.mrb[0].mxu0 %v227
        %v462 = vpop.f32.mrb[0].mxu0
        %v463 = vadd.f32 0.0, %v462
        %v464 = vpop.f32.mrb[0].mxu0
        %465 = vmatprep.mubr.f32.mxu0 0.0
        %466 = vmatmul.mubr.f32.gmra.mrb[0].mxu0 %v228
        %v467 = vpop.f32.mrb[0].mxu0
        %v468 = vadd.f32 0.0, %v467
        %v469 = vpop.f32.mrb[0].mxu0
        %470 = vmatprep.mubr.f32.mxu0 0.0
        %471 = vmatmul.mubr.f32.gmra.mrb[0].mxu0 %v230
        %v472 = vpop.f32.mrb[0].mxu0
        %v473 = vadd.f32 0.0, %v472
        %v474 = vpop.f32.mrb[0].mxu0
        %475 = vmatprep.mubr.f32.mxu0 0.0
        %476 = vmatmul.mubr.f32.gmra.mrb[0].mxu0 %v231
        %v477 = vpop.f32.mrb[0].mxu0
        %v478 = vadd.f32 0.0, %v477
        %v479 = vpop.f32.mrb[0].mxu0
        %480 = vmatprep.mubr.f32.mxu0 0.0
        %481 = vmatmul.mubr.f32.gmra.mrb[0].mxu0 %v233
        %v482 = vpop.f32.mrb[0].mxu0
        %v483 = vadd.f32 0.0, %v482
        %v484 = vpop.f32.mrb[0].mxu0
        %485 = vmatprep.mubr.f32.mxu0 0.0
        %486 = vmatmul.mubr.f32.gmra.mrb[0].mxu0 %v234
        %v487 = vpop.f32.mrb[0].mxu0
        %v488 = vadd.f32 0.0, %v487
        %v489 = vpop.f32.mrb[0].mxu0
        %490 = vmatprep.mubr.f32.mxu0 0.0
        %491 = vmatmul.mubr.f32.gmra.mrb[0].mxu0 %v236
        %v492 = vpop.f32.mrb[0].mxu0
        %v493 = vadd.f32 0.0, %v492
        %v494 = vpop.f32.mrb[0].mxu0
        %495 = vmatprep.mubr.f32.mxu0 0.0
        %496 = vmatmul.mubr.f32.gmra.mrb[0].mxu0 %v237
        %v497 = vpop.f32.mrb[0].mxu0
        %v498 = vadd.f32 0.0, %v497
        %v499 = vpop.f32.mrb[0].mxu0
        %500 = vmatprep.mubr.f32.mxu0 0.0
        %501 = vmatmul.mubr.f32.gmra.mrb[0].mxu0 %v239
        %v502 = vpop.f32.mrb[0].mxu0
        %v503 = vadd.f32 0.0, %v502
        %v504 = vpop.f32.mrb[0].mxu0
        %505 = vmatprep.mubr.f32.mxu0 0.0
        %506 = vmatmul.mubr.f32.gmra.mrb[0].mxu0 %v240
        %v507 = vpop.f32.mrb[0].mxu0
        %v508 = vadd.f32 0.0, %v507
        %v509 = vpop.f32.mrb[0].mxu0
        %510 = vmatprep.mubr.f32.mxu0 0.0
        %511 = vmatmul.mubr.f32.gmra.mrb[0].mxu0 %v242
        %v512 = vpop.f32.mrb[0].mxu0
        %v513 = vadd.f32 0.0, %v512
        %v514 = vpop.f32.mrb[0].mxu0
        %515 = vmatprep.mubr.f32.mxu0 0.0
        %516 = vmatmul.mubr.f32.gmra.mrb[0].mxu0 %v243
        %v517 = vpop.f32.mrb[0].mxu0
        %v518 = vadd.f32 0.0, %v517
        %v519 = vpop.f32.mrb[0].mxu0
        %520 = vmatprep.mubr.f32.mxu0 0.0
        %521 = vmatmul.mubr.f32.gmra.mrb[0].mxu0 %v245
        %v522 = vpop.f32.mrb[0].mxu0
        %v523 = vadd.f32 0.0, %v522
        %v524 = vpop.f32.mrb[0].mxu0
        %525 = vmatprep.mubr.f32.mxu0 0.0
        %526 = vmatmul.mubr.f32.gmra.mrb[0].mxu0 %v246
        %v527 = vpop.f32.mrb[0].mxu0
        %v528 = vadd.f32 0.0, %v527
        %v529 = vpop.f32.mrb[0].mxu0
        %530 = vmatprep.mubr.f32.mxu0 0.0
        %531 = vmatmul.mubr.f32.gmra.mrb[0].mxu0 %v248
        %v532 = vpop.f32.mrb[0].mxu0
        %v533 = vadd.f32 0.0, %v532
        %v534 = vpop.f32.mrb[0].mxu0
        %535 = vmatprep.mubr.f32.mxu0 0.0
        %536 = vmatmul.mubr.f32.gmra.mrb[0].mxu0 %v249
        %v537 = vpop.f32.mrb[0].mxu0
        %v538 = vadd.f32 0.0, %v537
        %v539 = vpop.f32.mrb[0].mxu0
        %540 = vmatprep.mubr.f32.mxu0 0.0
        %541 = vmatmul.mubr.f32.gmra.mrb[0].mxu0 %v251
        %v542 = vpop.f32.mrb[0].mxu0
        %v543 = vadd.f32 0.0, %v542
        %v544 = vpop.f32.mrb[0].mxu0
        %545 = vmatprep.mubr.f32.mxu0 0.0
        %546 = vmatmul.mubr.f32.gmra.mrb[0].mxu0 %v252
        %v547 = vpop.f32.mrb[0].mxu0
        %v548 = vadd.f32 0.0, %v547
        %v549 = vpop.f32.mrb[0].mxu0
        %550 = vmatprep.mubr.f32.mxu0 0.0
        %551 = vmatmul.mubr.f32.gmra.mrb[0].mxu0 %v254
        %v552 = vpop.f32.mrb[0].mxu0
        %v553 = vadd.f32 0.0, %v552
        %v554 = vpop.f32.mrb[0].mxu0
        %555 = vmatprep.mubr.f32.mxu0 0.0
        %556 = vmatmul.mubr.f32.gmra.mrb[0].mxu0 %v255
        %v557 = vpop.f32.mrb[0].mxu0
        %v558 = vadd.f32 0.0, %v557
        %v559 = vpop.f32.mrb[0].mxu0
        %560 = vmatprep.mubr.f32.mxu0 0.0
        %561 = vmatmul.mubr.f32.gmra.mrb[0].mxu0 %v257
        %v562 = vpop.f32.mrb[0].mxu0
        %v563 = vadd.f32 0.0, %v562
        %v564 = vpop.f32.mrb[0].mxu0
        %565 = vmatprep.mubr.f32.mxu0 0.0
        %566 = vmatmul.mubr.f32.gmra.mrb[0].mxu0 %v258
        %v567 = vpop.f32.mrb[0].mxu0
        %v568 = vadd.f32 0.0, %v567
        %v569 = vpop.f32.mrb[0].mxu0
        %570 = vdwg.mxu0
        %v571 = vadd.f32 %v298, %v413
        %v572 = vadd.f32 %v299, %v418
        %v573 = vadd.f32 %v300, %v423
        %v574 = vadd.f32 %v301, %v428
        %v575 = vadd.f32 %v302, %v433
        %v576 = vadd.f32 %v303, %v438
        %v577 = vadd.f32 %v304, %v443
        %v578 = vadd.f32 %v305, %v448
        %v579 = vadd.f32 %v306, %v453
        %v580 = vadd.f32 %v307, %v458
        %v581 = vadd.f32 %v308, %v463
        %v582 = vadd.f32 %v309, %v468
        %v583 = vadd.f32 %v310, %v473
        %v584 = vadd.f32 %v311, %v478
        %v585 = vadd.f32 %v312, %v483
        %v586 = vadd.f32 %v313, %v488
        %v587 = vadd.f32 %v314, %v493
        %v588 = vadd.f32 %v315, %v498
        %v589 = vadd.f32 %v316, %v503
        %v590 = vadd.f32 %v317, %v508
        %v591 = vadd.f32 %v318, %v513
        %v592 = vadd.f32 %v319, %v518
        %v593 = vadd.f32 %v320, %v523
        %v594 = vadd.f32 %v321, %v528
        %v595 = vadd.f32 %v322, %v533
        %v596 = vadd.f32 %v323, %v538
        %v597 = vadd.f32 %v324, %v543
        %v598 = vadd.f32 %v325, %v548
        %v599 = vadd.f32 %v326, %v553
        %v600 = vadd.f32 %v327, %v558
        %v601 = vadd.f32 %v328, %v563
        %v602 = vadd.f32 %v329, %v568
        %603 = vst [vmem:[#allocation2] sm:$0xff] %v571
        %604 = vst [vmem:[#allocation2 + $0x8] sm:$0xff] %v572
        %605 = vst [vmem:[#allocation2 + $0x10] sm:$0xff] %v573
        %606 = vst [vmem:[#allocation2 + $0x18] sm:$0xff] %v574
        %607 = vst [vmem:[#allocation2 + $0x20] sm:$0xff] %v575
        %608 = vst [vmem:[#allocation2 + $0x28] sm:$0xff] %v576
        %609 = vst [vmem:[#allocation2 + $0x30] sm:$0xff] %v577
        %610 = vst [vmem:[#allocation2 + $0x38] sm:$0xff] %v578
        %611 = vst [vmem:[#allocation2 + $0x40] sm:$0xff] %v579
        %612 = vst [vmem:[#allocation2 + $0x48] sm:$0xff] %v580
        %613 = vst [vmem:[#allocation2 + $0x50] sm:$0xff] %v581
        %614 = vst [vmem:[#allocation2 + $0x58] sm:$0xff] %v582
        %615 = vst [vmem:[#allocation2 + $0x60] sm:$0xff] %v583
        %616 = vst [vmem:[#allocation2 + $0x68] sm:$0xff] %v584
        %617 = vst [vmem:[#allocation2 + $0x70] sm:$0xff] %v585
        %618 = vst [vmem:[#allocation2 + $0x78] sm:$0xff] %v586
        %619 = vst [vmem:[#allocation2 + $0x80] sm:$0xff] %v587
        %620 = vst [vmem:[#allocation2 + $0x88] sm:$0xff] %v588
        %621 = vst [vmem:[#allocation2 + $0x90] sm:$0xff] %v589
        %622 = vst [vmem:[#allocation2 + $0x98] sm:$0xff] %v590
        %623 = vst [vmem:[#allocation2 + $0xa0] sm:$0xff] %v591
        %624 = vst [vmem:[#allocation2 + $0xa8] sm:$0xff] %v592
        %625 = vst [vmem:[#allocation2 + $0xb0] sm:$0xff] %v593
        %626 = vst [vmem:[#allocation2 + $0xb8] sm:$0xff] %v594
        %627 = vst [vmem:[#allocation2 + $0xc0] sm:$0xff] %v595
        %628 = vst [vmem:[#allocation2 + $0xc8] sm:$0xff] %v596
        %629 = vst [vmem:[#allocation2 + $0xd0] sm:$0xff] %v597
        %630 = vst [vmem:[#allocation2 + $0xd8] sm:$0xff] %v598
        %631 = vst [vmem:[#allocation2 + $0xe0] sm:$0xff] %v599
        %632 = vst [vmem:[#allocation2 + $0xe8] sm:$0xff] %v600
        %633 = vst [vmem:[#allocation2 + $0xf0] sm:$0xff] %v601
        %634 = vst [vmem:[#allocation2 + $0xf8] sm:$0xff] %v602
        %vm683 = vcmask 1046528
        %v684 = vrot.slane %v212, 1
        %v685 = vrot.slane %v213, 1
        %v686 = vsel %vm683, %v684, %v685
        %v687 = vrot.slane %v214, 1
        %v688 = vsel %vm683, %v685, %v687
        %v689 = vrot.slane %v215, 1
        %v690 = vrot.slane %v216, 1
        %v691 = vsel %vm683, %v689, %v690
        %v692 = vrot.slane %v217, 1
        %v693 = vsel %vm683, %v690, %v692
        %v694 = vrot.slane %v218, 1
        %v695 = vrot.slane %v219, 1
        %v696 = vsel %vm683, %v694, %v695
        %v697 = vrot.slane %v220, 1
        %v698 = vsel %vm683, %v695, %v697
        %v699 = vrot.slane %v221, 1
        %v700 = vrot.slane %v222, 1
        %v701 = vsel %vm683, %v699, %v700
        %v702 = vrot.slane %v223, 1
        %v703 = vsel %vm683, %v700, %v702
        %v704 = vrot.slane %v224, 1
        %v705 = vrot.slane %v225, 1
        %v706 = vsel %vm683, %v704, %v705
        %v707 = vrot.slane %v226, 1
        %v708 = vsel %vm683, %v705, %v707
        %v709 = vrot.slane %v227, 1
        %v710 = vrot.slane %v228, 1
        %v711 = vsel %vm683, %v709, %v710
        %v712 = vrot.slane %v229, 1
        %v713 = vsel %vm683, %v710, %v712
        %v714 = vrot.slane %v230, 1
        %v715 = vrot.slane %v231, 1
        %v716 = vsel %vm683, %v714, %v715
        %v717 = vrot.slane %v232, 1
        %v718 = vsel %vm683, %v715, %v717
        %v719 = vrot.slane %v233, 1
        %v720 = vrot.slane %v234, 1
        %v721 = vsel %vm683, %v719, %v720
        %v722 = vrot.slane %v235, 1
        %v723 = vsel %vm683, %v720, %v722
        %v724 = vrot.slane %v236, 1
        %v725 = vrot.slane %v237, 1
        %v726 = vsel %vm683, %v724, %v725
        %v727 = vrot.slane %v238, 1
        %v728 = vsel %vm683, %v725, %v727
        %v729 = vrot.slane %v239, 1
        %v730 = vrot.slane %v240, 1
        %v731 = vsel %vm683, %v729, %v730
        %v732 = vrot.slane %v241, 1
        %v733 = vsel %vm683, %v730, %v732
        %v734 = vrot.slane %v242, 1
        %v735 = vrot.slane %v243, 1
        %v736 = vsel %vm683, %v734, %v735
        %v737 = vrot.slane %v244, 1
        %v738 = vsel %vm683, %v735, %v737
        %v739 = vrot.slane %v245, 1
        %v740 = vrot.slane %v246, 1
        %v741 = vsel %vm683, %v739, %v740
        %v742 = vrot.slane %v247, 1
        %v743 = vsel %vm683, %v740, %v742
        %v744 = vrot.slane %v248, 1
        %v745 = vrot.slane %v249, 1
        %v746 = vsel %vm683, %v744, %v745
        %v747 = vrot.slane %v250, 1
        %v748 = vsel %vm683, %v745, %v747
        %v749 = vrot.slane %v251, 1
        %v750 = vrot.slane %v252, 1
        %v751 = vsel %vm683, %v749, %v750
        %v752 = vrot.slane %v253, 1
        %v753 = vsel %vm683, %v750, %v752
        %v754 = vrot.slane %v254, 1
        %v755 = vrot.slane %v255, 1
        %v756 = vsel %vm683, %v754, %v755
        %v757 = vrot.slane %v256, 1
        %v758 = vsel %vm683, %v755, %v757
        %v759 = vrot.slane %v257, 1
        %v760 = vrot.slane %v258, 1
        %v761 = vsel %vm683, %v759, %v760
        %v762 = vrot.slane %v259, 1
        %v763 = vsel %vm683, %v760, %v762
        %v796 = vld [vmem:[#allocation2] sm:$0xff]
        %v797 = vld [vmem:[#allocation2 + $0x8] sm:$0xff]
        %v798 = vld [vmem:[#allocation2 + $0x10] sm:$0xff]
        %v799 = vld [vmem:[#allocation2 + $0x18] sm:$0xff]
        %v800 = vld [vmem:[#allocation2 + $0x20] sm:$0xff]
        %v801 = vld [vmem:[#allocation2 + $0x28] sm:$0xff]
        %v802 = vld [vmem:[#allocation2 + $0x30] sm:$0xff]
        %v803 = vld [vmem:[#allocation2 + $0x38] sm:$0xff]
        %v804 = vld [vmem:[#allocation2 + $0x40] sm:$0xff]
        %v805 = vld [vmem:[#allocation2 + $0x48] sm:$0xff]
        %v806 = vld [vmem:[#allocation2 + $0x50] sm:$0xff]
        %v807 = vld [vmem:[#allocation2 + $0x58] sm:$0xff]
        %v808 = vld [vmem:[#allocation2 + $0x60] sm:$0xff]
        %v809 = vld [vmem:[#allocation2 + $0x68] sm:$0xff]
        %v810 = vld [vmem:[#allocation2 + $0x70] sm:$0xff]
        %v811 = vld [vmem:[#allocation2 + $0x78] sm:$0xff]
        %v812 = vld [vmem:[#allocation2 + $0x80] sm:$0xff]
        %v813 = vld [vmem:[#allocation2 + $0x88] sm:$0xff]
        %v814 = vld [vmem:[#allocation2 + $0x90] sm:$0xff]
        %v815 = vld [vmem:[#allocation2 + $0x98] sm:$0xff]
        %v816 = vld [vmem:[#allocation2 + $0xa0] sm:$0xff]
        %v817 = vld [vmem:[#allocation2 + $0xa8] sm:$0xff]
        %v818 = vld [vmem:[#allocation2 + $0xb0] sm:$0xff]
        %v819 = vld [vmem:[#allocation2 + $0xb8] sm:$0xff]
        %v820 = vld [vmem:[#allocation2 + $0xc0] sm:$0xff]
        %v821 = vld [vmem:[#allocation2 + $0xc8] sm:$0xff]
        %v822 = vld [vmem:[#allocation2 + $0xd0] sm:$0xff]
        %v823 = vld [vmem:[#allocation2 + $0xd8] sm:$0xff]
        %v824 = vld [vmem:[#allocation2 + $0xe0] sm:$0xff]
        %v825 = vld [vmem:[#allocation2 + $0xe8] sm:$0xff]
        %v826 = vld [vmem:[#allocation2 + $0xf0] sm:$0xff]
        %v827 = vld [vmem:[#allocation2 + $0xf8] sm:$0xff]
        %s828 = scalar_lea.vmem %s1, 128
        %v829 = vld [vmem:[%s828] sm:$0xff]
        %v830 = vld [vmem:[%s828 + $0x8] sm:$0xff]
        %v831 = vld [vmem:[%s828 + $0x10] sm:$0xff]
        %v832 = vld [vmem:[%s828 + $0x18] sm:$0xff]
        %v833 = vld [vmem:[%s828 + $0x20] sm:$0xff]
        %v834 = vld [vmem:[%s828 + $0x28] sm:$0xff]
        %v835 = vld [vmem:[%s828 + $0x30] sm:$0xff]
        %v836 = vld [vmem:[%s828 + $0x38] sm:$0xff]
        %v837 = vld [vmem:[%s828 + $0x40] sm:$0xff]
        %v838 = vld [vmem:[%s828 + $0x48] sm:$0xff]
        %v839 = vld [vmem:[%s828 + $0x50] sm:$0xff]
        %v840 = vld [vmem:[%s828 + $0x58] sm:$0xff]
        %v841 = vld [vmem:[%s828 + $0x60] sm:$0xff]
        %v842 = vld [vmem:[%s828 + $0x68] sm:$0xff]
        %v843 = vld [vmem:[%s828 + $0x70] sm:$0xff]
        %v844 = vld [vmem:[%s828 + $0x78] sm:$0xff]
        %845 = vmatprep.subr.mxu0 0.0
        %846 = vmatpush1.msra.mxu0 %v829
        %847 = vmatprep.subr.mxu0 0.0
        %848 = vmatpush1.msra.mxu0 %v830
        %849 = vmatprep.subr.mxu0 0.0
        %850 = vmatpush1.msra.mxu0 %v831
        %851 = vmatprep.subr.mxu0 0.0
        %852 = vmatpush1.msra.mxu0 %v832
        %853 = vmatprep.subr.mxu0 0.0
        %854 = vmatpush1.msra.mxu0 %v833
        %855 = vmatprep.subr.mxu0 0.0
        %856 = vmatpush1.msra.mxu0 %v834
        %857 = vmatprep.subr.mxu0 0.0
        %858 = vmatpush1.msra.mxu0 %v835
        %859 = vmatprep.subr.mxu0 0.0
        %860 = vmatpush1.msra.mxu0 %v836
        %861 = vmatprep.subr.mxu0 0.0
        %862 = vmatpush1.msra.mxu0 %v837
        %863 = vmatprep.subr.mxu0 0.0
        %864 = vmatpush1.msra.mxu0 %v838
        %865 = vmatprep.subr.mxu0 0.0
        %866 = vmatpush1.msra.mxu0 %v839
        %867 = vmatprep.subr.mxu0 0.0
        %868 = vmatpush1.msra.mxu0 %v840
        %869 = vmatprep.subr.mxu0 0.0
        %870 = vmatpush1.msra.mxu0 %v841
        %871 = vmatprep.subr.mxu0 0.0
        %872 = vmatpush1.msra.mxu0 %v842
        %873 = vmatprep.subr.mxu0 0.0
        %874 = vmatpush1.msra.mxu0 %v843
        %875 = vmatprep.subr.mxu0 0.0
        %876 = vmatpush1.msra.mxu0 %v844
        %877 = vmatprep.subr.mxu0 0.0
        %878 = vmatpush1.msra.mxu0 0.0
        %879 = vmatprep.subr.mxu0 0.0
        %880 = vmatpush1.msra.mxu0 0.0
        %881 = vmatprep.subr.mxu0 0.0
        %882 = vmatpush1.msra.mxu0 0.0
        %883 = vmatprep.subr.mxu0 0.0
        %884 = vmatpush1.msra.mxu0 0.0
        %885 = vmatprep.subr.mxu0 0.0
        %886 = vmatpush1.msra.mxu0 0.0
        %887 = vmatprep.subr.mxu0 0.0
        %888 = vmatpush1.msra.mxu0 0.0
        %889 = vmatprep.subr.mxu0 0.0
        %890 = vmatpush1.msra.mxu0 0.0
        %891 = vmatprep.subr.mxu0 0.0
        %892 = vmatpush1.msra.mxu0 0.0
        %893 = vmatprep.subr.mxu0 0.0
        %894 = vmatpush1.msra.mxu0 0.0
        %895 = vmatprep.subr.mxu0 0.0
        %896 = vmatpush1.msra.mxu0 0.0
        %897 = vmatprep.subr.mxu0 0.0
        %898 = vmatpush1.msra.mxu0 0.0
        %899 = vmatprep.subr.mxu0 0.0
        %900 = vmatpush1.msra.mxu0 0.0
        %901 = vmatprep.subr.mxu0 0.0
        %902 = vmatpush1.msra.mxu0 0.0
        %903 = vmatprep.subr.mxu0 0.0
        %904 = vmatpush1.msra.mxu0 0.0
        %905 = vmatprep.subr.mxu0 0.0
        %906 = vmatpush1.msra.mxu0 0.0
        %907 = vmatprep.subr.mxu0 0.0
        %908 = vmatpush1.msra.mxu0 0.0
        %909 = vmatprep.mubr.f32.mxu0 0.0
        %910 = vmatmul.mubr.f32.gmra.mrb[0].mxu0 %v686
        %v911 = vpop.f32.mrb[0].mxu0
        %v912 = vadd.f32 0.0, %v911
        %v913 = vpop.f32.mrb[0].mxu0
        %914 = vmatprep.mubr.f32.mxu0 0.0
        %915 = vmatmul.mubr.f32.gmra.mrb[0].mxu0 %v688
        %v916 = vpop.f32.mrb[0].mxu0
        %v917 = vadd.f32 0.0, %v916
        %v918 = vpop.f32.mrb[0].mxu0
        %919 = vmatprep.mubr.f32.mxu0 0.0
        %920 = vmatmul.mubr.f32.gmra.mrb[0].mxu0 %v691
        %v921 = vpop.f32.mrb[0].mxu0
        %v922 = vadd.f32 0.0, %v921
        %v923 = vpop.f32.mrb[0].mxu0
        %924 = vmatprep.mubr.f32.mxu0 0.0
        %925 = vmatmul.mubr.f32.gmra.mrb[0].mxu0 %v693
        %v926 = vpop.f32.mrb[0].mxu0
        %v927 = vadd.f32 0.0, %v926
        %v928 = vpop.f32.mrb[0].mxu0
        %929 = vmatprep.mubr.f32.mxu0 0.0
        %930 = vmatmul.mubr.f32.gmra.mrb[0].mxu0 %v696
        %v931 = vpop.f32.mrb[0].mxu0
        %v932 = vadd.f32 0.0, %v931
        %v933 = vpop.f32.mrb[0].mxu0
        %934 = vmatprep.mubr.f32.mxu0 0.0
        %935 = vmatmul.mubr.f32.gmra.mrb[0].mxu0 %v698
        %v936 = vpop.f32.mrb[0].mxu0
        %v937 = vadd.f32 0.0, %v936
        %v938 = vpop.f32.mrb[0].mxu0
        %939 = vmatprep.mubr.f32.mxu0 0.0
        %940 = vmatmul.mubr.f32.gmra.mrb[0].mxu0 %v701
        %v941 = vpop.f32.mrb[0].mxu0
        %v942 = vadd.f32 0.0, %v941
        %v943 = vpop.f32.mrb[0].mxu0
        %944 = vmatprep.mubr.f32.mxu0 0.0
        %945 = vmatmul.mubr.f32.gmra.mrb[0].mxu0 %v703
        %v946 = vpop.f32.mrb[0].mxu0
        %v947 = vadd.f32 0.0, %v946
        %v948 = vpop.f32.mrb[0].mxu0
        %949 = vmatprep.mubr.f32.mxu0 0.0
        %950 = vmatmul.mubr.f32.gmra.mrb[0].mxu0 %v706
        %v951 = vpop.f32.mrb[0].mxu0
        %v952 = vadd.f32 0.0, %v951
        %v953 = vpop.f32.mrb[0].mxu0
        %954 = vmatprep.mubr.f32.mxu0 0.0
        %955 = vmatmul.mubr.f32.gmra.mrb[0].mxu0 %v708
        %v956 = vpop.f32.mrb[0].mxu0
        %v957 = vadd.f32 0.0, %v956
        %v958 = vpop.f32.mrb[0].mxu0
        %959 = vmatprep.mubr.f32.mxu0 0.0
        %960 = vmatmul.mubr.f32.gmra.mrb[0].mxu0 %v711
        %v961 = vpop.f32.mrb[0].mxu0
        %v962 = vadd.f32 0.0, %v961
        %v963 = vpop.f32.mrb[0].mxu0
        %964 = vmatprep.mubr.f32.mxu0 0.0
        %965 = vmatmul.mubr.f32.gmra.mrb[0].mxu0 %v713
        %v966 = vpop.f32.mrb[0].mxu0
        %v967 = vadd.f32 0.0, %v966
        %v968 = vpop.f32.mrb[0].mxu0
        %969 = vmatprep.mubr.f32.mxu0 0.0
        %970 = vmatmul.mubr.f32.gmra.mrb[0].mxu0 %v716
        %v971 = vpop.f32.mrb[0].mxu0
        %v972 = vadd.f32 0.0, %v971
        %v973 = vpop.f32.mrb[0].mxu0
        %974 = vmatprep.mubr.f32.mxu0 0.0
        %975 = vmatmul.mubr.f32.gmra.mrb[0].mxu0 %v718
        %v976 = vpop.f32.mrb[0].mxu0
        %v977 = vadd.f32 0.0, %v976
        %v978 = vpop.f32.mrb[0].mxu0
        %979 = vmatprep.mubr.f32.mxu0 0.0
        %980 = vmatmul.mubr.f32.gmra.mrb[0].mxu0 %v721
        %v981 = vpop.f32.mrb[0].mxu0
        %v982 = vadd.f32 0.0, %v981
        %v983 = vpop.f32.mrb[0].mxu0
        %984 = vmatprep.mubr.f32.mxu0 0.0
        %985 = vmatmul.mubr.f32.gmra.mrb[0].mxu0 %v723
        %v986 = vpop.f32.mrb[0].mxu0
        %v987 = vadd.f32 0.0, %v986
        %v988 = vpop.f32.mrb[0].mxu0
        %989 = vmatprep.mubr.f32.mxu0 0.0
        %990 = vmatmul.mubr.f32.gmra.mrb[0].mxu0 %v726
        %v991 = vpop.f32.mrb[0].mxu0
        %v992 = vadd.f32 0.0, %v991
        %v993 = vpop.f32.mrb[0].mxu0
        %994 = vmatprep.mubr.f32.mxu0 0.0
        %995 = vmatmul.mubr.f32.gmra.mrb[0].mxu0 %v728
        %v996 = vpop.f32.mrb[0].mxu0
        %v997 = vadd.f32 0.0, %v996
        %v998 = vpop.f32.mrb[0].mxu0
        %999 = vmatprep.mubr.f32.mxu0 0.0
        %1000 = vmatmul.mubr.f32.gmra.mrb[0].mxu0 %v731
        %v1001 = vpop.f32.mrb[0].mxu0
        %v1002 = vadd.f32 0.0, %v1001
        %v1003 = vpop.f32.mrb[0].mxu0
        %1004 = vmatprep.mubr.f32.mxu0 0.0
        %1005 = vmatmul.mubr.f32.gmra.mrb[0].mxu0 %v733
        %v1006 = vpop.f32.mrb[0].mxu0
        %v1007 = vadd.f32 0.0, %v1006
        %v1008 = vpop.f32.mrb[0].mxu0
        %1009 = vmatprep.mubr.f32.mxu0 0.0
        %1010 = vmatmul.mubr.f32.gmra.mrb[0].mxu0 %v736
        %v1011 = vpop.f32.mrb[0].mxu0
        %v1012 = vadd.f32 0.0, %v1011
        %v1013 = vpop.f32.mrb[0].mxu0
        %1014 = vmatprep.mubr.f32.mxu0 0.0
        %1015 = vmatmul.mubr.f32.gmra.mrb[0].mxu0 %v738
        %v1016 = vpop.f32.mrb[0].mxu0
        %v1017 = vadd.f32 0.0, %v1016
        %v1018 = vpop.f32.mrb[0].mxu0
        %1019 = vmatprep.mubr.f32.mxu0 0.0
        %1020 = vmatmul.mubr.f32.gmra.mrb[0].mxu0 %v741
        %v1021 = vpop.f32.mrb[0].mxu0
        %v1022 = vadd.f32 0.0, %v1021
        %v1023 = vpop.f32.mrb[0].mxu0
        %1024 = vmatprep.mubr.f32.mxu0 0.0
        %1025 = vmatmul.mubr.f32.gmra.mrb[0].mxu0 %v743
        %v1026 = vpop.f32.mrb[0].mxu0
        %v1027 = vadd.f32 0.0, %v1026
        %v1028 = vpop.f32.mrb[0].mxu0
        %1029 = vmatprep.mubr.f32.mxu0 0.0
        %1030 = vmatmul.mubr.f32.gmra.mrb[0].mxu0 %v746
        %v1031 = vpop.f32.mrb[0].mxu0
        %v1032 = vadd.f32 0.0, %v1031
        %v1033 = vpop.f32.mrb[0].mxu0
        %1034 = vmatprep.mubr.f32.mxu0 0.0
        %1035 = vmatmul.mubr.f32.gmra.mrb[0].mxu0 %v748
        %v1036 = vpop.f32.mrb[0].mxu0
        %v1037 = vadd.f32 0.0, %v1036
        %v1038 = vpop.f32.mrb[0].mxu0
        %1039 = vmatprep.mubr.f32.mxu0 0.0
        %1040 = vmatmul.mubr.f32.gmra.mrb[0].mxu0 %v751
        %v1041 = vpop.f32.mrb[0].mxu0
        %v1042 = vadd.f32 0.0, %v1041
        %v1043 = vpop.f32.mrb[0].mxu0
        %1044 = vmatprep.mubr.f32.mxu0 0.0
        %1045 = vmatmul.mubr.f32.gmra.mrb[0].mxu0 %v753
        %v1046 = vpop.f32.mrb[0].mxu0
        %v1047 = vadd.f32 0.0, %v1046
        %v1048 = vpop.f32.mrb[0].mxu0
        %1049 = vmatprep.mubr.f32.mxu0 0.0
        %1050 = vmatmul.mubr.f32.gmra.mrb[0].mxu0 %v756
        %v1051 = vpop.f32.mrb[0].mxu0
        %v1052 = vadd.f32 0.0, %v1051
        %v1053 = vpop.f32.mrb[0].mxu0
        %1054 = vmatprep.mubr.f32.mxu0 0.0
        %1055 = vmatmul.mubr.f32.gmra.mrb[0].mxu0 %v758
        %v1056 = vpop.f32.mrb[0].mxu0
        %v1057 = vadd.f32 0.0, %v1056
        %v1058 = vpop.f32.mrb[0].mxu0
        %1059 = vmatprep.mubr.f32.mxu0 0.0
        %1060 = vmatmul.mubr.f32.gmra.mrb[0].mxu0 %v761
        %v1061 = vpop.f32.mrb[0].mxu0
        %v1062 = vadd.f32 0.0, %v1061
        %v1063 = vpop.f32.mrb[0].mxu0
        %1064 = vmatprep.mubr.f32.mxu0 0.0
        %1065 = vmatmul.mubr.f32.gmra.mrb[0].mxu0 %v763
        %v1066 = vpop.f32.mrb[0].mxu0
        %v1067 = vadd.f32 0.0, %v1066
        %v1068 = vpop.f32.mrb[0].mxu0
        %1069 = vdwg.mxu0
        %v1070 = vadd.f32 %v796, %v912
        %v1071 = vadd.f32 %v797, %v917
        %v1072 = vadd.f32 %v798, %v922
        %v1073 = vadd.f32 %v799, %v927
        %v1074 = vadd.f32 %v800, %v932
        %v1075 = vadd.f32 %v801, %v937
        %v1076 = vadd.f32 %v802, %v942
        %v1077 = vadd.f32 %v803, %v947
        %v1078 = vadd.f32 %v804, %v952
        %v1079 = vadd.f32 %v805, %v957
        %v1080 = vadd.f32 %v806, %v962
        %v1081 = vadd.f32 %v807, %v967
        %v1082 = vadd.f32 %v808, %v972
        %v1083 = vadd.f32 %v809, %v977
        %v1084 = vadd.f32 %v810, %v982
        %v1085 = vadd.f32 %v811, %v987
        %v1086 = vadd.f32 %v812, %v992
        %v1087 = vadd.f32 %v813, %v997
        %v1088 = vadd.f32 %v814, %v1002
        %v1089 = vadd.f32 %v815, %v1007
        %v1090 = vadd.f32 %v816, %v1012
        %v1091 = vadd.f32 %v817, %v1017
        %v1092 = vadd.f32 %v818, %v1022
        %v1093 = vadd.f32 %v819, %v1027
        %v1094 = vadd.f32 %v820, %v1032
        %v1095 = vadd.f32 %v821, %v1037
        %v1096 = vadd.f32 %v822, %v1042
        %v1097 = vadd.f32 %v823, %v1047
        %v1098 = vadd.f32 %v824, %v1052
        %v1099 = vadd.f32 %v825, %v1057
        %v1100 = vadd.f32 %v826, %v1062
        %v1101 = vadd.f32 %v827, %v1067
        %1102 = vst [vmem:[#allocation2] sm:$0xff] %v1070
        %1103 = vst [vmem:[#allocation2 + $0x8] sm:$0xff] %v1071
        %1104 = vst [vmem:[#allocation2 + $0x10] sm:$0xff] %v1072
        %1105 = vst [vmem:[#allocation2 + $0x18] sm:$0xff] %v1073
        %1106 = vst [vmem:[#allocation2 + $0x20] sm:$0xff] %v1074
        %1107 = vst [vmem:[#allocation2 + $0x28] sm:$0xff] %v1075
        %1108 = vst [vmem:[#allocation2 + $0x30] sm:$0xff] %v1076
        %1109 = vst [vmem:[#allocation2 + $0x38] sm:$0xff] %v1077
        %1110 = vst [vmem:[#allocation2 + $0x40] sm:$0xff] %v1078
        %1111 = vst [vmem:[#allocation2 + $0x48] sm:$0xff] %v1079
        %1112 = vst [vmem:[#allocation2 + $0x50] sm:$0xff] %v1080
        %1113 = vst [vmem:[#allocation2 + $0x58] sm:$0xff] %v1081
        %1114 = vst [vmem:[#allocation2 + $0x60] sm:$0xff] %v1082
        %1115 = vst [vmem:[#allocation2 + $0x68] sm:$0xff] %v1083
        %1116 = vst [vmem:[#allocation2 + $0x70] sm:$0xff] %v1084
        %1117 = vst [vmem:[#allocation2 + $0x78] sm:$0xff] %v1085
        %1118 = vst [vmem:[#allocation2 + $0x80] sm:$0xff] %v1086
        %1119 = vst [vmem:[#allocation2 + $0x88] sm:$0xff] %v1087
        %1120 = vst [vmem:[#allocation2 + $0x90] sm:$0xff] %v1088
        %1121 = vst [vmem:[#allocation2 + $0x98] sm:$0xff] %v1089
        %1122 = vst [vmem:[#allocation2 + $0xa0] sm:$0xff] %v1090
        %1123 = vst [vmem:[#allocation2 + $0xa8] sm:$0xff] %v1091
        %1124 = vst [vmem:[#allocation2 + $0xb0] sm:$0xff] %v1092
        %1125 = vst [vmem:[#allocation2 + $0xb8] sm:$0xff] %v1093
        %1126 = vst [vmem:[#allocation2 + $0xc0] sm:$0xff] %v1094
        %1127 = vst [vmem:[#allocation2 + $0xc8] sm:$0xff] %v1095
        %1128 = vst [vmem:[#allocation2 + $0xd0] sm:$0xff] %v1096
        %1129 = vst [vmem:[#allocation2 + $0xd8] sm:$0xff] %v1097
        %1130 = vst [vmem:[#allocation2 + $0xe0] sm:$0xff] %v1098
        %1131 = vst [vmem:[#allocation2 + $0xe8] sm:$0xff] %v1099
        %1132 = vst [vmem:[#allocation2 + $0xf0] sm:$0xff] %v1100
        %1133 = vst [vmem:[#allocation2 + $0xf8] sm:$0xff] %v1101
        %vm1134 = vcmask 1045504
        %v1135 = vrot.slane %v212, 2
        %v1136 = vrot.slane %v213, 2
        %v1137 = vsel %vm1134, %v1135, %v1136
        %v1138 = vrot.slane %v214, 2
        %v1139 = vsel %vm1134, %v1136, %v1138
        %v1140 = vrot.slane %v215, 2
        %v1141 = vrot.slane %v216, 2
        %v1142 = vsel %vm1134, %v1140, %v1141
        %v1143 = vrot.slane %v217, 2
        %v1144 = vsel %vm1134, %v1141, %v1143
        %v1145 = vrot.slane %v218, 2
        %v1146 = vrot.slane %v219, 2
        %v1147 = vsel %vm1134, %v1145, %v1146
        %v1148 = vrot.slane %v220, 2
        %v1149 = vsel %vm1134, %v1146, %v1148
        %v1150 = vrot.slane %v221, 2
        %v1151 = vrot.slane %v222, 2
        %v1152 = vsel %vm1134, %v1150, %v1151
        %v1153 = vrot.slane %v223, 2
        %v1154 = vsel %vm1134, %v1151, %v1153
        %v1155 = vrot.slane %v224, 2
        %v1156 = vrot.slane %v225, 2
        %v1157 = vsel %vm1134, %v1155, %v1156
        %v1158 = vrot.slane %v226, 2
        %v1159 = vsel %vm1134, %v1156, %v1158
        %v1160 = vrot.slane %v227, 2
        %v1161 = vrot.slane %v228, 2
        %v1162 = vsel %vm1134, %v1160, %v1161
        %v1163 = vrot.slane %v229, 2
        %v1164 = vsel %vm1134, %v1161, %v1163
        %v1165 = vrot.slane %v230, 2
        %v1166 = vrot.slane %v231, 2
        %v1167 = vsel %vm1134, %v1165, %v1166
        %v1168 = vrot.slane %v232, 2
        %v1169 = vsel %vm1134, %v1166, %v1168
        %v1170 = vrot.slane %v233, 2
        %v1171 = vrot.slane %v234, 2
        %v1172 = vsel %vm1134, %v1170, %v1171
        %v1173 = vrot.slane %v235, 2
        %v1174 = vsel %vm1134, %v1171, %v1173
        %v1175 = vrot.slane %v236, 2
        %v1176 = vrot.slane %v237, 2
        %v1177 = vsel %vm1134, %v1175, %v1176
        %v1178 = vrot.slane %v238, 2
        %v1179 = vsel %vm1134, %v1176, %v1178
        %v1180 = vrot.slane %v239, 2
        %v1181 = vrot.slane %v240, 2
        %v1182 = vsel %vm1134, %v1180, %v1181
        %v1183 = vrot.slane %v241, 2
        %v1184 = vsel %vm1134, %v1181, %v1183
        %v1185 = vrot.slane %v242, 2
        %v1186 = vrot.slane %v243, 2
        %v1187 = vsel %vm1134, %v1185, %v1186
        %v1188 = vrot.slane %v244, 2
        %v1189 = vsel %vm1134, %v1186, %v1188
        %v1190 = vrot.slane %v245, 2
        %v1191 = vrot.slane %v246, 2
        %v1192 = vsel %vm1134, %v1190, %v1191
        %v1193 = vrot.slane %v247, 2
        %v1194 = vsel %vm1134, %v1191, %v1193
        %v1195 = vrot.slane %v248, 2
        %v1196 = vrot.slane %v249, 2
        %v1197 = vsel %vm1134, %v1195, %v1196
        %v1198 = vrot.slane %v250, 2
        %v1199 = vsel %vm1134, %v1196, %v1198
        %v1200 = vrot.slane %v251, 2
        %v1201 = vrot.slane %v252, 2
        %v1202 = vsel %vm1134, %v1200, %v1201
        %v1203 = vrot.slane %v253, 2
        %v1204 = vsel %vm1134, %v1201, %v1203
        %v1205 = vrot.slane %v254, 2
        %v1206 = vrot.slane %v255, 2
        %v1207 = vsel %vm1134, %v1205, %v1206
        %v1208 = vrot.slane %v256, 2
        %v1209 = vsel %vm1134, %v1206, %v1208
        %v1210 = vrot.slane %v257, 2
        %v1211 = vrot.slane %v258, 2
        %v1212 = vsel %vm1134, %v1210, %v1211
        %v1213 = vrot.slane %v259, 2
        %v1214 = vsel %vm1134, %v1211, %v1213
        %v1247 = vld [vmem:[#allocation2] sm:$0xff]
        %v1248 = vld [vmem:[#allocation2 + $0x8] sm:$0xff]
        %v1249 = vld [vmem:[#allocation2 + $0x10] sm:$0xff]
        %v1250 = vld [vmem:[#allocation2 + $0x18] sm:$0xff]
        %v1251 = vld [vmem:[#allocation2 + $0x20] sm:$0xff]
        %v1252 = vld [vmem:[#allocation2 + $0x28] sm:$0xff]
        %v1253 = vld [vmem:[#allocation2 + $0x30] sm:$0xff]
        %v1254 = vld [vmem:[#allocation2 + $0x38] sm:$0xff]
        %v1255 = vld [vmem:[#allocation2 + $0x40] sm:$0xff]
        %v1256 = vld [vmem:[#allocation2 + $0x48] sm:$0xff]
        %v1257 = vld [vmem:[#allocation2 + $0x50] sm:$0xff]
        %v1258 = vld [vmem:[#allocation2 + $0x58] sm:$0xff]
        %v1259 = vld [vmem:[#allocation2 + $0x60] sm:$0xff]
        %v1260 = vld [vmem:[#allocation2 + $0x68] sm:$0xff]
        %v1261 = vld [vmem:[#allocation2 + $0x70] sm:$0xff]
        %v1262 = vld [vmem:[#allocation2 + $0x78] sm:$0xff]
        %v1263 = vld [vmem:[#allocation2 + $0x80] sm:$0xff]
        %v1264 = vld [vmem:[#allocation2 + $0x88] sm:$0xff]
        %v1265 = vld [vmem:[#allocation2 + $0x90] sm:$0xff]
        %v1266 = vld [vmem:[#allocation2 + $0x98] sm:$0xff]
        %v1267 = vld [vmem:[#allocation2 + $0xa0] sm:$0xff]
        %v1268 = vld [vmem:[#allocation2 + $0xa8] sm:$0xff]
        %v1269 = vld [vmem:[#allocation2 + $0xb0] sm:$0xff]
        %v1270 = vld [vmem:[#allocation2 + $0xb8] sm:$0xff]
        %v1271 = vld [vmem:[#allocation2 + $0xc0] sm:$0xff]
        %v1272 = vld [vmem:[#allocation2 + $0xc8] sm:$0xff]
        %v1273 = vld [vmem:[#allocation2 + $0xd0] sm:$0xff]
        %v1274 = vld [vmem:[#allocation2 + $0xd8] sm:$0xff]
        %v1275 = vld [vmem:[#allocation2 + $0xe0] sm:$0xff]
        %v1276 = vld [vmem:[#allocation2 + $0xe8] sm:$0xff]
        %v1277 = vld [vmem:[#allocation2 + $0xf0] sm:$0xff]
        %v1278 = vld [vmem:[#allocation2 + $0xf8] sm:$0xff]
        %s1279 = scalar_lea.vmem %s1, 256
        %v1280 = vld [vmem:[%s1279] sm:$0xff]
        %v1281 = vld [vmem:[%s1279 + $0x8] sm:$0xff]
        %v1282 = vld [vmem:[%s1279 + $0x10] sm:$0xff]
        %v1283 = vld [vmem:[%s1279 + $0x18] sm:$0xff]
        %v1284 = vld [vmem:[%s1279 + $0x20] sm:$0xff]
        %v1285 = vld [vmem:[%s1279 + $0x28] sm:$0xff]
        %v1286 = vld [vmem:[%s1279 + $0x30] sm:$0xff]
        %v1287 = vld [vmem:[%s1279 + $0x38] sm:$0xff]
        %v1288 = vld [vmem:[%s1279 + $0x40] sm:$0xff]
        %v1289 = vld [vmem:[%s1279 + $0x48] sm:$0xff]
        %v1290 = vld [vmem:[%s1279 + $0x50] sm:$0xff]
        %v1291 = vld [vmem:[%s1279 + $0x58] sm:$0xff]
        %v1292 = vld [vmem:[%s1279 + $0x60] sm:$0xff]
        %v1293 = vld [vmem:[%s1279 + $0x68] sm:$0xff]
        %v1294 = vld [vmem:[%s1279 + $0x70] sm:$0xff]
        %v1295 = vld [vmem:[%s1279 + $0x78] sm:$0xff]
        %1296 = vmatprep.subr.mxu0 0.0
        %1297 = vmatpush1.msra.mxu0 %v1280
        %1298 = vmatprep.subr.mxu0 0.0
        %1299 = vmatpush1.msra.mxu0 %v1281
        %1300 = vmatprep.subr.mxu0 0.0
        %1301 = vmatpush1.msra.mxu0 %v1282
        %1302 = vmatprep.subr.mxu0 0.0
        %1303 = vmatpush1.msra.mxu0 %v1283
        %1304 = vmatprep.subr.mxu0 0.0
        %1305 = vmatpush1.msra.mxu0 %v1284
        %1306 = vmatprep.subr.mxu0 0.0
        %1307 = vmatpush1.msra.mxu0 %v1285
        %1308 = vmatprep.subr.mxu0 0.0
        %1309 = vmatpush1.msra.mxu0 %v1286
        %1310 = vmatprep.subr.mxu0 0.0
        %1311 = vmatpush1.msra.mxu0 %v1287
        %1312 = vmatprep.subr.mxu0 0.0
        %1313 = vmatpush1.msra.mxu0 %v1288
        %1314 = vmatprep.subr.mxu0 0.0
        %1315 = vmatpush1.msra.mxu0 %v1289
        %1316 = vmatprep.subr.mxu0 0.0
        %1317 = vmatpush1.msra.mxu0 %v1290
        %1318 = vmatprep.subr.mxu0 0.0
        %1319 = vmatpush1.msra.mxu0 %v1291
        %1320 = vmatprep.subr.mxu0 0.0
        %1321 = vmatpush1.msra.mxu0 %v1292
        %1322 = vmatprep.subr.mxu0 0.0
        %1323 = vmatpush1.msra.mxu0 %v1293
        %1324 = vmatprep.subr.mxu0 0.0
        %1325 = vmatpush1.msra.mxu0 %v1294
        %1326 = vmatprep.subr.mxu0 0.0
        %1327 = vmatpush1.msra.mxu0 %v1295
        %1328 = vmatprep.subr.mxu0 0.0
        %1329 = vmatpush1.msra.mxu0 0.0
        %1330 = vmatprep.subr.mxu0 0.0
        %1331 = vmatpush1.msra.mxu0 0.0
        %1332 = vmatprep.subr.mxu0 0.0
        %1333 = vmatpush1.msra.mxu0 0.0
        %1334 = vmatprep.subr.mxu0 0.0
        %1335 = vmatpush1.msra.mxu0 0.0
        %1336 = vmatprep.subr.mxu0 0.0
        %1337 = vmatpush1.msra.mxu0 0.0
        %1338 = vmatprep.subr.mxu0 0.0
        %1339 = vmatpush1.msra.mxu0 0.0
        %1340 = vmatprep.subr.mxu0 0.0
        %1341 = vmatpush1.msra.mxu0 0.0
        %1342 = vmatprep.subr.mxu0 0.0
        %1343 = vmatpush1.msra.mxu0 0.0
        %1344 = vmatprep.subr.mxu0 0.0
        %1345 = vmatpush1.msra.mxu0 0.0
        %1346 = vmatprep.subr.mxu0 0.0
        %1347 = vmatpush1.msra.mxu0 0.0
        %1348 = vmatprep.subr.mxu0 0.0
        %1349 = vmatpush1.msra.mxu0 0.0
        %1350 = vmatprep.subr.mxu0 0.0
        %1351 = vmatpush1.msra.mxu0 0.0
        %1352 = vmatprep.subr.mxu0 0.0
        %1353 = vmatpush1.msra.mxu0 0.0
        %1354 = vmatprep.subr.mxu0 0.0
        %1355 = vmatpush1.msra.mxu0 0.0
        %1356 = vmatprep.subr.mxu0 0.0
        %1357 = vmatpush1.msra.mxu0 0.0
        %1358 = vmatprep.subr.mxu0 0.0
        %1359 = vmatpush1.msra.mxu0 0.0
        %1360 = vmatprep.mubr.f32.mxu0 0.0
        %1361 = vmatmul.mubr.f32.gmra.mrb[0].mxu0 %v1137
        %v1362 = vpop.f32.mrb[0].mxu0
        %v1363 = vadd.f32 0.0, %v1362
        %v1364 = vpop.f32.mrb[0].mxu0
        %1365 = vmatprep.mubr.f32.mxu0 0.0
        %1366 = vmatmul.mubr.f32.gmra.mrb[0].mxu0 %v1139
        %v1367 = vpop.f32.mrb[0].mxu0
        %v1368 = vadd.f32 0.0, %v1367
        %v1369 = vpop.f32.mrb[0].mxu0
        %1370 = vmatprep.mubr.f32.mxu0 0.0
        %1371 = vmatmul.mubr.f32.gmra.mrb[0].mxu0 %v1142
        %v1372 = vpop.f32.mrb[0].mxu0
        %v1373 = vadd.f32 0.0, %v1372
        %v1374 = vpop.f32.mrb[0].mxu0
        %1375 = vmatprep.mubr.f32.mxu0 0.0
        %1376 = vmatmul.mubr.f32.gmra.mrb[0].mxu0 %v1144
        %v1377 = vpop.f32.mrb[0].mxu0
        %v1378 = vadd.f32 0.0, %v1377
        %v1379 = vpop.f32.mrb[0].mxu0
        %1380 = vmatprep.mubr.f32.mxu0 0.0
        %1381 = vmatmul.mubr.f32.gmra.mrb[0].mxu0 %v1147
        %v1382 = vpop.f32.mrb[0].mxu0
        %v1383 = vadd.f32 0.0, %v1382
        %v1384 = vpop.f32.mrb[0].mxu0
        %1385 = vmatprep.mubr.f32.mxu0 0.0
        %1386 = vmatmul.mubr.f32.gmra.mrb[0].mxu0 %v1149
        %v1387 = vpop.f32.mrb[0].mxu0
        %v1388 = vadd.f32 0.0, %v1387
        %v1389 = vpop.f32.mrb[0].mxu0
        %1390 = vmatprep.mubr.f32.mxu0 0.0
        %1391 = vmatmul.mubr.f32.gmra.mrb[0].mxu0 %v1152
        %v1392 = vpop.f32.mrb[0].mxu0
        %v1393 = vadd.f32 0.0, %v1392
        %v1394 = vpop.f32.mrb[0].mxu0
        %1395 = vmatprep.mubr.f32.mxu0 0.0
        %1396 = vmatmul.mubr.f32.gmra.mrb[0].mxu0 %v1154
        %v1397 = vpop.f32.mrb[0].mxu0
        %v1398 = vadd.f32 0.0, %v1397
        %v1399 = vpop.f32.mrb[0].mxu0
        %1400 = vmatprep.mubr.f32.mxu0 0.0
        %1401 = vmatmul.mubr.f32.gmra.mrb[0].mxu0 %v1157
        %v1402 = vpop.f32.mrb[0].mxu0
        %v1403 = vadd.f32 0.0, %v1402
        %v1404 = vpop.f32.mrb[0].mxu0
        %1405 = vmatprep.mubr.f32.mxu0 0.0
        %1406 = vmatmul.mubr.f32.gmra.mrb[0].mxu0 %v1159
        %v1407 = vpop.f32.mrb[0].mxu0
        %v1408 = vadd.f32 0.0, %v1407
        %v1409 = vpop.f32.mrb[0].mxu0
        %1410 = vmatprep.mubr.f32.mxu0 0.0
        %1411 = vmatmul.mubr.f32.gmra.mrb[0].mxu0 %v1162
        %v1412 = vpop.f32.mrb[0].mxu0
        %v1413 = vadd.f32 0.0, %v1412
        %v1414 = vpop.f32.mrb[0].mxu0
        %1415 = vmatprep.mubr.f32.mxu0 0.0
        %1416 = vmatmul.mubr.f32.gmra.mrb[0].mxu0 %v1164
        %v1417 = vpop.f32.mrb[0].mxu0
        %v1418 = vadd.f32 0.0, %v1417
        %v1419 = vpop.f32.mrb[0].mxu0
        %1420 = vmatprep.mubr.f32.mxu0 0.0
        %1421 = vmatmul.mubr.f32.gmra.mrb[0].mxu0 %v1167
        %v1422 = vpop.f32.mrb[0].mxu0
        %v1423 = vadd.f32 0.0, %v1422
        %v1424 = vpop.f32.mrb[0].mxu0
        %1425 = vmatprep.mubr.f32.mxu0 0.0
        %1426 = vmatmul.mubr.f32.gmra.mrb[0].mxu0 %v1169
        %v1427 = vpop.f32.mrb[0].mxu0
        %v1428 = vadd.f32 0.0, %v1427
        %v1429 = vpop.f32.mrb[0].mxu0
        %1430 = vmatprep.mubr.f32.mxu0 0.0
        %1431 = vmatmul.mubr.f32.gmra.mrb[0].mxu0 %v1172
        %v1432 = vpop.f32.mrb[0].mxu0
        %v1433 = vadd.f32 0.0, %v1432
        %v1434 = vpop.f32.mrb[0].mxu0
        %1435 = vmatprep.mubr.f32.mxu0 0.0
        %1436 = vmatmul.mubr.f32.gmra.mrb[0].mxu0 %v1174
        %v1437 = vpop.f32.mrb[0].mxu0
        %v1438 = vadd.f32 0.0, %v1437
        %v1439 = vpop.f32.mrb[0].mxu0
        %1440 = vmatprep.mubr.f32.mxu0 0.0
        %1441 = vmatmul.mubr.f32.gmra.mrb[0].mxu0 %v1177
        %v1442 = vpop.f32.mrb[0].mxu0
        %v1443 = vadd.f32 0.0, %v1442
        %v1444 = vpop.f32.mrb[0].mxu0
        %1445 = vmatprep.mubr.f32.mxu0 0.0
        %1446 = vmatmul.mubr.f32.gmra.mrb[0].mxu0 %v1179
        %v1447 = vpop.f32.mrb[0].mxu0
        %v1448 = vadd.f32 0.0, %v1447
        %v1449 = vpop.f32.mrb[0].mxu0
        %1450 = vmatprep.mubr.f32.mxu0 0.0
        %1451 = vmatmul.mubr.f32.gmra.mrb[0].mxu0 %v1182
        %v1452 = vpop.f32.mrb[0].mxu0
        %v1453 = vadd.f32 0.0, %v1452
        %v1454 = vpop.f32.mrb[0].mxu0
        %1455 = vmatprep.mubr.f32.mxu0 0.0
        %1456 = vmatmul.mubr.f32.gmra.mrb[0].mxu0 %v1184
        %v1457 = vpop.f32.mrb[0].mxu0
        %v1458 = vadd.f32 0.0, %v1457
        %v1459 = vpop.f32.mrb[0].mxu0
        %1460 = vmatprep.mubr.f32.mxu0 0.0
        %1461 = vmatmul.mubr.f32.gmra.mrb[0].mxu0 %v1187
        %v1462 = vpop.f32.mrb[0].mxu0
        %v1463 = vadd.f32 0.0, %v1462
        %v1464 = vpop.f32.mrb[0].mxu0
        %1465 = vmatprep.mubr.f32.mxu0 0.0
        %1466 = vmatmul.mubr.f32.gmra.mrb[0].mxu0 %v1189
        %v1467 = vpop.f32.mrb[0].mxu0
        %v1468 = vadd.f32 0.0, %v1467
        %v1469 = vpop.f32.mrb[0].mxu0
        %1470 = vmatprep.mubr.f32.mxu0 0.0
        %1471 = vmatmul.mubr.f32.gmra.mrb[0].mxu0 %v1192
        %v1472 = vpop.f32.mrb[0].mxu0
        %v1473 = vadd.f32 0.0, %v1472
        %v1474 = vpop.f32.mrb[0].mxu0
        %1475 = vmatprep.mubr.f32.mxu0 0.0
        %1476 = vmatmul.mubr.f32.gmra.mrb[0].mxu0 %v1194
        %v1477 = vpop.f32.mrb[0].mxu0
        %v1478 = vadd.f32 0.0, %v1477
        %v1479 = vpop.f32.mrb[0].mxu0
        %1480 = vmatprep.mubr.f32.mxu0 0.0
        %1481 = vmatmul.mubr.f32.gmra.mrb[0].mxu0 %v1197
        %v1482 = vpop.f32.mrb[0].mxu0
        %v1483 = vadd.f32 0.0, %v1482
        %v1484 = vpop.f32.mrb[0].mxu0
        %1485 = vmatprep.mubr.f32.mxu0 0.0
        %1486 = vmatmul.mubr.f32.gmra.mrb[0].mxu0 %v1199
        %v1487 = vpop.f32.mrb[0].mxu0
        %v1488 = vadd.f32 0.0, %v1487
        %v1489 = vpop.f32.mrb[0].mxu0
        %1490 = vmatprep.mubr.f32.mxu0 0.0
        %1491 = vmatmul.mubr.f32.gmra.mrb[0].mxu0 %v1202
        %v1492 = vpop.f32.mrb[0].mxu0
        %v1493 = vadd.f32 0.0, %v1492
        %v1494 = vpop.f32.mrb[0].mxu0
        %1495 = vmatprep.mubr.f32.mxu0 0.0
        %1496 = vmatmul.mubr.f32.gmra.mrb[0].mxu0 %v1204
        %v1497 = vpop.f32.mrb[0].mxu0
        %v1498 = vadd.f32 0.0, %v1497
        %v1499 = vpop.f32.mrb[0].mxu0
        %1500 = vmatprep.mubr.f32.mxu0 0.0
        %1501 = vmatmul.mubr.f32.gmra.mrb[0].mxu0 %v1207
        %v1502 = vpop.f32.mrb[0].mxu0
        %v1503 = vadd.f32 0.0, %v1502
        %v1504 = vpop.f32.mrb[0].mxu0
        %1505 = vmatprep.mubr.f32.mxu0 0.0
        %1506 = vmatmul.mubr.f32.gmra.mrb[0].mxu0 %v1209
        %v1507 = vpop.f32.mrb[0].mxu0
        %v1508 = vadd.f32 0.0, %v1507
        %v1509 = vpop.f32.mrb[0].mxu0
        %1510 = vmatprep.mubr.f32.mxu0 0.0
        %1511 = vmatmul.mubr.f32.gmra.mrb[0].mxu0 %v1212
        %v1512 = vpop.f32.mrb[0].mxu0
        %v1513 = vadd.f32 0.0, %v1512
        %v1514 = vpop.f32.mrb[0].mxu0
        %1515 = vmatprep.mubr.f32.mxu0 0.0
        %1516 = vmatmul.mubr.f32.gmra.mrb[0].mxu0 %v1214
        %v1517 = vpop.f32.mrb[0].mxu0
        %v1518 = vadd.f32 0.0, %v1517
        %v1519 = vpop.f32.mrb[0].mxu0
        %1520 = vdwg.mxu0
        %v1521 = vadd.f32 %v1247, %v1363
        %v1522 = vadd.f32 %v1248, %v1368
        %v1523 = vadd.f32 %v1249, %v1373
        %v1524 = vadd.f32 %v1250, %v1378
        %v1525 = vadd.f32 %v1251, %v1383
        %v1526 = vadd.f32 %v1252, %v1388
        %v1527 = vadd.f32 %v1253, %v1393
        %v1528 = vadd.f32 %v1254, %v1398
        %v1529 = vadd.f32 %v1255, %v1403
        %v1530 = vadd.f32 %v1256, %v1408
        %v1531 = vadd.f32 %v1257, %v1413
        %v1532 = vadd.f32 %v1258, %v1418
        %v1533 = vadd.f32 %v1259, %v1423
        %v1534 = vadd.f32 %v1260, %v1428
        %v1535 = vadd.f32 %v1261, %v1433
        %v1536 = vadd.f32 %v1262, %v1438
        %v1537 = vadd.f32 %v1263, %v1443
        %v1538 = vadd.f32 %v1264, %v1448
        %v1539 = vadd.f32 %v1265, %v1453
        %v1540 = vadd.f32 %v1266, %v1458
        %v1541 = vadd.f32 %v1267, %v1463
        %v1542 = vadd.f32 %v1268, %v1468
        %v1543 = vadd.f32 %v1269, %v1473
        %v1544 = vadd.f32 %v1270, %v1478
        %v1545 = vadd.f32 %v1271, %v1483
        %v1546 = vadd.f32 %v1272, %v1488
        %v1547 = vadd.f32 %v1273, %v1493
        %v1548 = vadd.f32 %v1274, %v1498
        %v1549 = vadd.f32 %v1275, %v1503
        %v1550 = vadd.f32 %v1276, %v1508
        %v1551 = vadd.f32 %v1277, %v1513
        %v1552 = vadd.f32 %v1278, %v1518
        %1553 = vst [vmem:[#allocation2] sm:$0xff] %v1521
        %1554 = vst [vmem:[#allocation2 + $0x8] sm:$0xff] %v1522
        %1555 = vst [vmem:[#allocation2 + $0x10] sm:$0xff] %v1523
        %1556 = vst [vmem:[#allocation2 + $0x18] sm:$0xff] %v1524
        %1557 = vst [vmem:[#allocation2 + $0x20] sm:$0xff] %v1525
        %1558 = vst [vmem:[#allocation2 + $0x28] sm:$0xff] %v1526
        %1559 = vst [vmem:[#allocation2 + $0x30] sm:$0xff] %v1527
        %1560 = vst [vmem:[#allocation2 + $0x38] sm:$0xff] %v1528
        %1561 = vst [vmem:[#allocation2 + $0x40] sm:$0xff] %v1529
        %1562 = vst [vmem:[#allocation2 + $0x48] sm:$0xff] %v1530
        %1563 = vst [vmem:[#allocation2 + $0x50] sm:$0xff] %v1531
        %1564 = vst [vmem:[#allocation2 + $0x58] sm:$0xff] %v1532
        %1565 = vst [vmem:[#allocation2 + $0x60] sm:$0xff] %v1533
        %1566 = vst [vmem:[#allocation2 + $0x68] sm:$0xff] %v1534
        %1567 = vst [vmem:[#allocation2 + $0x70] sm:$0xff] %v1535
        %1568 = vst [vmem:[#allocation2 + $0x78] sm:$0xff] %v1536
        %1569 = vst [vmem:[#allocation2 + $0x80] sm:$0xff] %v1537
        %1570 = vst [vmem:[#allocation2 + $0x88] sm:$0xff] %v1538
        %1571 = vst [vmem:[#allocation2 + $0x90] sm:$0xff] %v1539
        %1572 = vst [vmem:[#allocation2 + $0x98] sm:$0xff] %v1540
        %1573 = vst [vmem:[#allocation2 + $0xa0] sm:$0xff] %v1541
        %1574 = vst [vmem:[#allocation2 + $0xa8] sm:$0xff] %v1542
        %1575 = vst [vmem:[#allocation2 + $0xb0] sm:$0xff] %v1543
        %1576 = vst [vmem:[#allocation2 + $0xb8] sm:$0xff] %v1544
        %1577 = vst [vmem:[#allocation2 + $0xc0] sm:$0xff] %v1545
        %1578 = vst [vmem:[#allocation2 + $0xc8] sm:$0xff] %v1546
        %1579 = vst [vmem:[#allocation2 + $0xd0] sm:$0xff] %v1547
        %1580 = vst [vmem:[#allocation2 + $0xd8] sm:$0xff] %v1548
        %1581 = vst [vmem:[#allocation2 + $0xe0] sm:$0xff] %v1549
        %1582 = vst [vmem:[#allocation2 + $0xe8] sm:$0xff] %v1550
        %1583 = vst [vmem:[#allocation2 + $0xf0] sm:$0xff] %v1551
        %1584 = vst [vmem:[#allocation2 + $0xf8] sm:$0xff] %v1552
        %v1585 = vld [vmem:[#allocation2] sm:$0xff]
        %v1586 = vld [vmem:[#allocation2 + $0x8] sm:$0xff]
        %v1587 = vld [vmem:[#allocation2 + $0x10] sm:$0xff]
        %v1588 = vld [vmem:[#allocation2 + $0x18] sm:$0xff]
        %v1589 = vld [vmem:[#allocation2 + $0x20] sm:$0xff]
        %v1590 = vld [vmem:[#allocation2 + $0x28] sm:$0xff]
        %v1591 = vld [vmem:[#allocation2 + $0x30] sm:$0xff]
        %v1592 = vld [vmem:[#allocation2 + $0x38] sm:$0xff]
        %v1593 = vld [vmem:[#allocation2 + $0x40] sm:$0xff]
        %v1594 = vld [vmem:[#allocation2 + $0x48] sm:$0xff]
        %v1595 = vld [vmem:[#allocation2 + $0x50] sm:$0xff]
        %v1596 = vld [vmem:[#allocation2 + $0x58] sm:$0xff]
        %v1597 = vld [vmem:[#allocation2 + $0x60] sm:$0xff]
        %v1598 = vld [vmem:[#allocation2 + $0x68] sm:$0xff]
        %v1599 = vld [vmem:[#allocation2 + $0x70] sm:$0xff]
        %v1600 = vld [vmem:[#allocation2 + $0x78] sm:$0xff]
        %v1601 = vld [vmem:[#allocation2 + $0x80] sm:$0xff]
        %v1602 = vld [vmem:[#allocation2 + $0x88] sm:$0xff]
        %v1603 = vld [vmem:[#allocation2 + $0x90] sm:$0xff]
        %v1604 = vld [vmem:[#allocation2 + $0x98] sm:$0xff]
        %v1605 = vld [vmem:[#allocation2 + $0xa0] sm:$0xff]
        %v1606 = vld [vmem:[#allocation2 + $0xa8] sm:$0xff]
        %v1607 = vld [vmem:[#allocation2 + $0xb0] sm:$0xff]
        %v1608 = vld [vmem:[#allocation2 + $0xb8] sm:$0xff]
        %v1609 = vld [vmem:[#allocation2 + $0xc0] sm:$0xff]
        %v1610 = vld [vmem:[#allocation2 + $0xc8] sm:$0xff]
        %v1611 = vld [vmem:[#allocation2 + $0xd0] sm:$0xff]
        %v1612 = vld [vmem:[#allocation2 + $0xd8] sm:$0xff]
        %v1613 = vld [vmem:[#allocation2 + $0xe0] sm:$0xff]
        %v1614 = vld [vmem:[#allocation2 + $0xe8] sm:$0xff]
        %v1615 = vld [vmem:[#allocation2 + $0xf0] sm:$0xff]
        %v1616 = vld [vmem:[#allocation2 + $0xf8] sm:$0xff]
        %s1617 = scalar_lea.vmem %s1, 384
        %v1618 = vld [vmem:[%s1617] sm:$0xff]
        %v1619 = vld [vmem:[%s1617 + $0x8] sm:$0xff]
        %v1620 = vld [vmem:[%s1617 + $0x10] sm:$0xff]
        %v1621 = vld [vmem:[%s1617 + $0x18] sm:$0xff]
        %v1622 = vld [vmem:[%s1617 + $0x20] sm:$0xff]
        %v1623 = vld [vmem:[%s1617 + $0x28] sm:$0xff]
        %v1624 = vld [vmem:[%s1617 + $0x30] sm:$0xff]
        %v1625 = vld [vmem:[%s1617 + $0x38] sm:$0xff]
        %v1626 = vld [vmem:[%s1617 + $0x40] sm:$0xff]
        %v1627 = vld [vmem:[%s1617 + $0x48] sm:$0xff]
        %v1628 = vld [vmem:[%s1617 + $0x50] sm:$0xff]
        %v1629 = vld [vmem:[%s1617 + $0x58] sm:$0xff]
        %v1630 = vld [vmem:[%s1617 + $0x60] sm:$0xff]
        %v1631 = vld [vmem:[%s1617 + $0x68] sm:$0xff]
        %v1632 = vld [vmem:[%s1617 + $0x70] sm:$0xff]
        %v1633 = vld [vmem:[%s1617 + $0x78] sm:$0xff]
        %1634 = vmatprep.subr.mxu0 0.0
        %1635 = vmatpush1.msra.mxu0 %v1618
        %1636 = vmatprep.subr.mxu0 0.0
        %1637 = vmatpush1.msra.mxu0 %v1619
        %1638 = vmatprep.subr.mxu0 0.0
        %1639 = vmatpush1.msra.mxu0 %v1620
        %1640 = vmatprep.subr.mxu0 0.0
        %1641 = vmatpush1.msra.mxu0 %v1621
        %1642 = vmatprep.subr.mxu0 0.0
        %1643 = vmatpush1.msra.mxu0 %v1622
        %1644 = vmatprep.subr.mxu0 0.0
        %1645 = vmatpush1.msra.mxu0 %v1623
        %1646 = vmatprep.subr.mxu0 0.0
        %1647 = vmatpush1.msra.mxu0 %v1624
        %1648 = vmatprep.subr.mxu0 0.0
        %1649 = vmatpush1.msra.mxu0 %v1625
        %1650 = vmatprep.subr.mxu0 0.0
        %1651 = vmatpush1.msra.mxu0 %v1626
        %1652 = vmatprep.subr.mxu0 0.0
        %1653 = vmatpush1.msra.mxu0 %v1627
        %1654 = vmatprep.subr.mxu0 0.0
        %1655 = vmatpush1.msra.mxu0 %v1628
        %1656 = vmatprep.subr.mxu0 0.0
        %1657 = vmatpush1.msra.mxu0 %v1629
        %1658 = vmatprep.subr.mxu0 0.0
        %1659 = vmatpush1.msra.mxu0 %v1630
        %1660 = vmatprep.subr.mxu0 0.0
        %1661 = vmatpush1.msra.mxu0 %v1631
        %1662 = vmatprep.subr.mxu0 0.0
        %1663 = vmatpush1.msra.mxu0 %v1632
        %1664 = vmatprep.subr.mxu0 0.0
        %1665 = vmatpush1.msra.mxu0 %v1633
        %1666 = vmatprep.subr.mxu0 0.0
        %1667 = vmatpush1.msra.mxu0 0.0
        %1668 = vmatprep.subr.mxu0 0.0
        %1669 = vmatpush1.msra.mxu0 0.0
        %1670 = vmatprep.subr.mxu0 0.0
        %1671 = vmatpush1.msra.mxu0 0.0
        %1672 = vmatprep.subr.mxu0 0.0
        %1673 = vmatpush1.msra.mxu0 0.0
        %1674 = vmatprep.subr.mxu0 0.0
        %1675 = vmatpush1.msra.mxu0 0.0
        %1676 = vmatprep.subr.mxu0 0.0
        %1677 = vmatpush1.msra.mxu0 0.0
        %1678 = vmatprep.subr.mxu0 0.0
        %1679 = vmatpush1.msra.mxu0 0.0
        %1680 = vmatprep.subr.mxu0 0.0
        %1681 = vmatpush1.msra.mxu0 0.0
        %1682 = vmatprep.subr.mxu0 0.0
        %1683 = vmatpush1.msra.mxu0 0.0
        %1684 = vmatprep.subr.mxu0 0.0
        %1685 = vmatpush1.msra.mxu0 0.0
        %1686 = vmatprep.subr.mxu0 0.0
        %1687 = vmatpush1.msra.mxu0 0.0
        %1688 = vmatprep.subr.mxu0 0.0
        %1689 = vmatpush1.msra.mxu0 0.0
        %1690 = vmatprep.subr.mxu0 0.0
        %1691 = vmatpush1.msra.mxu0 0.0
        %1692 = vmatprep.subr.mxu0 0.0
        %1693 = vmatpush1.msra.mxu0 0.0
        %1694 = vmatprep.subr.mxu0 0.0
        %1695 = vmatpush1.msra.mxu0 0.0
        %1696 = vmatprep.subr.mxu0 0.0
        %1697 = vmatpush1.msra.mxu0 0.0
        %1698 = vmatprep.mubr.f32.mxu0 0.0
        %1699 = vmatmul.mubr.f32.gmra.mrb[0].mxu0 %v215
        %v1700 = vpop.f32.mrb[0].mxu0
        %v1701 = vadd.f32 0.0, %v1700
        %v1702 = vpop.f32.mrb[0].mxu0
        %1703 = vmatprep.mubr.f32.mxu0 0.0
        %1704 = vmatmul.mubr.f32.gmra.mrb[0].mxu0 %v216
        %v1705 = vpop.f32.mrb[0].mxu0
        %v1706 = vadd.f32 0.0, %v1705
        %v1707 = vpop.f32.mrb[0].mxu0
        %1708 = vmatprep.mubr.f32.mxu0 0.0
        %1709 = vmatmul.mubr.f32.gmra.mrb[0].mxu0 %v218
        %v1710 = vpop.f32.mrb[0].mxu0
        %v1711 = vadd.f32 0.0, %v1710
        %v1712 = vpop.f32.mrb[0].mxu0
        %1713 = vmatprep.mubr.f32.mxu0 0.0
        %1714 = vmatmul.mubr.f32.gmra.mrb[0].mxu0 %v219
        %v1715 = vpop.f32.mrb[0].mxu0
        %v1716 = vadd.f32 0.0, %v1715
        %v1717 = vpop.f32.mrb[0].mxu0
        %1718 = vmatprep.mubr.f32.mxu0 0.0
        %1719 = vmatmul.mubr.f32.gmra.mrb[0].mxu0 %v221
        %v1720 = vpop.f32.mrb[0].mxu0
        %v1721 = vadd.f32 0.0, %v1720
        %v1722 = vpop.f32.mrb[0].mxu0
        %1723 = vmatprep.mubr.f32.mxu0 0.0
        %1724 = vmatmul.mubr.f32.gmra.mrb[0].mxu0 %v222
        %v1725 = vpop.f32.mrb[0].mxu0
        %v1726 = vadd.f32 0.0, %v1725
        %v1727 = vpop.f32.mrb[0].mxu0
        %1728 = vmatprep.mubr.f32.mxu0 0.0
        %1729 = vmatmul.mubr.f32.gmra.mrb[0].mxu0 %v224
        %v1730 = vpop.f32.mrb[0].mxu0
        %v1731 = vadd.f32 0.0, %v1730
        %v1732 = vpop.f32.mrb[0].mxu0
        %1733 = vmatprep.mubr.f32.mxu0 0.0
        %1734 = vmatmul.mubr.f32.gmra.mrb[0].mxu0 %v225
        %v1735 = vpop.f32.mrb[0].mxu0
        %v1736 = vadd.f32 0.0, %v1735
        %v1737 = vpop.f32.mrb[0].mxu0
        %1738 = vmatprep.mubr.f32.mxu0 0.0
        %1739 = vmatmul.mubr.f32.gmra.mrb[0].mxu0 %v227
        %v1740 = vpop.f32.mrb[0].mxu0
        %v1741 = vadd.f32 0.0, %v1740
        %v1742 = vpop.f32.mrb[0].mxu0
        %1743 = vmatprep.mubr.f32.mxu0 0.0
        %1744 = vmatmul.mubr.f32.gmra.mrb[0].mxu0 %v228
        %v1745 = vpop.f32.mrb[0].mxu0
        %v1746 = vadd.f32 0.0, %v1745
        %v1747 = vpop.f32.mrb[0].mxu0
        %1748 = vmatprep.mubr.f32.mxu0 0.0
        %1749 = vmatmul.mubr.f32.gmra.mrb[0].mxu0 %v230
        %v1750 = vpop.f32.mrb[0].mxu0
        %v1751 = vadd.f32 0.0, %v1750
        %v1752 = vpop.f32.mrb[0].mxu0
        %1753 = vmatprep.mubr.f32.mxu0 0.0
        %1754 = vmatmul.mubr.f32.gmra.mrb[0].mxu0 %v231
        %v1755 = vpop.f32.mrb[0].mxu0
        %v1756 = vadd.f32 0.0, %v1755
        %v1757 = vpop.f32.mrb[0].mxu0
        %1758 = vmatprep.mubr.f32.mxu0 0.0
        %1759 = vmatmul.mubr.f32.gmra.mrb[0].mxu0 %v233
        %v1760 = vpop.f32.mrb[0].mxu0
        %v1761 = vadd.f32 0.0, %v1760
        %v1762 = vpop.f32.mrb[0].mxu0
        %1763 = vmatprep.mubr.f32.mxu0 0.0
        %1764 = vmatmul.mubr.f32.gmra.mrb[0].mxu0 %v234
        %v1765 = vpop.f32.mrb[0].mxu0
        %v1766 = vadd.f32 0.0, %v1765
        %v1767 = vpop.f32.mrb[0].mxu0
        %1768 = vmatprep.mubr.f32.mxu0 0.0
        %1769 = vmatmul.mubr.f32.gmra.mrb[0].mxu0 %v236
        %v1770 = vpop.f32.mrb[0].mxu0
        %v1771 = vadd.f32 0.0, %v1770
        %v1772 = vpop.f32.mrb[0].mxu0
        %1773 = vmatprep.mubr.f32.mxu0 0.0
        %1774 = vmatmul.mubr.f32.gmra.mrb[0].mxu0 %v237
        %v1775 = vpop.f32.mrb[0].mxu0
        %v1776 = vadd.f32 0.0, %v1775
        %v1777 = vpop.f32.mrb[0].mxu0
        %1778 = vmatprep.mubr.f32.mxu0 0.0
        %1779 = vmatmul.mubr.f32.gmra.mrb[0].mxu0 %v239
        %v1780 = vpop.f32.mrb[0].mxu0
        %v1781 = vadd.f32 0.0, %v1780
        %v1782 = vpop.f32.mrb[0].mxu0
        %1783 = vmatprep.mubr.f32.mxu0 0.0
        %1784 = vmatmul.mubr.f32.gmra.mrb[0].mxu0 %v240
        %v1785 = vpop.f32.mrb[0].mxu0
        %v1786 = vadd.f32 0.0, %v1785
        %v1787 = vpop.f32.mrb[0].mxu0
        %1788 = vmatprep.mubr.f32.mxu0 0.0
        %1789 = vmatmul.mubr.f32.gmra.mrb[0].mxu0 %v242
        %v1790 = vpop.f32.mrb[0].mxu0
        %v1791 = vadd.f32 0.0, %v1790
        %v1792 = vpop.f32.mrb[0].mxu0
        %1793 = vmatprep.mubr.f32.mxu0 0.0
        %1794 = vmatmul.mubr.f32.gmra.mrb[0].mxu0 %v243
        %v1795 = vpop.f32.mrb[0].mxu0
        %v1796 = vadd.f32 0.0, %v1795
        %v1797 = vpop.f32.mrb[0].mxu0
        %1798 = vmatprep.mubr.f32.mxu0 0.0
        %1799 = vmatmul.mubr.f32.gmra.mrb[0].mxu0 %v245
        %v1800 = vpop.f32.mrb[0].mxu0
        %v1801 = vadd.f32 0.0, %v1800
        %v1802 = vpop.f32.mrb[0].mxu0
        %1803 = vmatprep.mubr.f32.mxu0 0.0
        %1804 = vmatmul.mubr.f32.gmra.mrb[0].mxu0 %v246
        %v1805 = vpop.f32.mrb[0].mxu0
        %v1806 = vadd.f32 0.0, %v1805
        %v1807 = vpop.f32.mrb[0].mxu0
        %1808 = vmatprep.mubr.f32.mxu0 0.0
        %1809 = vmatmul.mubr.f32.gmra.mrb[0].mxu0 %v248
        %v1810 = vpop.f32.mrb[0].mxu0
        %v1811 = vadd.f32 0.0, %v1810
        %v1812 = vpop.f32.mrb[0].mxu0
        %1813 = vmatprep.mubr.f32.mxu0 0.0
        %1814 = vmatmul.mubr.f32.gmra.mrb[0].mxu0 %v249
        %v1815 = vpop.f32.mrb[0].mxu0
        %v1816 = vadd.f32 0.0, %v1815
        %v1817 = vpop.f32.mrb[0].mxu0
        %1818 = vmatprep.mubr.f32.mxu0 0.0
        %1819 = vmatmul.mubr.f32.gmra.mrb[0].mxu0 %v251
        %v1820 = vpop.f32.mrb[0].mxu0
        %v1821 = vadd.f32 0.0, %v1820
        %v1822 = vpop.f32.mrb[0].mxu0
        %1823 = vmatprep.mubr.f32.mxu0 0.0
        %1824 = vmatmul.mubr.f32.gmra.mrb[0].mxu0 %v252
        %v1825 = vpop.f32.mrb[0].mxu0
        %v1826 = vadd.f32 0.0, %v1825
        %v1827 = vpop.f32.mrb[0].mxu0
        %1828 = vmatprep.mubr.f32.mxu0 0.0
        %1829 = vmatmul.mubr.f32.gmra.mrb[0].mxu0 %v254
        %v1830 = vpop.f32.mrb[0].mxu0
        %v1831 = vadd.f32 0.0, %v1830
        %v1832 = vpop.f32.mrb[0].mxu0
        %1833 = vmatprep.mubr.f32.mxu0 0.0
        %1834 = vmatmul.mubr.f32.gmra.mrb[0].mxu0 %v255
        %v1835 = vpop.f32.mrb[0].mxu0
        %v1836 = vadd.f32 0.0, %v1835
        %v1837 = vpop.f32.mrb[0].mxu0
        %1838 = vmatprep.mubr.f32.mxu0 0.0
        %1839 = vmatmul.mubr.f32.gmra.mrb[0].mxu0 %v257
        %v1840 = vpop.f32.mrb[0].mxu0
        %v1841 = vadd.f32 0.0, %v1840
        %v1842 = vpop.f32.mrb[0].mxu0
        %1843 = vmatprep.mubr.f32.mxu0 0.0
        %1844 = vmatmul.mubr.f32.gmra.mrb[0].mxu0 %v258
        %v1845 = vpop.f32.mrb[0].mxu0
        %v1846 = vadd.f32 0.0, %v1845
        %v1847 = vpop.f32.mrb[0].mxu0
        %1848 = vmatprep.mubr.f32.mxu0 0.0
        %1849 = vmatmul.mubr.f32.gmra.mrb[0].mxu0 %v260
        %v1850 = vpop.f32.mrb[0].mxu0
        %v1851 = vadd.f32 0.0, %v1850
        %v1852 = vpop.f32.mrb[0].mxu0
        %1853 = vmatprep.mubr.f32.mxu0 0.0
        %1854 = vmatmul.mubr.f32.gmra.mrb[0].mxu0 %v261
        %v1855 = vpop.f32.mrb[0].mxu0
        %v1856 = vadd.f32 0.0, %v1855
        %v1857 = vpop.f32.mrb[0].mxu0
        %1858 = vdwg.mxu0
        %v1859 = vadd.f32 %v1585, %v1701
        %v1860 = vadd.f32 %v1586, %v1706
        %v1861 = vadd.f32 %v1587, %v1711
        %v1862 = vadd.f32 %v1588, %v1716
        %v1863 = vadd.f32 %v1589, %v1721
        %v1864 = vadd.f32 %v1590, %v1726
        %v1865 = vadd.f32 %v1591, %v1731
        %v1866 = vadd.f32 %v1592, %v1736
        %v1867 = vadd.f32 %v1593, %v1741
        %v1868 = vadd.f32 %v1594, %v1746
        %v1869 = vadd.f32 %v1595, %v1751
        %v1870 = vadd.f32 %v1596, %v1756
        %v1871 = vadd.f32 %v1597, %v1761
        %v1872 = vadd.f32 %v1598, %v1766
        %v1873 = vadd.f32 %v1599, %v1771
        %v1874 = vadd.f32 %v1600, %v1776
        %v1875 = vadd.f32 %v1601, %v1781
        %v1876 = vadd.f32 %v1602, %v1786
        %v1877 = vadd.f32 %v1603, %v1791
        %v1878 = vadd.f32 %v1604, %v1796
        %v1879 = vadd.f32 %v1605, %v1801
        %v1880 = vadd.f32 %v1606, %v1806
        %v1881 = vadd.f32 %v1607, %v1811
        %v1882 = vadd.f32 %v1608, %v1816
        %v1883 = vadd.f32 %v1609, %v1821
        %v1884 = vadd.f32 %v1610, %v1826
        %v1885 = vadd.f32 %v1611, %v1831
        %v1886 = vadd.f32 %v1612, %v1836
        %v1887 = vadd.f32 %v1613, %v1841
        %v1888 = vadd.f32 %v1614, %v1846
        %v1889 = vadd.f32 %v1615, %v1851
        %v1890 = vadd.f32 %v1616, %v1856
        %1891 = vst [vmem:[#allocation2] sm:$0xff] %v1859
        %1892 = vst [vmem:[#allocation2 + $0x8] sm:$0xff] %v1860
        %1893 = vst [vmem:[#allocation2 + $0x10] sm:$0xff] %v1861
        %1894 = vst [vmem:[#allocation2 + $0x18] sm:$0xff] %v1862
        %1895 = vst [vmem:[#allocation2 + $0x20] sm:$0xff] %v1863
        %1896 = vst [vmem:[#allocation2 + $0x28] sm:$0xff] %v1864
        %1897 = vst [vmem:[#allocation2 + $0x30] sm:$0xff] %v1865
        %1898 = vst [vmem:[#allocation2 + $0x38] sm:$0xff] %v1866
        %1899 = vst [vmem:[#allocation2 + $0x40] sm:$0xff] %v1867
        %1900 = vst [vmem:[#allocation2 + $0x48] sm:$0xff] %v1868
        %1901 = vst [vmem:[#allocation2 + $0x50] sm:$0xff] %v1869
        %1902 = vst [vmem:[#allocation2 + $0x58] sm:$0xff] %v1870
        %1903 = vst [vmem:[#allocation2 + $0x60] sm:$0xff] %v1871
        %1904 = vst [vmem:[#allocation2 + $0x68] sm:$0xff] %v1872
        %1905 = vst [vmem:[#allocation2 + $0x70] sm:$0xff] %v1873
        %1906 = vst [vmem:[#allocation2 + $0x78] sm:$0xff] %v1874
        %1907 = vst [vmem:[#allocation2 + $0x80] sm:$0xff] %v1875
        %1908 = vst [vmem:[#allocation2 + $0x88] sm:$0xff] %v1876
        %1909 = vst [vmem:[#allocation2 + $0x90] sm:$0xff] %v1877
        %1910 = vst [vmem:[#allocation2 + $0x98] sm:$0xff] %v1878
        %1911 = vst [vmem:[#allocation2 + $0xa0] sm:$0xff] %v1879
        %1912 = vst [vmem:[#allocation2 + $0xa8] sm:$0xff] %v1880
        %1913 = vst [vmem:[#allocation2 + $0xb0] sm:$0xff] %v1881
        %1914 = vst [vmem:[#allocation2 + $0xb8] sm:$0xff] %v1882
        %1915 = vst [vmem:[#allocation2 + $0xc0] sm:$0xff] %v1883
        %1916 = vst [vmem:[#allocation2 + $0xc8] sm:$0xff] %v1884
        %1917 = vst [vmem:[#allocation2 + $0xd0] sm:$0xff] %v1885
        %1918 = vst [vmem:[#allocation2 + $0xd8] sm:$0xff] %v1886
        %1919 = vst [vmem:[#allocation2 + $0xe0] sm:$0xff] %v1887
        %1920 = vst [vmem:[#allocation2 + $0xe8] sm:$0xff] %v1888
        %1921 = vst [vmem:[#allocation2 + $0xf0] sm:$0xff] %v1889
        %1922 = vst [vmem:[#allocation2 + $0xf8] sm:$0xff] %v1890
        %v1926 = vrot.slane %v260, 1
        %v1927 = vrot.slane %v261, 1
        %v1928 = vsel %vm683, %v1926, %v1927
        %v1929 = vrot.slane %v262, 1
        %v1930 = vsel %vm683, %v1927, %v1929
        %v1933 = vld [vmem:[#allocation2] sm:$0xff]
        %v1934 = vld [vmem:[#allocation2 + $0x8] sm:$0xff]
        %v1935 = vld [vmem:[#allocation2 + $0x10] sm:$0xff]
        %v1936 = vld [vmem:[#allocation2 + $0x18] sm:$0xff]
        %v1937 = vld [vmem:[#allocation2 + $0x20] sm:$0xff]
        %v1938 = vld [vmem:[#allocation2 + $0x28] sm:$0xff]
        %v1939 = vld [vmem:[#allocation2 + $0x30] sm:$0xff]
        %v1940 = vld [vmem:[#allocation2 + $0x38] sm:$0xff]
        %v1941 = vld [vmem:[#allocation2 + $0x40] sm:$0xff]
        %v1942 = vld [vmem:[#allocation2 + $0x48] sm:$0xff]
        %v1943 = vld [vmem:[#allocation2 + $0x50] sm:$0xff]
        %v1944 = vld [vmem:[#allocation2 + $0x58] sm:$0xff]
        %v1945 = vld [vmem:[#allocation2 + $0x60] sm:$0xff]
        %v1946 = vld [vmem:[#allocation2 + $0x68] sm:$0xff]
        %v1947 = vld [vmem:[#allocation2 + $0x70] sm:$0xff]
        %v1948 = vld [vmem:[#allocation2 + $0x78] sm:$0xff]
        %v1949 = vld [vmem:[#allocation2 + $0x80] sm:$0xff]
        %v1950 = vld [vmem:[#allocation2 + $0x88] sm:$0xff]
        %v1951 = vld [vmem:[#allocation2 + $0x90] sm:$0xff]
        %v1952 = vld [vmem:[#allocation2 + $0x98] sm:$0xff]
        %v1953 = vld [vmem:[#allocation2 + $0xa0] sm:$0xff]
        %v1954 = vld [vmem:[#allocation2 + $0xa8] sm:$0xff]
        %v1955 = vld [vmem:[#allocation2 + $0xb0] sm:$0xff]
        %v1956 = vld [vmem:[#allocation2 + $0xb8] sm:$0xff]
        %v1957 = vld [vmem:[#allocation2 + $0xc0] sm:$0xff]
        %v1958 = vld [vmem:[#allocation2 + $0xc8] sm:$0xff]
        %v1959 = vld [vmem:[#allocation2 + $0xd0] sm:$0xff]
        %v1960 = vld [vmem:[#allocation2 + $0xd8] sm:$0xff]
        %v1961 = vld [vmem:[#allocation2 + $0xe0] sm:$0xff]
        %v1962 = vld [vmem:[#allocation2 + $0xe8] sm:$0xff]
        %v1963 = vld [vmem:[#allocation2 + $0xf0] sm:$0xff]
        %v1964 = vld [vmem:[#allocation2 + $0xf8] sm:$0xff]
        %s1965 = scalar_lea.vmem %s1, 512
        %v1966 = vld [vmem:[%s1965] sm:$0xff]
        %v1967 = vld [vmem:[%s1965 + $0x8] sm:$0xff]
        %v1968 = vld [vmem:[%s1965 + $0x10] sm:$0xff]
        %v1969 = vld [vmem:[%s1965 + $0x18] sm:$0xff]
        %v1970 = vld [vmem:[%s1965 + $0x20] sm:$0xff]
        %v1971 = vld [vmem:[%s1965 + $0x28] sm:$0xff]
        %v1972 = vld [vmem:[%s1965 + $0x30] sm:$0xff]
        %v1973 = vld [vmem:[%s1965 + $0x38] sm:$0xff]
        %v1974 = vld [vmem:[%s1965 + $0x40] sm:$0xff]
        %v1975 = vld [vmem:[%s1965 + $0x48] sm:$0xff]
        %v1976 = vld [vmem:[%s1965 + $0x50] sm:$0xff]
        %v1977 = vld [vmem:[%s1965 + $0x58] sm:$0xff]
        %v1978 = vld [vmem:[%s1965 + $0x60] sm:$0xff]
        %v1979 = vld [vmem:[%s1965 + $0x68] sm:$0xff]
        %v1980 = vld [vmem:[%s1965 + $0x70] sm:$0xff]
        %v1981 = vld [vmem:[%s1965 + $0x78] sm:$0xff]
        %1982 = vmatprep.subr.mxu0 0.0
        %1983 = vmatpush1.msra.mxu0 %v1966
        %1984 = vmatprep.subr.mxu0 0.0
        %1985 = vmatpush1.msra.mxu0 %v1967
        %1986 = vmatprep.subr.mxu0 0.0
        %1987 = vmatpush1.msra.mxu0 %v1968
        %1988 = vmatprep.subr.mxu0 0.0
        %1989 = vmatpush1.msra.mxu0 %v1969
        %1990 = vmatprep.subr.mxu0 0.0
        %1991 = vmatpush1.msra.mxu0 %v1970
        %1992 = vmatprep.subr.mxu0 0.0
        %1993 = vmatpush1.msra.mxu0 %v1971
        %1994 = vmatprep.subr.mxu0 0.0
        %1995 = vmatpush1.msra.mxu0 %v1972
        %1996 = vmatprep.subr.mxu0 0.0
        %1997 = vmatpush1.msra.mxu0 %v1973
        %1998 = vmatprep.subr.mxu0 0.0
        %1999 = vmatpush1.msra.mxu0 %v1974
        %2000 = vmatprep.subr.mxu0 0.0
        %2001 = vmatpush1.msra.mxu0 %v1975
        %2002 = vmatprep.subr.mxu0 0.0
        %2003 = vmatpush1.msra.mxu0 %v1976
        %2004 = vmatprep.subr.mxu0 0.0
        %2005 = vmatpush1.msra.mxu0 %v1977
        %2006 = vmatprep.subr.mxu0 0.0
        %2007 = vmatpush1.msra.mxu0 %v1978
        %2008 = vmatprep.subr.mxu0 0.0
        %2009 = vmatpush1.msra.mxu0 %v1979
        %2010 = vmatprep.subr.mxu0 0.0
        %2011 = vmatpush1.msra.mxu0 %v1980
        %2012 = vmatprep.subr.mxu0 0.0
        %2013 = vmatpush1.msra.mxu0 %v1981
        %2014 = vmatprep.subr.mxu0 0.0
        %2015 = vmatpush1.msra.mxu0 0.0
        %2016 = vmatprep.subr.mxu0 0.0
        %2017 = vmatpush1.msra.mxu0 0.0
        %2018 = vmatprep.subr.mxu0 0.0
        %2019 = vmatpush1.msra.mxu0 0.0
        %2020 = vmatprep.subr.mxu0 0.0
        %2021 = vmatpush1.msra.mxu0 0.0
        %2022 = vmatprep.subr.mxu0 0.0
        %2023 = vmatpush1.msra.mxu0 0.0
        %2024 = vmatprep.subr.mxu0 0.0
        %2025 = vmatpush1.msra.mxu0 0.0
        %2026 = vmatprep.subr.mxu0 0.0
        %2027 = vmatpush1.msra.mxu0 0.0
        %2028 = vmatprep.subr.mxu0 0.0
        %2029 = vmatpush1.msra.mxu0 0.0
        %2030 = vmatprep.subr.mxu0 0.0
        %2031 = vmatpush1.msra.mxu0 0.0
        %2032 = vmatprep.subr.mxu0 0.0
        %2033 = vmatpush1.msra.mxu0 0.0
        %2034 = vmatprep.subr.mxu0 0.0
        %2035 = vmatpush1.msra.mxu0 0.0
        %2036 = vmatprep.subr.mxu0 0.0
        %2037 = vmatpush1.msra.mxu0 0.0
        %2038 = vmatprep.subr.mxu0 0.0
        %2039 = vmatpush1.msra.mxu0 0.0
        %2040 = vmatprep.subr.mxu0 0.0
        %2041 = vmatpush1.msra.mxu0 0.0
        %2042 = vmatprep.subr.mxu0 0.0
        %2043 = vmatpush1.msra.mxu0 0.0
        %2044 = vmatprep.subr.mxu0 0.0
        %2045 = vmatpush1.msra.mxu0 0.0
        %2046 = vmatprep.mubr.f32.mxu0 0.0
        %2047 = vmatmul.mubr.f32.gmra.mrb[0].mxu0 %v691
        %v2048 = vpop.f32.mrb[0].mxu0
        %v2049 = vadd.f32 0.0, %v2048
        %v2050 = vpop.f32.mrb[0].mxu0
        %2051 = vmatprep.mubr.f32.mxu0 0.0
        %2052 = vmatmul.mubr.f32.gmra.mrb[0].mxu0 %v693
        %v2053 = vpop.f32.mrb[0].mxu0
        %v2054 = vadd.f32 0.0, %v2053
        %v2055 = vpop.f32.mrb[0].mxu0
        %2056 = vmatprep.mubr.f32.mxu0 0.0
        %2057 = vmatmul.mubr.f32.gmra.mrb[0].mxu0 %v696
        %v2058 = vpop.f32.mrb[0].mxu0
        %v2059 = vadd.f32 0.0, %v2058
        %v2060 = vpop.f32.mrb[0].mxu0
        %2061 = vmatprep.mubr.f32.mxu0 0.0
        %2062 = vmatmul.mubr.f32.gmra.mrb[0].mxu0 %v698
        %v2063 = vpop.f32.mrb[0].mxu0
        %v2064 = vadd.f32 0.0, %v2063
        %v2065 = vpop.f32.mrb[0].mxu0
        %2066 = vmatprep.mubr.f32.mxu0 0.0
        %2067 = vmatmul.mubr.f32.gmra.mrb[0].mxu0 %v701
        %v2068 = vpop.f32.mrb[0].mxu0
        %v2069 = vadd.f32 0.0, %v2068
        %v2070 = vpop.f32.mrb[0].mxu0
        %2071 = vmatprep.mubr.f32.mxu0 0.0
        %2072 = vmatmul.mubr.f32.gmra.mrb[0].mxu0 %v703
        %v2073 = vpop.f32.mrb[0].mxu0
        %v2074 = vadd.f32 0.0, %v2073
        %v2075 = vpop.f32.mrb[0].mxu0
        %2076 = vmatprep.mubr.f32.mxu0 0.0
        %2077 = vmatmul.mubr.f32.gmra.mrb[0].mxu0 %v706
        %v2078 = vpop.f32.mrb[0].mxu0
        %v2079 = vadd.f32 0.0, %v2078
        %v2080 = vpop.f32.mrb[0].mxu0
        %2081 = vmatprep.mubr.f32.mxu0 0.0
        %2082 = vmatmul.mubr.f32.gmra.mrb[0].mxu0 %v708
        %v2083 = vpop.f32.mrb[0].mxu0
        %v2084 = vadd.f32 0.0, %v2083
        %v2085 = vpop.f32.mrb[0].mxu0
        %2086 = vmatprep.mubr.f32.mxu0 0.0
        %2087 = vmatmul.mubr.f32.gmra.mrb[0].mxu0 %v711
        %v2088 = vpop.f32.mrb[0].mxu0
        %v2089 = vadd.f32 0.0, %v2088
        %v2090 = vpop.f32.mrb[0].mxu0
        %2091 = vmatprep.mubr.f32.mxu0 0.0
        %2092 = vmatmul.mubr.f32.gmra.mrb[0].mxu0 %v713
        %v2093 = vpop.f32.mrb[0].mxu0
        %v2094 = vadd.f32 0.0, %v2093
        %v2095 = vpop.f32.mrb[0].mxu0
        %2096 = vmatprep.mubr.f32.mxu0 0.0
        %2097 = vmatmul.mubr.f32.gmra.mrb[0].mxu0 %v716
        %v2098 = vpop.f32.mrb[0].mxu0
        %v2099 = vadd.f32 0.0, %v2098
        %v2100 = vpop.f32.mrb[0].mxu0
        %2101 = vmatprep.mubr.f32.mxu0 0.0
        %2102 = vmatmul.mubr.f32.gmra.mrb[0].mxu0 %v718
        %v2103 = vpop.f32.mrb[0].mxu0
        %v2104 = vadd.f32 0.0, %v2103
        %v2105 = vpop.f32.mrb[0].mxu0
        %2106 = vmatprep.mubr.f32.mxu0 0.0
        %2107 = vmatmul.mubr.f32.gmra.mrb[0].mxu0 %v721
        %v2108 = vpop.f32.mrb[0].mxu0
        %v2109 = vadd.f32 0.0, %v2108
        %v2110 = vpop.f32.mrb[0].mxu0
        %2111 = vmatprep.mubr.f32.mxu0 0.0
        %2112 = vmatmul.mubr.f32.gmra.mrb[0].mxu0 %v723
        %v2113 = vpop.f32.mrb[0].mxu0
        %v2114 = vadd.f32 0.0, %v2113
        %v2115 = vpop.f32.mrb[0].mxu0
        %2116 = vmatprep.mubr.f32.mxu0 0.0
        %2117 = vmatmul.mubr.f32.gmra.mrb[0].mxu0 %v726
        %v2118 = vpop.f32.mrb[0].mxu0
        %v2119 = vadd.f32 0.0, %v2118
        %v2120 = vpop.f32.mrb[0].mxu0
        %2121 = vmatprep.mubr.f32.mxu0 0.0
        %2122 = vmatmul.mubr.f32.gmra.mrb[0].mxu0 %v728
        %v2123 = vpop.f32.mrb[0].mxu0
        %v2124 = vadd.f32 0.0, %v2123
        %v2125 = vpop.f32.mrb[0].mxu0
        %2126 = vmatprep.mubr.f32.mxu0 0.0
        %2127 = vmatmul.mubr.f32.gmra.mrb[0].mxu0 %v731
        %v2128 = vpop.f32.mrb[0].mxu0
        %v2129 = vadd.f32 0.0, %v2128
        %v2130 = vpop.f32.mrb[0].mxu0
        %2131 = vmatprep.mubr.f32.mxu0 0.0
        %2132 = vmatmul.mubr.f32.gmra.mrb[0].mxu0 %v733
        %v2133 = vpop.f32.mrb[0].mxu0
        %v2134 = vadd.f32 0.0, %v2133
        %v2135 = vpop.f32.mrb[0].mxu0
        %2136 = vmatprep.mubr.f32.mxu0 0.0
        %2137 = vmatmul.mubr.f32.gmra.mrb[0].mxu0 %v736
        %v2138 = vpop.f32.mrb[0].mxu0
        %v2139 = vadd.f32 0.0, %v2138
        %v2140 = vpop.f32.mrb[0].mxu0
        %2141 = vmatprep.mubr.f32.mxu0 0.0
        %2142 = vmatmul.mubr.f32.gmra.mrb[0].mxu0 %v738
        %v2143 = vpop.f32.mrb[0].mxu0
        %v2144 = vadd.f32 0.0, %v2143
        %v2145 = vpop.f32.mrb[0].mxu0
        %2146 = vmatprep.mubr.f32.mxu0 0.0
        %2147 = vmatmul.mubr.f32.gmra.mrb[0].mxu0 %v741
        %v2148 = vpop.f32.mrb[0].mxu0
        %v2149 = vadd.f32 0.0, %v2148
        %v2150 = vpop.f32.mrb[0].mxu0
        %2151 = vmatprep.mubr.f32.mxu0 0.0
        %2152 = vmatmul.mubr.f32.gmra.mrb[0].mxu0 %v743
        %v2153 = vpop.f32.mrb[0].mxu0
        %v2154 = vadd.f32 0.0, %v2153
        %v2155 = vpop.f32.mrb[0].mxu0
        %2156 = vmatprep.mubr.f32.mxu0 0.0
        %2157 = vmatmul.mubr.f32.gmra.mrb[0].mxu0 %v746
        %v2158 = vpop.f32.mrb[0].mxu0
        %v2159 = vadd.f32 0.0, %v2158
        %v2160 = vpop.f32.mrb[0].mxu0
        %2161 = vmatprep.mubr.f32.mxu0 0.0
        %2162 = vmatmul.mubr.f32.gmra.mrb[0].mxu0 %v748
        %v2163 = vpop.f32.mrb[0].mxu0
        %v2164 = vadd.f32 0.0, %v2163
        %v2165 = vpop.f32.mrb[0].mxu0
        %2166 = vmatprep.mubr.f32.mxu0 0.0
        %2167 = vmatmul.mubr.f32.gmra.mrb[0].mxu0 %v751
        %v2168 = vpop.f32.mrb[0].mxu0
        %v2169 = vadd.f32 0.0, %v2168
        %v2170 = vpop.f32.mrb[0].mxu0
        %2171 = vmatprep.mubr.f32.mxu0 0.0
        %2172 = vmatmul.mubr.f32.gmra.mrb[0].mxu0 %v753
        %v2173 = vpop.f32.mrb[0].mxu0
        %v2174 = vadd.f32 0.0, %v2173
        %v2175 = vpop.f32.mrb[0].mxu0
        %2176 = vmatprep.mubr.f32.mxu0 0.0
        %2177 = vmatmul.mubr.f32.gmra.mrb[0].mxu0 %v756
        %v2178 = vpop.f32.mrb[0].mxu0
        %v2179 = vadd.f32 0.0, %v2178
        %v2180 = vpop.f32.mrb[0].mxu0
        %2181 = vmatprep.mubr.f32.mxu0 0.0
        %2182 = vmatmul.mubr.f32.gmra.mrb[0].mxu0 %v758
        %v2183 = vpop.f32.mrb[0].mxu0
        %v2184 = vadd.f32 0.0, %v2183
        %v2185 = vpop.f32.mrb[0].mxu0
        %2186 = vmatprep.mubr.f32.mxu0 0.0
        %2187 = vmatmul.mubr.f32.gmra.mrb[0].mxu0 %v761
        %v2188 = vpop.f32.mrb[0].mxu0
        %v2189 = vadd.f32 0.0, %v2188
        %v2190 = vpop.f32.mrb[0].mxu0
        %2191 = vmatprep.mubr.f32.mxu0 0.0
        %2192 = vmatmul.mubr.f32.gmra.mrb[0].mxu0 %v763
        %v2193 = vpop.f32.mrb[0].mxu0
        %v2194 = vadd.f32 0.0, %v2193
        %v2195 = vpop.f32.mrb[0].mxu0
        %2196 = vmatprep.mubr.f32.mxu0 0.0
        %2197 = vmatmul.mubr.f32.gmra.mrb[0].mxu0 %v1928
        %v2198 = vpop.f32.mrb[0].mxu0
        %v2199 = vadd.f32 0.0, %v2198
        %v2200 = vpop.f32.mrb[0].mxu0
        %2201 = vmatprep.mubr.f32.mxu0 0.0
        %2202 = vmatmul.mubr.f32.gmra.mrb[0].mxu0 %v1930
        %v2203 = vpop.f32.mrb[0].mxu0
        %v2204 = vadd.f32 0.0, %v2203
        %v2205 = vpop.f32.mrb[0].mxu0
        %2206 = vdwg.mxu0
        %v2207 = vadd.f32 %v1933, %v2049
        %v2208 = vadd.f32 %v1934, %v2054
        %v2209 = vadd.f32 %v1935, %v2059
        %v2210 = vadd.f32 %v1936, %v2064
        %v2211 = vadd.f32 %v1937, %v2069
        %v2212 = vadd.f32 %v1938, %v2074
        %v2213 = vadd.f32 %v1939, %v2079
        %v2214 = vadd.f32 %v1940, %v2084
        %v2215 = vadd.f32 %v1941, %v2089
        %v2216 = vadd.f32 %v1942, %v2094
        %v2217 = vadd.f32 %v1943, %v2099
        %v2218 = vadd.f32 %v1944, %v2104
        %v2219 = vadd.f32 %v1945, %v2109
        %v2220 = vadd.f32 %v1946, %v2114
        %v2221 = vadd.f32 %v1947, %v2119
        %v2222 = vadd.f32 %v1948, %v2124
        %v2223 = vadd.f32 %v1949, %v2129
        %v2224 = vadd.f32 %v1950, %v2134
        %v2225 = vadd.f32 %v1951, %v2139
        %v2226 = vadd.f32 %v1952, %v2144
        %v2227 = vadd.f32 %v1953, %v2149
        %v2228 = vadd.f32 %v1954, %v2154
        %v2229 = vadd.f32 %v1955, %v2159
        %v2230 = vadd.f32 %v1956, %v2164
        %v2231 = vadd.f32 %v1957, %v2169
        %v2232 = vadd.f32 %v1958, %v2174
        %v2233 = vadd.f32 %v1959, %v2179
        %v2234 = vadd.f32 %v1960, %v2184
        %v2235 = vadd.f32 %v1961, %v2189
        %v2236 = vadd.f32 %v1962, %v2194
        %v2237 = vadd.f32 %v1963, %v2199
        %v2238 = vadd.f32 %v1964, %v2204
        %2239 = vst [vmem:[#allocation2] sm:$0xff] %v2207
        %2240 = vst [vmem:[#allocation2 + $0x8] sm:$0xff] %v2208
        %2241 = vst [vmem:[#allocation2 + $0x10] sm:$0xff] %v2209
        %2242 = vst [vmem:[#allocation2 + $0x18] sm:$0xff] %v2210
        %2243 = vst [vmem:[#allocation2 + $0x20] sm:$0xff] %v2211
        %2244 = vst [vmem:[#allocation2 + $0x28] sm:$0xff] %v2212
        %2245 = vst [vmem:[#allocation2 + $0x30] sm:$0xff] %v2213
        %2246 = vst [vmem:[#allocation2 + $0x38] sm:$0xff] %v2214
        %2247 = vst [vmem:[#allocation2 + $0x40] sm:$0xff] %v2215
        %2248 = vst [vmem:[#allocation2 + $0x48] sm:$0xff] %v2216
        %2249 = vst [vmem:[#allocation2 + $0x50] sm:$0xff] %v2217
        %2250 = vst [vmem:[#allocation2 + $0x58] sm:$0xff] %v2218
        %2251 = vst [vmem:[#allocation2 + $0x60] sm:$0xff] %v2219
        %2252 = vst [vmem:[#allocation2 + $0x68] sm:$0xff] %v2220
        %2253 = vst [vmem:[#allocation2 + $0x70] sm:$0xff] %v2221
        %2254 = vst [vmem:[#allocation2 + $0x78] sm:$0xff] %v2222
        %2255 = vst [vmem:[#allocation2 + $0x80] sm:$0xff] %v2223
        %2256 = vst [vmem:[#allocation2 + $0x88] sm:$0xff] %v2224
        %2257 = vst [vmem:[#allocation2 + $0x90] sm:$0xff] %v2225
        %2258 = vst [vmem:[#allocation2 + $0x98] sm:$0xff] %v2226
        %2259 = vst [vmem:[#allocation2 + $0xa0] sm:$0xff] %v2227
        %2260 = vst [vmem:[#allocation2 + $0xa8] sm:$0xff] %v2228
        %2261 = vst [vmem:[#allocation2 + $0xb0] sm:$0xff] %v2229
        %2262 = vst [vmem:[#allocation2 + $0xb8] sm:$0xff] %v2230
        %2263 = vst [vmem:[#allocation2 + $0xc0] sm:$0xff] %v2231
        %2264 = vst [vmem:[#allocation2 + $0xc8] sm:$0xff] %v2232
        %2265 = vst [vmem:[#allocation2 + $0xd0] sm:$0xff] %v2233
        %2266 = vst [vmem:[#allocation2 + $0xd8] sm:$0xff] %v2234
        %2267 = vst [vmem:[#allocation2 + $0xe0] sm:$0xff] %v2235
        %2268 = vst [vmem:[#allocation2 + $0xe8] sm:$0xff] %v2236
        %2269 = vst [vmem:[#allocation2 + $0xf0] sm:$0xff] %v2237
        %2270 = vst [vmem:[#allocation2 + $0xf8] sm:$0xff] %v2238
        %v2271 = vrot.slane %v260, 2
        %v2272 = vrot.slane %v261, 2
        %v2273 = vsel %vm1134, %v2271, %v2272
        %v2274 = vrot.slane %v262, 2
        %v2275 = vsel %vm1134, %v2272, %v2274
        %v2278 = vld [vmem:[#allocation2] sm:$0xff]
        %v2279 = vld [vmem:[#allocation2 + $0x8] sm:$0xff]
        %v2280 = vld [vmem:[#allocation2 + $0x10] sm:$0xff]
        %v2281 = vld [vmem:[#allocation2 + $0x18] sm:$0xff]
        %v2282 = vld [vmem:[#allocation2 + $0x20] sm:$0xff]
        %v2283 = vld [vmem:[#allocation2 + $0x28] sm:$0xff]
        %v2284 = vld [vmem:[#allocation2 + $0x30] sm:$0xff]
        %v2285 = vld [vmem:[#allocation2 + $0x38] sm:$0xff]
        %v2286 = vld [vmem:[#allocation2 + $0x40] sm:$0xff]
        %v2287 = vld [vmem:[#allocation2 + $0x48] sm:$0xff]
        %v2288 = vld [vmem:[#allocation2 + $0x50] sm:$0xff]
        %v2289 = vld [vmem:[#allocation2 + $0x58] sm:$0xff]
        %v2290 = vld [vmem:[#allocation2 + $0x60] sm:$0xff]
        %v2291 = vld [vmem:[#allocation2 + $0x68] sm:$0xff]
        %v2292 = vld [vmem:[#allocation2 + $0x70] sm:$0xff]
        %v2293 = vld [vmem:[#allocation2 + $0x78] sm:$0xff]
        %v2294 = vld [vmem:[#allocation2 + $0x80] sm:$0xff]
        %v2295 = vld [vmem:[#allocation2 + $0x88] sm:$0xff]
        %v2296 = vld [vmem:[#allocation2 + $0x90] sm:$0xff]
        %v2297 = vld [vmem:[#allocation2 + $0x98] sm:$0xff]
        %v2298 = vld [vmem:[#allocation2 + $0xa0] sm:$0xff]
        %v2299 = vld [vmem:[#allocation2 + $0xa8] sm:$0xff]
        %v2300 = vld [vmem:[#allocation2 + $0xb0] sm:$0xff]
        %v2301 = vld [vmem:[#allocation2 + $0xb8] sm:$0xff]
        %v2302 = vld [vmem:[#allocation2 + $0xc0] sm:$0xff]
        %v2303 = vld [vmem:[#allocation2 + $0xc8] sm:$0xff]
        %v2304 = vld [vmem:[#allocation2 + $0xd0] sm:$0xff]
        %v2305 = vld [vmem:[#allocation2 + $0xd8] sm:$0xff]
        %v2306 = vld [vmem:[#allocation2 + $0xe0] sm:$0xff]
        %v2307 = vld [vmem:[#allocation2 + $0xe8] sm:$0xff]
        %v2308 = vld [vmem:[#allocation2 + $0xf0] sm:$0xff]
        %v2309 = vld [vmem:[#allocation2 + $0xf8] sm:$0xff]
        %s2310 = scalar_lea.vmem %s1, 640
        %v2311 = vld [vmem:[%s2310] sm:$0xff]
        %v2312 = vld [vmem:[%s2310 + $0x8] sm:$0xff]
        %v2313 = vld [vmem:[%s2310 + $0x10] sm:$0xff]
        %v2314 = vld [vmem:[%s2310 + $0x18] sm:$0xff]
        %v2315 = vld [vmem:[%s2310 + $0x20] sm:$0xff]
        %v2316 = vld [vmem:[%s2310 + $0x28] sm:$0xff]
        %v2317 = vld [vmem:[%s2310 + $0x30] sm:$0xff]
        %v2318 = vld [vmem:[%s2310 + $0x38] sm:$0xff]
        %v2319 = vld [vmem:[%s2310 + $0x40] sm:$0xff]
        %v2320 = vld [vmem:[%s2310 + $0x48] sm:$0xff]
        %v2321 = vld [vmem:[%s2310 + $0x50] sm:$0xff]
        %v2322 = vld [vmem:[%s2310 + $0x58] sm:$0xff]
        %v2323 = vld [vmem:[%s2310 + $0x60] sm:$0xff]
        %v2324 = vld [vmem:[%s2310 + $0x68] sm:$0xff]
        %v2325 = vld [vmem:[%s2310 + $0x70] sm:$0xff]
        %v2326 = vld [vmem:[%s2310 + $0x78] sm:$0xff]
        %2327 = vmatprep.subr.mxu0 0.0
        %2328 = vmatpush1.msra.mxu0 %v2311
        %2329 = vmatprep.subr.mxu0 0.0
        %2330 = vmatpush1.msra.mxu0 %v2312
        %2331 = vmatprep.subr.mxu0 0.0
        %2332 = vmatpush1.msra.mxu0 %v2313
        %2333 = vmatprep.subr.mxu0 0.0
        %2334 = vmatpush1.msra.mxu0 %v2314
        %2335 = vmatprep.subr.mxu0 0.0
        %2336 = vmatpush1.msra.mxu0 %v2315
        %2337 = vmatprep.subr.mxu0 0.0
        %2338 = vmatpush1.msra.mxu0 %v2316
        %2339 = vmatprep.subr.mxu0 0.0
        %2340 = vmatpush1.msra.mxu0 %v2317
        %2341 = vmatprep.subr.mxu0 0.0
        %2342 = vmatpush1.msra.mxu0 %v2318
        %2343 = vmatprep.subr.mxu0 0.0
        %2344 = vmatpush1.msra.mxu0 %v2319
        %2345 = vmatprep.subr.mxu0 0.0
        %2346 = vmatpush1.msra.mxu0 %v2320
        %2347 = vmatprep.subr.mxu0 0.0
        %2348 = vmatpush1.msra.mxu0 %v2321
        %2349 = vmatprep.subr.mxu0 0.0
        %2350 = vmatpush1.msra.mxu0 %v2322
        %2351 = vmatprep.subr.mxu0 0.0
        %2352 = vmatpush1.msra.mxu0 %v2323
        %2353 = vmatprep.subr.mxu0 0.0
        %2354 = vmatpush1.msra.mxu0 %v2324
        %2355 = vmatprep.subr.mxu0 0.0
        %2356 = vmatpush1.msra.mxu0 %v2325
        %2357 = vmatprep.subr.mxu0 0.0
        %2358 = vmatpush1.msra.mxu0 %v2326
        %2359 = vmatprep.subr.mxu0 0.0
        %2360 = vmatpush1.msra.mxu0 0.0
        %2361 = vmatprep.subr.mxu0 0.0
        %2362 = vmatpush1.msra.mxu0 0.0
        %2363 = vmatprep.subr.mxu0 0.0
        %2364 = vmatpush1.msra.mxu0 0.0
        %2365 = vmatprep.subr.mxu0 0.0
        %2366 = vmatpush1.msra.mxu0 0.0
        %2367 = vmatprep.subr.mxu0 0.0
        %2368 = vmatpush1.msra.mxu0 0.0
        %2369 = vmatprep.subr.mxu0 0.0
        %2370 = vmatpush1.msra.mxu0 0.0
        %2371 = vmatprep.subr.mxu0 0.0
        %2372 = vmatpush1.msra.mxu0 0.0
        %2373 = vmatprep.subr.mxu0 0.0
        %2374 = vmatpush1.msra.mxu0 0.0
        %2375 = vmatprep.subr.mxu0 0.0
        %2376 = vmatpush1.msra.mxu0 0.0
        %2377 = vmatprep.subr.mxu0 0.0
        %2378 = vmatpush1.msra.mxu0 0.0
        %2379 = vmatprep.subr.mxu0 0.0
        %2380 = vmatpush1.msra.mxu0 0.0
        %2381 = vmatprep.subr.mxu0 0.0
        %2382 = vmatpush1.msra.mxu0 0.0
        %2383 = vmatprep.subr.mxu0 0.0
        %2384 = vmatpush1.msra.mxu0 0.0
        %2385 = vmatprep.subr.mxu0 0.0
        %2386 = vmatpush1.msra.mxu0 0.0
        %2387 = vmatprep.subr.mxu0 0.0
        %2388 = vmatpush1.msra.mxu0 0.0
        %2389 = vmatprep.subr.mxu0 0.0
        %2390 = vmatpush1.msra.mxu0 0.0
        %2391 = vmatprep.mubr.f32.mxu0 0.0
        %2392 = vmatmul.mubr.f32.gmra.mrb[0].mxu0 %v1142
        %v2393 = vpop.f32.mrb[0].mxu0
        %v2394 = vadd.f32 0.0, %v2393
        %v2395 = vpop.f32.mrb[0].mxu0
        %2396 = vmatprep.mubr.f32.mxu0 0.0
        %2397 = vmatmul.mubr.f32.gmra.mrb[0].mxu0 %v1144
        %v2398 = vpop.f32.mrb[0].mxu0
        %v2399 = vadd.f32 0.0, %v2398
        %v2400 = vpop.f32.mrb[0].mxu0
        %2401 = vmatprep.mubr.f32.mxu0 0.0
        %2402 = vmatmul.mubr.f32.gmra.mrb[0].mxu0 %v1147
        %v2403 = vpop.f32.mrb[0].mxu0
        %v2404 = vadd.f32 0.0, %v2403
        %v2405 = vpop.f32.mrb[0].mxu0
        %2406 = vmatprep.mubr.f32.mxu0 0.0
        %2407 = vmatmul.mubr.f32.gmra.mrb[0].mxu0 %v1149
        %v2408 = vpop.f32.mrb[0].mxu0
        %v2409 = vadd.f32 0.0, %v2408
        %v2410 = vpop.f32.mrb[0].mxu0
        %2411 = vmatprep.mubr.f32.mxu0 0.0
        %2412 = vmatmul.mubr.f32.gmra.mrb[0].mxu0 %v1152
        %v2413 = vpop.f32.mrb[0].mxu0
        %v2414 = vadd.f32 0.0, %v2413
        %v2415 = vpop.f32.mrb[0].mxu0
        %2416 = vmatprep.mubr.f32.mxu0 0.0
        %2417 = vmatmul.mubr.f32.gmra.mrb[0].mxu0 %v1154
        %v2418 = vpop.f32.mrb[0].mxu0
        %v2419 = vadd.f32 0.0, %v2418
        %v2420 = vpop.f32.mrb[0].mxu0
        %2421 = vmatprep.mubr.f32.mxu0 0.0
        %2422 = vmatmul.mubr.f32.gmra.mrb[0].mxu0 %v1157
        %v2423 = vpop.f32.mrb[0].mxu0
        %v2424 = vadd.f32 0.0, %v2423
        %v2425 = vpop.f32.mrb[0].mxu0
        %2426 = vmatprep.mubr.f32.mxu0 0.0
        %2427 = vmatmul.mubr.f32.gmra.mrb[0].mxu0 %v1159
        %v2428 = vpop.f32.mrb[0].mxu0
        %v2429 = vadd.f32 0.0, %v2428
        %v2430 = vpop.f32.mrb[0].mxu0
        %2431 = vmatprep.mubr.f32.mxu0 0.0
        %2432 = vmatmul.mubr.f32.gmra.mrb[0].mxu0 %v1162
        %v2433 = vpop.f32.mrb[0].mxu0
        %v2434 = vadd.f32 0.0, %v2433
        %v2435 = vpop.f32.mrb[0].mxu0
        %2436 = vmatprep.mubr.f32.mxu0 0.0
        %2437 = vmatmul.mubr.f32.gmra.mrb[0].mxu0 %v1164
        %v2438 = vpop.f32.mrb[0].mxu0
        %v2439 = vadd.f32 0.0, %v2438
        %v2440 = vpop.f32.mrb[0].mxu0
        %2441 = vmatprep.mubr.f32.mxu0 0.0
        %2442 = vmatmul.mubr.f32.gmra.mrb[0].mxu0 %v1167
        %v2443 = vpop.f32.mrb[0].mxu0
        %v2444 = vadd.f32 0.0, %v2443
        %v2445 = vpop.f32.mrb[0].mxu0
        %2446 = vmatprep.mubr.f32.mxu0 0.0
        %2447 = vmatmul.mubr.f32.gmra.mrb[0].mxu0 %v1169
        %v2448 = vpop.f32.mrb[0].mxu0
        %v2449 = vadd.f32 0.0, %v2448
        %v2450 = vpop.f32.mrb[0].mxu0
        %2451 = vmatprep.mubr.f32.mxu0 0.0
        %2452 = vmatmul.mubr.f32.gmra.mrb[0].mxu0 %v1172
        %v2453 = vpop.f32.mrb[0].mxu0
        %v2454 = vadd.f32 0.0, %v2453
        %v2455 = vpop.f32.mrb[0].mxu0
        %2456 = vmatprep.mubr.f32.mxu0 0.0
        %2457 = vmatmul.mubr.f32.gmra.mrb[0].mxu0 %v1174
        %v2458 = vpop.f32.mrb[0].mxu0
        %v2459 = vadd.f32 0.0, %v2458
        %v2460 = vpop.f32.mrb[0].mxu0
        %2461 = vmatprep.mubr.f32.mxu0 0.0
        %2462 = vmatmul.mubr.f32.gmra.mrb[0].mxu0 %v1177
        %v2463 = vpop.f32.mrb[0].mxu0
        %v2464 = vadd.f32 0.0, %v2463
        %v2465 = vpop.f32.mrb[0].mxu0
        %2466 = vmatprep.mubr.f32.mxu0 0.0
        %2467 = vmatmul.mubr.f32.gmra.mrb[0].mxu0 %v1179
        %v2468 = vpop.f32.mrb[0].mxu0
        %v2469 = vadd.f32 0.0, %v2468
        %v2470 = vpop.f32.mrb[0].mxu0
        %2471 = vmatprep.mubr.f32.mxu0 0.0
        %2472 = vmatmul.mubr.f32.gmra.mrb[0].mxu0 %v1182
        %v2473 = vpop.f32.mrb[0].mxu0
        %v2474 = vadd.f32 0.0, %v2473
        %v2475 = vpop.f32.mrb[0].mxu0
        %2476 = vmatprep.mubr.f32.mxu0 0.0
        %2477 = vmatmul.mubr.f32.gmra.mrb[0].mxu0 %v1184
        %v2478 = vpop.f32.mrb[0].mxu0
        %v2479 = vadd.f32 0.0, %v2478
        %v2480 = vpop.f32.mrb[0].mxu0
        %2481 = vmatprep.mubr.f32.mxu0 0.0
        %2482 = vmatmul.mubr.f32.gmra.mrb[0].mxu0 %v1187
        %v2483 = vpop.f32.mrb[0].mxu0
        %v2484 = vadd.f32 0.0, %v2483
        %v2485 = vpop.f32.mrb[0].mxu0
        %2486 = vmatprep.mubr.f32.mxu0 0.0
        %2487 = vmatmul.mubr.f32.gmra.mrb[0].mxu0 %v1189
        %v2488 = vpop.f32.mrb[0].mxu0
        %v2489 = vadd.f32 0.0, %v2488
        %v2490 = vpop.f32.mrb[0].mxu0
        %2491 = vmatprep.mubr.f32.mxu0 0.0
        %2492 = vmatmul.mubr.f32.gmra.mrb[0].mxu0 %v1192
        %v2493 = vpop.f32.mrb[0].mxu0
        %v2494 = vadd.f32 0.0, %v2493
        %v2495 = vpop.f32.mrb[0].mxu0
        %2496 = vmatprep.mubr.f32.mxu0 0.0
        %2497 = vmatmul.mubr.f32.gmra.mrb[0].mxu0 %v1194
        %v2498 = vpop.f32.mrb[0].mxu0
        %v2499 = vadd.f32 0.0, %v2498
        %v2500 = vpop.f32.mrb[0].mxu0
        %2501 = vmatprep.mubr.f32.mxu0 0.0
        %2502 = vmatmul.mubr.f32.gmra.mrb[0].mxu0 %v1197
        %v2503 = vpop.f32.mrb[0].mxu0
        %v2504 = vadd.f32 0.0, %v2503
        %v2505 = vpop.f32.mrb[0].mxu0
        %2506 = vmatprep.mubr.f32.mxu0 0.0
        %2507 = vmatmul.mubr.f32.gmra.mrb[0].mxu0 %v1199
        %v2508 = vpop.f32.mrb[0].mxu0
        %v2509 = vadd.f32 0.0, %v2508
        %v2510 = vpop.f32.mrb[0].mxu0
        %2511 = vmatprep.mubr.f32.mxu0 0.0
        %2512 = vmatmul.mubr.f32.gmra.mrb[0].mxu0 %v1202
        %v2513 = vpop.f32.mrb[0].mxu0
        %v2514 = vadd.f32 0.0, %v2513
        %v2515 = vpop.f32.mrb[0].mxu0
        %2516 = vmatprep.mubr.f32.mxu0 0.0
        %2517 = vmatmul.mubr.f32.gmra.mrb[0].mxu0 %v1204
        %v2518 = vpop.f32.mrb[0].mxu0
        %v2519 = vadd.f32 0.0, %v2518
        %v2520 = vpop.f32.mrb[0].mxu0
        %2521 = vmatprep.mubr.f32.mxu0 0.0
        %2522 = vmatmul.mubr.f32.gmra.mrb[0].mxu0 %v1207
        %v2523 = vpop.f32.mrb[0].mxu0
        %v2524 = vadd.f32 0.0, %v2523
        %v2525 = vpop.f32.mrb[0].mxu0
        %2526 = vmatprep.mubr.f32.mxu0 0.0
        %2527 = vmatmul.mubr.f32.gmra.mrb[0].mxu0 %v1209
        %v2528 = vpop.f32.mrb[0].mxu0
        %v2529 = vadd.f32 0.0, %v2528
        %v2530 = vpop.f32.mrb[0].mxu0
        %2531 = vmatprep.mubr.f32.mxu0 0.0
        %2532 = vmatmul.mubr.f32.gmra.mrb[0].mxu0 %v1212
        %v2533 = vpop.f32.mrb[0].mxu0
        %v2534 = vadd.f32 0.0, %v2533
        %v2535 = vpop.f32.mrb[0].mxu0
        %2536 = vmatprep.mubr.f32.mxu0 0.0
        %2537 = vmatmul.mubr.f32.gmra.mrb[0].mxu0 %v1214
        %v2538 = vpop.f32.mrb[0].mxu0
        %v2539 = vadd.f32 0.0, %v2538
        %v2540 = vpop.f32.mrb[0].mxu0
        %2541 = vmatprep.mubr.f32.mxu0 0.0
        %2542 = vmatmul.mubr.f32.gmra.mrb[0].mxu0 %v2273
        %v2543 = vpop.f32.mrb[0].mxu0
        %v2544 = vadd.f32 0.0, %v2543
        %v2545 = vpop.f32.mrb[0].mxu0
        %2546 = vmatprep.mubr.f32.mxu0 0.0
        %2547 = vmatmul.mubr.f32.gmra.mrb[0].mxu0 %v2275
        %v2548 = vpop.f32.mrb[0].mxu0
        %v2549 = vadd.f32 0.0, %v2548
        %v2550 = vpop.f32.mrb[0].mxu0
        %2551 = vdwg.mxu0
        %v2552 = vadd.f32 %v2278, %v2394
        %v2553 = vadd.f32 %v2279, %v2399
        %v2554 = vadd.f32 %v2280, %v2404
        %v2555 = vadd.f32 %v2281, %v2409
        %v2556 = vadd.f32 %v2282, %v2414
        %v2557 = vadd.f32 %v2283, %v2419
        %v2558 = vadd.f32 %v2284, %v2424
        %v2559 = vadd.f32 %v2285, %v2429
        %v2560 = vadd.f32 %v2286, %v2434
        %v2561 = vadd.f32 %v2287, %v2439
        %v2562 = vadd.f32 %v2288, %v2444
        %v2563 = vadd.f32 %v2289, %v2449
        %v2564 = vadd.f32 %v2290, %v2454
        %v2565 = vadd.f32 %v2291, %v2459
        %v2566 = vadd.f32 %v2292, %v2464
        %v2567 = vadd.f32 %v2293, %v2469
        %v2568 = vadd.f32 %v2294, %v2474
        %v2569 = vadd.f32 %v2295, %v2479
        %v2570 = vadd.f32 %v2296, %v2484
        %v2571 = vadd.f32 %v2297, %v2489
        %v2572 = vadd.f32 %v2298, %v2494
        %v2573 = vadd.f32 %v2299, %v2499
        %v2574 = vadd.f32 %v2300, %v2504
        %v2575 = vadd.f32 %v2301, %v2509
        %v2576 = vadd.f32 %v2302, %v2514
        %v2577 = vadd.f32 %v2303, %v2519
        %v2578 = vadd.f32 %v2304, %v2524
        %v2579 = vadd.f32 %v2305, %v2529
        %v2580 = vadd.f32 %v2306, %v2534
        %v2581 = vadd.f32 %v2307, %v2539
        %v2582 = vadd.f32 %v2308, %v2544
        %v2583 = vadd.f32 %v2309, %v2549
        %2584 = vst [vmem:[#allocation2] sm:$0xff] %v2552
        %2585 = vst [vmem:[#allocation2 + $0x8] sm:$0xff] %v2553
        %2586 = vst [vmem:[#allocation2 + $0x10] sm:$0xff] %v2554
        %2587 = vst [vmem:[#allocation2 + $0x18] sm:$0xff] %v2555
        %2588 = vst [vmem:[#allocation2 + $0x20] sm:$0xff] %v2556
        %2589 = vst [vmem:[#allocation2 + $0x28] sm:$0xff] %v2557
        %2590 = vst [vmem:[#allocation2 + $0x30] sm:$0xff] %v2558
        %2591 = vst [vmem:[#allocation2 + $0x38] sm:$0xff] %v2559
        %2592 = vst [vmem:[#allocation2 + $0x40] sm:$0xff] %v2560
        %2593 = vst [vmem:[#allocation2 + $0x48] sm:$0xff] %v2561
        %2594 = vst [vmem:[#allocation2 + $0x50] sm:$0xff] %v2562
        %2595 = vst [vmem:[#allocation2 + $0x58] sm:$0xff] %v2563
        %2596 = vst [vmem:[#allocation2 + $0x60] sm:$0xff] %v2564
        %2597 = vst [vmem:[#allocation2 + $0x68] sm:$0xff] %v2565
        %2598 = vst [vmem:[#allocation2 + $0x70] sm:$0xff] %v2566
        %2599 = vst [vmem:[#allocation2 + $0x78] sm:$0xff] %v2567
        %2600 = vst [vmem:[#allocation2 + $0x80] sm:$0xff] %v2568
        %2601 = vst [vmem:[#allocation2 + $0x88] sm:$0xff] %v2569
        %2602 = vst [vmem:[#allocation2 + $0x90] sm:$0xff] %v2570
        %2603 = vst [vmem:[#allocation2 + $0x98] sm:$0xff] %v2571
        %2604 = vst [vmem:[#allocation2 + $0xa0] sm:$0xff] %v2572
        %2605 = vst [vmem:[#allocation2 + $0xa8] sm:$0xff] %v2573
        %2606 = vst [vmem:[#allocation2 + $0xb0] sm:$0xff] %v2574
        %2607 = vst [vmem:[#allocation2 + $0xb8] sm:$0xff] %v2575
        %2608 = vst [vmem:[#allocation2 + $0xc0] sm:$0xff] %v2576
        %2609 = vst [vmem:[#allocation2 + $0xc8] sm:$0xff] %v2577
        %2610 = vst [vmem:[#allocation2 + $0xd0] sm:$0xff] %v2578
        %2611 = vst [vmem:[#allocation2 + $0xd8] sm:$0xff] %v2579
        %2612 = vst [vmem:[#allocation2 + $0xe0] sm:$0xff] %v2580
        %2613 = vst [vmem:[#allocation2 + $0xe8] sm:$0xff] %v2581
        %2614 = vst [vmem:[#allocation2 + $0xf0] sm:$0xff] %v2582
        %2615 = vst [vmem:[#allocation2 + $0xf8] sm:$0xff] %v2583
        %v2616 = vld [vmem:[#allocation2] sm:$0xff]
        %v2617 = vld [vmem:[#allocation2 + $0x8] sm:$0xff]
        %v2618 = vld [vmem:[#allocation2 + $0x10] sm:$0xff]
        %v2619 = vld [vmem:[#allocation2 + $0x18] sm:$0xff]
        %v2620 = vld [vmem:[#allocation2 + $0x20] sm:$0xff]
        %v2621 = vld [vmem:[#allocation2 + $0x28] sm:$0xff]
        %v2622 = vld [vmem:[#allocation2 + $0x30] sm:$0xff]
        %v2623 = vld [vmem:[#allocation2 + $0x38] sm:$0xff]
        %v2624 = vld [vmem:[#allocation2 + $0x40] sm:$0xff]
        %v2625 = vld [vmem:[#allocation2 + $0x48] sm:$0xff]
        %v2626 = vld [vmem:[#allocation2 + $0x50] sm:$0xff]
        %v2627 = vld [vmem:[#allocation2 + $0x58] sm:$0xff]
        %v2628 = vld [vmem:[#allocation2 + $0x60] sm:$0xff]
        %v2629 = vld [vmem:[#allocation2 + $0x68] sm:$0xff]
        %v2630 = vld [vmem:[#allocation2 + $0x70] sm:$0xff]
        %v2631 = vld [vmem:[#allocation2 + $0x78] sm:$0xff]
        %v2632 = vld [vmem:[#allocation2 + $0x80] sm:$0xff]
        %v2633 = vld [vmem:[#allocation2 + $0x88] sm:$0xff]
        %v2634 = vld [vmem:[#allocation2 + $0x90] sm:$0xff]
        %v2635 = vld [vmem:[#allocation2 + $0x98] sm:$0xff]
        %v2636 = vld [vmem:[#allocation2 + $0xa0] sm:$0xff]
        %v2637 = vld [vmem:[#allocation2 + $0xa8] sm:$0xff]
        %v2638 = vld [vmem:[#allocation2 + $0xb0] sm:$0xff]
        %v2639 = vld [vmem:[#allocation2 + $0xb8] sm:$0xff]
        %v2640 = vld [vmem:[#allocation2 + $0xc0] sm:$0xff]
        %v2641 = vld [vmem:[#allocation2 + $0xc8] sm:$0xff]
        %v2642 = vld [vmem:[#allocation2 + $0xd0] sm:$0xff]
        %v2643 = vld [vmem:[#allocation2 + $0xd8] sm:$0xff]
        %v2644 = vld [vmem:[#allocation2 + $0xe0] sm:$0xff]
        %v2645 = vld [vmem:[#allocation2 + $0xe8] sm:$0xff]
        %v2646 = vld [vmem:[#allocation2 + $0xf0] sm:$0xff]
        %v2647 = vld [vmem:[#allocation2 + $0xf8] sm:$0xff]
        %s2648 = scalar_lea.vmem %s1, 768
        %v2649 = vld [vmem:[%s2648] sm:$0xff]
        %v2650 = vld [vmem:[%s2648 + $0x8] sm:$0xff]
        %v2651 = vld [vmem:[%s2648 + $0x10] sm:$0xff]
        %v2652 = vld [vmem:[%s2648 + $0x18] sm:$0xff]
        %v2653 = vld [vmem:[%s2648 + $0x20] sm:$0xff]
        %v2654 = vld [vmem:[%s2648 + $0x28] sm:$0xff]
        %v2655 = vld [vmem:[%s2648 + $0x30] sm:$0xff]
        %v2656 = vld [vmem:[%s2648 + $0x38] sm:$0xff]
        %v2657 = vld [vmem:[%s2648 + $0x40] sm:$0xff]
        %v2658 = vld [vmem:[%s2648 + $0x48] sm:$0xff]
        %v2659 = vld [vmem:[%s2648 + $0x50] sm:$0xff]
        %v2660 = vld [vmem:[%s2648 + $0x58] sm:$0xff]
        %v2661 = vld [vmem:[%s2648 + $0x60] sm:$0xff]
        %v2662 = vld [vmem:[%s2648 + $0x68] sm:$0xff]
        %v2663 = vld [vmem:[%s2648 + $0x70] sm:$0xff]
        %v2664 = vld [vmem:[%s2648 + $0x78] sm:$0xff]
        %2665 = vmatprep.subr.mxu0 0.0
        %2666 = vmatpush1.msra.mxu0 %v2649
        %2667 = vmatprep.subr.mxu0 0.0
        %2668 = vmatpush1.msra.mxu0 %v2650
        %2669 = vmatprep.subr.mxu0 0.0
        %2670 = vmatpush1.msra.mxu0 %v2651
        %2671 = vmatprep.subr.mxu0 0.0
        %2672 = vmatpush1.msra.mxu0 %v2652
        %2673 = vmatprep.subr.mxu0 0.0
        %2674 = vmatpush1.msra.mxu0 %v2653
        %2675 = vmatprep.subr.mxu0 0.0
        %2676 = vmatpush1.msra.mxu0 %v2654
        %2677 = vmatprep.subr.mxu0 0.0
        %2678 = vmatpush1.msra.mxu0 %v2655
        %2679 = vmatprep.subr.mxu0 0.0
        %2680 = vmatpush1.msra.mxu0 %v2656
        %2681 = vmatprep.subr.mxu0 0.0
        %2682 = vmatpush1.msra.mxu0 %v2657
        %2683 = vmatprep.subr.mxu0 0.0
        %2684 = vmatpush1.msra.mxu0 %v2658
        %2685 = vmatprep.subr.mxu0 0.0
        %2686 = vmatpush1.msra.mxu0 %v2659
        %2687 = vmatprep.subr.mxu0 0.0
        %2688 = vmatpush1.msra.mxu0 %v2660
        %2689 = vmatprep.subr.mxu0 0.0
        %2690 = vmatpush1.msra.mxu0 %v2661
        %2691 = vmatprep.subr.mxu0 0.0
        %2692 = vmatpush1.msra.mxu0 %v2662
        %2693 = vmatprep.subr.mxu0 0.0
        %2694 = vmatpush1.msra.mxu0 %v2663
        %2695 = vmatprep.subr.mxu0 0.0
        %2696 = vmatpush1.msra.mxu0 %v2664
        %2697 = vmatprep.subr.mxu0 0.0
        %2698 = vmatpush1.msra.mxu0 0.0
        %2699 = vmatprep.subr.mxu0 0.0
        %2700 = vmatpush1.msra.mxu0 0.0
        %2701 = vmatprep.subr.mxu0 0.0
        %2702 = vmatpush1.msra.mxu0 0.0
        %2703 = vmatprep.subr.mxu0 0.0
        %2704 = vmatpush1.msra.mxu0 0.0
        %2705 = vmatprep.subr.mxu0 0.0
        %2706 = vmatpush1.msra.mxu0 0.0
        %2707 = vmatprep.subr.mxu0 0.0
        %2708 = vmatpush1.msra.mxu0 0.0
        %2709 = vmatprep.subr.mxu0 0.0
        %2710 = vmatpush1.msra.mxu0 0.0
        %2711 = vmatprep.subr.mxu0 0.0
        %2712 = vmatpush1.msra.mxu0 0.0
        %2713 = vmatprep.subr.mxu0 0.0
        %2714 = vmatpush1.msra.mxu0 0.0
        %2715 = vmatprep.subr.mxu0 0.0
        %2716 = vmatpush1.msra.mxu0 0.0
        %2717 = vmatprep.subr.mxu0 0.0
        %2718 = vmatpush1.msra.mxu0 0.0
        %2719 = vmatprep.subr.mxu0 0.0
        %2720 = vmatpush1.msra.mxu0 0.0
        %2721 = vmatprep.subr.mxu0 0.0
        %2722 = vmatpush1.msra.mxu0 0.0
        %2723 = vmatprep.subr.mxu0 0.0
        %2724 = vmatpush1.msra.mxu0 0.0
        %2725 = vmatprep.subr.mxu0 0.0
        %2726 = vmatpush1.msra.mxu0 0.0
        %2727 = vmatprep.subr.mxu0 0.0
        %2728 = vmatpush1.msra.mxu0 0.0
        %2729 = vmatprep.mubr.f32.mxu0 0.0
        %2730 = vmatmul.mubr.f32.gmra.mrb[0].mxu0 %v218
        %v2731 = vpop.f32.mrb[0].mxu0
        %v2732 = vadd.f32 0.0, %v2731
        %v2733 = vpop.f32.mrb[0].mxu0
        %2734 = vmatprep.mubr.f32.mxu0 0.0
        %2735 = vmatmul.mubr.f32.gmra.mrb[0].mxu0 %v219
        %v2736 = vpop.f32.mrb[0].mxu0
        %v2737 = vadd.f32 0.0, %v2736
        %v2738 = vpop.f32.mrb[0].mxu0
        %2739 = vmatprep.mubr.f32.mxu0 0.0
        %2740 = vmatmul.mubr.f32.gmra.mrb[0].mxu0 %v221
        %v2741 = vpop.f32.mrb[0].mxu0
        %v2742 = vadd.f32 0.0, %v2741
        %v2743 = vpop.f32.mrb[0].mxu0
        %2744 = vmatprep.mubr.f32.mxu0 0.0
        %2745 = vmatmul.mubr.f32.gmra.mrb[0].mxu0 %v222
        %v2746 = vpop.f32.mrb[0].mxu0
        %v2747 = vadd.f32 0.0, %v2746
        %v2748 = vpop.f32.mrb[0].mxu0
        %2749 = vmatprep.mubr.f32.mxu0 0.0
        %2750 = vmatmul.mubr.f32.gmra.mrb[0].mxu0 %v224
        %v2751 = vpop.f32.mrb[0].mxu0
        %v2752 = vadd.f32 0.0, %v2751
        %v2753 = vpop.f32.mrb[0].mxu0
        %2754 = vmatprep.mubr.f32.mxu0 0.0
        %2755 = vmatmul.mubr.f32.gmra.mrb[0].mxu0 %v225
        %v2756 = vpop.f32.mrb[0].mxu0
        %v2757 = vadd.f32 0.0, %v2756
        %v2758 = vpop.f32.mrb[0].mxu0
        %2759 = vmatprep.mubr.f32.mxu0 0.0
        %2760 = vmatmul.mubr.f32.gmra.mrb[0].mxu0 %v227
        %v2761 = vpop.f32.mrb[0].mxu0
        %v2762 = vadd.f32 0.0, %v2761
        %v2763 = vpop.f32.mrb[0].mxu0
        %2764 = vmatprep.mubr.f32.mxu0 0.0
        %2765 = vmatmul.mubr.f32.gmra.mrb[0].mxu0 %v228
        %v2766 = vpop.f32.mrb[0].mxu0
        %v2767 = vadd.f32 0.0, %v2766
        %v2768 = vpop.f32.mrb[0].mxu0
        %2769 = vmatprep.mubr.f32.mxu0 0.0
        %2770 = vmatmul.mubr.f32.gmra.mrb[0].mxu0 %v230
        %v2771 = vpop.f32.mrb[0].mxu0
        %v2772 = vadd.f32 0.0, %v2771
        %v2773 = vpop.f32.mrb[0].mxu0
        %2774 = vmatprep.mubr.f32.mxu0 0.0
        %2775 = vmatmul.mubr.f32.gmra.mrb[0].mxu0 %v231
        %v2776 = vpop.f32.mrb[0].mxu0
        %v2777 = vadd.f32 0.0, %v2776
        %v2778 = vpop.f32.mrb[0].mxu0
        %2779 = vmatprep.mubr.f32.mxu0 0.0
        %2780 = vmatmul.mubr.f32.gmra.mrb[0].mxu0 %v233
        %v2781 = vpop.f32.mrb[0].mxu0
        %v2782 = vadd.f32 0.0, %v2781
        %v2783 = vpop.f32.mrb[0].mxu0
        %2784 = vmatprep.mubr.f32.mxu0 0.0
        %2785 = vmatmul.mubr.f32.gmra.mrb[0].mxu0 %v234
        %v2786 = vpop.f32.mrb[0].mxu0
        %v2787 = vadd.f32 0.0, %v2786
        %v2788 = vpop.f32.mrb[0].mxu0
        %2789 = vmatprep.mubr.f32.mxu0 0.0
        %2790 = vmatmul.mubr.f32.gmra.mrb[0].mxu0 %v236
        %v2791 = vpop.f32.mrb[0].mxu0
        %v2792 = vadd.f32 0.0, %v2791
        %v2793 = vpop.f32.mrb[0].mxu0
        %2794 = vmatprep.mubr.f32.mxu0 0.0
        %2795 = vmatmul.mubr.f32.gmra.mrb[0].mxu0 %v237
        %v2796 = vpop.f32.mrb[0].mxu0
        %v2797 = vadd.f32 0.0, %v2796
        %v2798 = vpop.f32.mrb[0].mxu0
        %2799 = vmatprep.mubr.f32.mxu0 0.0
        %2800 = vmatmul.mubr.f32.gmra.mrb[0].mxu0 %v239
        %v2801 = vpop.f32.mrb[0].mxu0
        %v2802 = vadd.f32 0.0, %v2801
        %v2803 = vpop.f32.mrb[0].mxu0
        %2804 = vmatprep.mubr.f32.mxu0 0.0
        %2805 = vmatmul.mubr.f32.gmra.mrb[0].mxu0 %v240
        %v2806 = vpop.f32.mrb[0].mxu0
        %v2807 = vadd.f32 0.0, %v2806
        %v2808 = vpop.f32.mrb[0].mxu0
        %2809 = vmatprep.mubr.f32.mxu0 0.0
        %2810 = vmatmul.mubr.f32.gmra.mrb[0].mxu0 %v242
        %v2811 = vpop.f32.mrb[0].mxu0
        %v2812 = vadd.f32 0.0, %v2811
        %v2813 = vpop.f32.mrb[0].mxu0
        %2814 = vmatprep.mubr.f32.mxu0 0.0
        %2815 = vmatmul.mubr.f32.gmra.mrb[0].mxu0 %v243
        %v2816 = vpop.f32.mrb[0].mxu0
        %v2817 = vadd.f32 0.0, %v2816
        %v2818 = vpop.f32.mrb[0].mxu0
        %2819 = vmatprep.mubr.f32.mxu0 0.0
        %2820 = vmatmul.mubr.f32.gmra.mrb[0].mxu0 %v245
        %v2821 = vpop.f32.mrb[0].mxu0
        %v2822 = vadd.f32 0.0, %v2821
        %v2823 = vpop.f32.mrb[0].mxu0
        %2824 = vmatprep.mubr.f32.mxu0 0.0
        %2825 = vmatmul.mubr.f32.gmra.mrb[0].mxu0 %v246
        %v2826 = vpop.f32.mrb[0].mxu0
        %v2827 = vadd.f32 0.0, %v2826
        %v2828 = vpop.f32.mrb[0].mxu0
        %2829 = vmatprep.mubr.f32.mxu0 0.0
        %2830 = vmatmul.mubr.f32.gmra.mrb[0].mxu0 %v248
        %v2831 = vpop.f32.mrb[0].mxu0
        %v2832 = vadd.f32 0.0, %v2831
        %v2833 = vpop.f32.mrb[0].mxu0
        %2834 = vmatprep.mubr.f32.mxu0 0.0
        %2835 = vmatmul.mubr.f32.gmra.mrb[0].mxu0 %v249
        %v2836 = vpop.f32.mrb[0].mxu0
        %v2837 = vadd.f32 0.0, %v2836
        %v2838 = vpop.f32.mrb[0].mxu0
        %2839 = vmatprep.mubr.f32.mxu0 0.0
        %2840 = vmatmul.mubr.f32.gmra.mrb[0].mxu0 %v251
        %v2841 = vpop.f32.mrb[0].mxu0
        %v2842 = vadd.f32 0.0, %v2841
        %v2843 = vpop.f32.mrb[0].mxu0
        %2844 = vmatprep.mubr.f32.mxu0 0.0
        %2845 = vmatmul.mubr.f32.gmra.mrb[0].mxu0 %v252
        %v2846 = vpop.f32.mrb[0].mxu0
        %v2847 = vadd.f32 0.0, %v2846
        %v2848 = vpop.f32.mrb[0].mxu0
        %2849 = vmatprep.mubr.f32.mxu0 0.0
        %2850 = vmatmul.mubr.f32.gmra.mrb[0].mxu0 %v254
        %v2851 = vpop.f32.mrb[0].mxu0
        %v2852 = vadd.f32 0.0, %v2851
        %v2853 = vpop.f32.mrb[0].mxu0
        %2854 = vmatprep.mubr.f32.mxu0 0.0
        %2855 = vmatmul.mubr.f32.gmra.mrb[0].mxu0 %v255
        %v2856 = vpop.f32.mrb[0].mxu0
        %v2857 = vadd.f32 0.0, %v2856
        %v2858 = vpop.f32.mrb[0].mxu0
        %2859 = vmatprep.mubr.f32.mxu0 0.0
        %2860 = vmatmul.mubr.f32.gmra.mrb[0].mxu0 %v257
        %v2861 = vpop.f32.mrb[0].mxu0
        %v2862 = vadd.f32 0.0, %v2861
        %v2863 = vpop.f32.mrb[0].mxu0
        %2864 = vmatprep.mubr.f32.mxu0 0.0
        %2865 = vmatmul.mubr.f32.gmra.mrb[0].mxu0 %v258
        %v2866 = vpop.f32.mrb[0].mxu0
        %v2867 = vadd.f32 0.0, %v2866
        %v2868 = vpop.f32.mrb[0].mxu0
        %2869 = vmatprep.mubr.f32.mxu0 0.0
        %2870 = vmatmul.mubr.f32.gmra.mrb[0].mxu0 %v260
        %v2871 = vpop.f32.mrb[0].mxu0
        %v2872 = vadd.f32 0.0, %v2871
        %v2873 = vpop.f32.mrb[0].mxu0
        %2874 = vmatprep.mubr.f32.mxu0 0.0
        %2875 = vmatmul.mubr.f32.gmra.mrb[0].mxu0 %v261
        %v2876 = vpop.f32.mrb[0].mxu0
        %v2877 = vadd.f32 0.0, %v2876
        %v2878 = vpop.f32.mrb[0].mxu0
        %2879 = vmatprep.mubr.f32.mxu0 0.0
        %2880 = vmatmul.mubr.f32.gmra.mrb[0].mxu0 %v263
        %v2881 = vpop.f32.mrb[0].mxu0
        %v2882 = vadd.f32 0.0, %v2881
        %v2883 = vpop.f32.mrb[0].mxu0
        %2884 = vmatprep.mubr.f32.mxu0 0.0
        %2885 = vmatmul.mubr.f32.gmra.mrb[0].mxu0 %v264
        %v2886 = vpop.f32.mrb[0].mxu0
        %v2887 = vadd.f32 0.0, %v2886
        %v2888 = vpop.f32.mrb[0].mxu0
        %2889 = vdwg.mxu0
        %v2890 = vadd.f32 %v2616, %v2732
        %v2891 = vadd.f32 %v2617, %v2737
        %v2892 = vadd.f32 %v2618, %v2742
        %v2893 = vadd.f32 %v2619, %v2747
        %v2894 = vadd.f32 %v2620, %v2752
        %v2895 = vadd.f32 %v2621, %v2757
        %v2896 = vadd.f32 %v2622, %v2762
        %v2897 = vadd.f32 %v2623, %v2767
        %v2898 = vadd.f32 %v2624, %v2772
        %v2899 = vadd.f32 %v2625, %v2777
        %v2900 = vadd.f32 %v2626, %v2782
        %v2901 = vadd.f32 %v2627, %v2787
        %v2902 = vadd.f32 %v2628, %v2792
        %v2903 = vadd.f32 %v2629, %v2797
        %v2904 = vadd.f32 %v2630, %v2802
        %v2905 = vadd.f32 %v2631, %v2807
        %v2906 = vadd.f32 %v2632, %v2812
        %v2907 = vadd.f32 %v2633, %v2817
        %v2908 = vadd.f32 %v2634, %v2822
        %v2909 = vadd.f32 %v2635, %v2827
        %v2910 = vadd.f32 %v2636, %v2832
        %v2911 = vadd.f32 %v2637, %v2837
        %v2912 = vadd.f32 %v2638, %v2842
        %v2913 = vadd.f32 %v2639, %v2847
        %v2914 = vadd.f32 %v2640, %v2852
        %v2915 = vadd.f32 %v2641, %v2857
        %v2916 = vadd.f32 %v2642, %v2862
        %v2917 = vadd.f32 %v2643, %v2867
        %v2918 = vadd.f32 %v2644, %v2872
        %v2919 = vadd.f32 %v2645, %v2877
        %v2920 = vadd.f32 %v2646, %v2882
        %v2921 = vadd.f32 %v2647, %v2887
        %2922 = vst [vmem:[#allocation2] sm:$0xff] %v2890
        %2923 = vst [vmem:[#allocation2 + $0x8] sm:$0xff] %v2891
        %2924 = vst [vmem:[#allocation2 + $0x10] sm:$0xff] %v2892
        %2925 = vst [vmem:[#allocation2 + $0x18] sm:$0xff] %v2893
        %2926 = vst [vmem:[#allocation2 + $0x20] sm:$0xff] %v2894
        %2927 = vst [vmem:[#allocation2 + $0x28] sm:$0xff] %v2895
        %2928 = vst [vmem:[#allocation2 + $0x30] sm:$0xff] %v2896
        %2929 = vst [vmem:[#allocation2 + $0x38] sm:$0xff] %v2897
        %2930 = vst [vmem:[#allocation2 + $0x40] sm:$0xff] %v2898
        %2931 = vst [vmem:[#allocation2 + $0x48] sm:$0xff] %v2899
        %2932 = vst [vmem:[#allocation2 + $0x50] sm:$0xff] %v2900
        %2933 = vst [vmem:[#allocation2 + $0x58] sm:$0xff] %v2901
        %2934 = vst [vmem:[#allocation2 + $0x60] sm:$0xff] %v2902
        %2935 = vst [vmem:[#allocation2 + $0x68] sm:$0xff] %v2903
        %2936 = vst [vmem:[#allocation2 + $0x70] sm:$0xff] %v2904
        %2937 = vst [vmem:[#allocation2 + $0x78] sm:$0xff] %v2905
        %2938 = vst [vmem:[#allocation2 + $0x80] sm:$0xff] %v2906
        %2939 = vst [vmem:[#allocation2 + $0x88] sm:$0xff] %v2907
        %2940 = vst [vmem:[#allocation2 + $0x90] sm:$0xff] %v2908
        %2941 = vst [vmem:[#allocation2 + $0x98] sm:$0xff] %v2909
        %2942 = vst [vmem:[#allocation2 + $0xa0] sm:$0xff] %v2910
        %2943 = vst [vmem:[#allocation2 + $0xa8] sm:$0xff] %v2911
        %2944 = vst [vmem:[#allocation2 + $0xb0] sm:$0xff] %v2912
        %2945 = vst [vmem:[#allocation2 + $0xb8] sm:$0xff] %v2913
        %2946 = vst [vmem:[#allocation2 + $0xc0] sm:$0xff] %v2914
        %2947 = vst [vmem:[#allocation2 + $0xc8] sm:$0xff] %v2915
        %2948 = vst [vmem:[#allocation2 + $0xd0] sm:$0xff] %v2916
        %2949 = vst [vmem:[#allocation2 + $0xd8] sm:$0xff] %v2917
        %2950 = vst [vmem:[#allocation2 + $0xe0] sm:$0xff] %v2918
        %2951 = vst [vmem:[#allocation2 + $0xe8] sm:$0xff] %v2919
        %2952 = vst [vmem:[#allocation2 + $0xf0] sm:$0xff] %v2920
        %2953 = vst [vmem:[#allocation2 + $0xf8] sm:$0xff] %v2921
        %v2957 = vrot.slane %v263, 1
        %v2958 = vrot.slane %v264, 1
        %v2959 = vsel %vm683, %v2957, %v2958
        %v2960 = vrot.slane %v265, 1
        %v2961 = vsel %vm683, %v2958, %v2960
        %v2964 = vld [vmem:[#allocation2] sm:$0xff]
        %v2965 = vld [vmem:[#allocation2 + $0x8] sm:$0xff]
        %v2966 = vld [vmem:[#allocation2 + $0x10] sm:$0xff]
        %v2967 = vld [vmem:[#allocation2 + $0x18] sm:$0xff]
        %v2968 = vld [vmem:[#allocation2 + $0x20] sm:$0xff]
        %v2969 = vld [vmem:[#allocation2 + $0x28] sm:$0xff]
        %v2970 = vld [vmem:[#allocation2 + $0x30] sm:$0xff]
        %v2971 = vld [vmem:[#allocation2 + $0x38] sm:$0xff]
        %v2972 = vld [vmem:[#allocation2 + $0x40] sm:$0xff]
        %v2973 = vld [vmem:[#allocation2 + $0x48] sm:$0xff]
        %v2974 = vld [vmem:[#allocation2 + $0x50] sm:$0xff]
        %v2975 = vld [vmem:[#allocation2 + $0x58] sm:$0xff]
        %v2976 = vld [vmem:[#allocation2 + $0x60] sm:$0xff]
        %v2977 = vld [vmem:[#allocation2 + $0x68] sm:$0xff]
        %v2978 = vld [vmem:[#allocation2 + $0x70] sm:$0xff]
        %v2979 = vld [vmem:[#allocation2 + $0x78] sm:$0xff]
        %v2980 = vld [vmem:[#allocation2 + $0x80] sm:$0xff]
        %v2981 = vld [vmem:[#allocation2 + $0x88] sm:$0xff]
        %v2982 = vld [vmem:[#allocation2 + $0x90] sm:$0xff]
        %v2983 = vld [vmem:[#allocation2 + $0x98] sm:$0xff]
        %v2984 = vld [vmem:[#allocation2 + $0xa0] sm:$0xff]
        %v2985 = vld [vmem:[#allocation2 + $0xa8] sm:$0xff]
        %v2986 = vld [vmem:[#allocation2 + $0xb0] sm:$0xff]
        %v2987 = vld [vmem:[#allocation2 + $0xb8] sm:$0xff]
        %v2988 = vld [vmem:[#allocation2 + $0xc0] sm:$0xff]
        %v2989 = vld [vmem:[#allocation2 + $0xc8] sm:$0xff]
        %v2990 = vld [vmem:[#allocation2 + $0xd0] sm:$0xff]
        %v2991 = vld [vmem:[#allocation2 + $0xd8] sm:$0xff]
        %v2992 = vld [vmem:[#allocation2 + $0xe0] sm:$0xff]
        %v2993 = vld [vmem:[#allocation2 + $0xe8] sm:$0xff]
        %v2994 = vld [vmem:[#allocation2 + $0xf0] sm:$0xff]
        %v2995 = vld [vmem:[#allocation2 + $0xf8] sm:$0xff]
        %s2996 = scalar_lea.vmem %s1, 896
        %v2997 = vld [vmem:[%s2996] sm:$0xff]
        %v2998 = vld [vmem:[%s2996 + $0x8] sm:$0xff]
        %v2999 = vld [vmem:[%s2996 + $0x10] sm:$0xff]
        %v3000 = vld [vmem:[%s2996 + $0x18] sm:$0xff]
        %v3001 = vld [vmem:[%s2996 + $0x20] sm:$0xff]
        %v3002 = vld [vmem:[%s2996 + $0x28] sm:$0xff]
        %v3003 = vld [vmem:[%s2996 + $0x30] sm:$0xff]
        %v3004 = vld [vmem:[%s2996 + $0x38] sm:$0xff]
        %v3005 = vld [vmem:[%s2996 + $0x40] sm:$0xff]
        %v3006 = vld [vmem:[%s2996 + $0x48] sm:$0xff]
        %v3007 = vld [vmem:[%s2996 + $0x50] sm:$0xff]
        %v3008 = vld [vmem:[%s2996 + $0x58] sm:$0xff]
        %v3009 = vld [vmem:[%s2996 + $0x60] sm:$0xff]
        %v3010 = vld [vmem:[%s2996 + $0x68] sm:$0xff]
        %v3011 = vld [vmem:[%s2996 + $0x70] sm:$0xff]
        %v3012 = vld [vmem:[%s2996 + $0x78] sm:$0xff]
        %3013 = vmatprep.subr.mxu0 0.0
        %3014 = vmatpush1.msra.mxu0 %v2997
        %3015 = vmatprep.subr.mxu0 0.0
        %3016 = vmatpush1.msra.mxu0 %v2998
        %3017 = vmatprep.subr.mxu0 0.0
        %3018 = vmatpush1.msra.mxu0 %v2999
        %3019 = vmatprep.subr.mxu0 0.0
        %3020 = vmatpush1.msra.mxu0 %v3000
        %3021 = vmatprep.subr.mxu0 0.0
        %3022 = vmatpush1.msra.mxu0 %v3001
        %3023 = vmatprep.subr.mxu0 0.0
        %3024 = vmatpush1.msra.mxu0 %v3002
        %3025 = vmatprep.subr.mxu0 0.0
        %3026 = vmatpush1.msra.mxu0 %v3003
        %3027 = vmatprep.subr.mxu0 0.0
        %3028 = vmatpush1.msra.mxu0 %v3004
        %3029 = vmatprep.subr.mxu0 0.0
        %3030 = vmatpush1.msra.mxu0 %v3005
        %3031 = vmatprep.subr.mxu0 0.0
        %3032 = vmatpush1.msra.mxu0 %v3006
        %3033 = vmatprep.subr.mxu0 0.0
        %3034 = vmatpush1.msra.mxu0 %v3007
        %3035 = vmatprep.subr.mxu0 0.0
        %3036 = vmatpush1.msra.mxu0 %v3008
        %3037 = vmatprep.subr.mxu0 0.0
        %3038 = vmatpush1.msra.mxu0 %v3009
        %3039 = vmatprep.subr.mxu0 0.0
        %3040 = vmatpush1.msra.mxu0 %v3010
        %3041 = vmatprep.subr.mxu0 0.0
        %3042 = vmatpush1.msra.mxu0 %v3011
        %3043 = vmatprep.subr.mxu0 0.0
        %3044 = vmatpush1.msra.mxu0 %v3012
        %3045 = vmatprep.subr.mxu0 0.0
        %3046 = vmatpush1.msra.mxu0 0.0
        %3047 = vmatprep.subr.mxu0 0.0
        %3048 = vmatpush1.msra.mxu0 0.0
        %3049 = vmatprep.subr.mxu0 0.0
        %3050 = vmatpush1.msra.mxu0 0.0
        %3051 = vmatprep.subr.mxu0 0.0
        %3052 = vmatpush1.msra.mxu0 0.0
        %3053 = vmatprep.subr.mxu0 0.0
        %3054 = vmatpush1.msra.mxu0 0.0
        %3055 = vmatprep.subr.mxu0 0.0
        %3056 = vmatpush1.msra.mxu0 0.0
        %3057 = vmatprep.subr.mxu0 0.0
        %3058 = vmatpush1.msra.mxu0 0.0
        %3059 = vmatprep.subr.mxu0 0.0
        %3060 = vmatpush1.msra.mxu0 0.0
        %3061 = vmatprep.subr.mxu0 0.0
        %3062 = vmatpush1.msra.mxu0 0.0
        %3063 = vmatprep.subr.mxu0 0.0
        %3064 = vmatpush1.msra.mxu0 0.0
        %3065 = vmatprep.subr.mxu0 0.0
        %3066 = vmatpush1.msra.mxu0 0.0
        %3067 = vmatprep.subr.mxu0 0.0
        %3068 = vmatpush1.msra.mxu0 0.0
        %3069 = vmatprep.subr.mxu0 0.0
        %3070 = vmatpush1.msra.mxu0 0.0
        %3071 = vmatprep.subr.mxu0 0.0
        %3072 = vmatpush1.msra.mxu0 0.0
        %3073 = vmatprep.subr.mxu0 0.0
        %3074 = vmatpush1.msra.mxu0 0.0
        %3075 = vmatprep.subr.mxu0 0.0
        %3076 = vmatpush1.msra.mxu0 0.0
        %3077 = vmatprep.mubr.f32.mxu0 0.0
        %3078 = vmatmul.mubr.f32.gmra.mrb[0].mxu0 %v696
        %v3079 = vpop.f32.mrb[0].mxu0
        %v3080 = vadd.f32 0.0, %v3079
        %v3081 = vpop.f32.mrb[0].mxu0
        %3082 = vmatprep.mubr.f32.mxu0 0.0
        %3083 = vmatmul.mubr.f32.gmra.mrb[0].mxu0 %v698
        %v3084 = vpop.f32.mrb[0].mxu0
        %v3085 = vadd.f32 0.0, %v3084
        %v3086 = vpop.f32.mrb[0].mxu0
        %3087 = vmatprep.mubr.f32.mxu0 0.0
        %3088 = vmatmul.mubr.f32.gmra.mrb[0].mxu0 %v701
        %v3089 = vpop.f32.mrb[0].mxu0
        %v3090 = vadd.f32 0.0, %v3089
        %v3091 = vpop.f32.mrb[0].mxu0
        %3092 = vmatprep.mubr.f32.mxu0 0.0
        %3093 = vmatmul.mubr.f32.gmra.mrb[0].mxu0 %v703
        %v3094 = vpop.f32.mrb[0].mxu0
        %v3095 = vadd.f32 0.0, %v3094
        %v3096 = vpop.f32.mrb[0].mxu0
        %3097 = vmatprep.mubr.f32.mxu0 0.0
        %3098 = vmatmul.mubr.f32.gmra.mrb[0].mxu0 %v706
        %v3099 = vpop.f32.mrb[0].mxu0
        %v3100 = vadd.f32 0.0, %v3099
        %v3101 = vpop.f32.mrb[0].mxu0
        %3102 = vmatprep.mubr.f32.mxu0 0.0
        %3103 = vmatmul.mubr.f32.gmra.mrb[0].mxu0 %v708
        %v3104 = vpop.f32.mrb[0].mxu0
        %v3105 = vadd.f32 0.0, %v3104
        %v3106 = vpop.f32.mrb[0].mxu0
        %3107 = vmatprep.mubr.f32.mxu0 0.0
        %3108 = vmatmul.mubr.f32.gmra.mrb[0].mxu0 %v711
        %v3109 = vpop.f32.mrb[0].mxu0
        %v3110 = vadd.f32 0.0, %v3109
        %v3111 = vpop.f32.mrb[0].mxu0
        %3112 = vmatprep.mubr.f32.mxu0 0.0
        %3113 = vmatmul.mubr.f32.gmra.mrb[0].mxu0 %v713
        %v3114 = vpop.f32.mrb[0].mxu0
        %v3115 = vadd.f32 0.0, %v3114
        %v3116 = vpop.f32.mrb[0].mxu0
        %3117 = vmatprep.mubr.f32.mxu0 0.0
        %3118 = vmatmul.mubr.f32.gmra.mrb[0].mxu0 %v716
        %v3119 = vpop.f32.mrb[0].mxu0
        %v3120 = vadd.f32 0.0, %v3119
        %v3121 = vpop.f32.mrb[0].mxu0
        %3122 = vmatprep.mubr.f32.mxu0 0.0
        %3123 = vmatmul.mubr.f32.gmra.mrb[0].mxu0 %v718
        %v3124 = vpop.f32.mrb[0].mxu0
        %v3125 = vadd.f32 0.0, %v3124
        %v3126 = vpop.f32.mrb[0].mxu0
        %3127 = vmatprep.mubr.f32.mxu0 0.0
        %3128 = vmatmul.mubr.f32.gmra.mrb[0].mxu0 %v721
        %v3129 = vpop.f32.mrb[0].mxu0
        %v3130 = vadd.f32 0.0, %v3129
        %v3131 = vpop.f32.mrb[0].mxu0
        %3132 = vmatprep.mubr.f32.mxu0 0.0
        %3133 = vmatmul.mubr.f32.gmra.mrb[0].mxu0 %v723
        %v3134 = vpop.f32.mrb[0].mxu0
        %v3135 = vadd.f32 0.0, %v3134
        %v3136 = vpop.f32.mrb[0].mxu0
        %3137 = vmatprep.mubr.f32.mxu0 0.0
        %3138 = vmatmul.mubr.f32.gmra.mrb[0].mxu0 %v726
        %v3139 = vpop.f32.mrb[0].mxu0
        %v3140 = vadd.f32 0.0, %v3139
        %v3141 = vpop.f32.mrb[0].mxu0
        %3142 = vmatprep.mubr.f32.mxu0 0.0
        %3143 = vmatmul.mubr.f32.gmra.mrb[0].mxu0 %v728
        %v3144 = vpop.f32.mrb[0].mxu0
        %v3145 = vadd.f32 0.0, %v3144
        %v3146 = vpop.f32.mrb[0].mxu0
        %3147 = vmatprep.mubr.f32.mxu0 0.0
        %3148 = vmatmul.mubr.f32.gmra.mrb[0].mxu0 %v731
        %v3149 = vpop.f32.mrb[0].mxu0
        %v3150 = vadd.f32 0.0, %v3149
        %v3151 = vpop.f32.mrb[0].mxu0
        %3152 = vmatprep.mubr.f32.mxu0 0.0
        %3153 = vmatmul.mubr.f32.gmra.mrb[0].mxu0 %v733
        %v3154 = vpop.f32.mrb[0].mxu0
        %v3155 = vadd.f32 0.0, %v3154
        %v3156 = vpop.f32.mrb[0].mxu0
        %3157 = vmatprep.mubr.f32.mxu0 0.0
        %3158 = vmatmul.mubr.f32.gmra.mrb[0].mxu0 %v736
        %v3159 = vpop.f32.mrb[0].mxu0
        %v3160 = vadd.f32 0.0, %v3159
        %v3161 = vpop.f32.mrb[0].mxu0
        %3162 = vmatprep.mubr.f32.mxu0 0.0
        %3163 = vmatmul.mubr.f32.gmra.mrb[0].mxu0 %v738
        %v3164 = vpop.f32.mrb[0].mxu0
        %v3165 = vadd.f32 0.0, %v3164
        %v3166 = vpop.f32.mrb[0].mxu0
        %3167 = vmatprep.mubr.f32.mxu0 0.0
        %3168 = vmatmul.mubr.f32.gmra.mrb[0].mxu0 %v741
        %v3169 = vpop.f32.mrb[0].mxu0
        %v3170 = vadd.f32 0.0, %v3169
        %v3171 = vpop.f32.mrb[0].mxu0
        %3172 = vmatprep.mubr.f32.mxu0 0.0
        %3173 = vmatmul.mubr.f32.gmra.mrb[0].mxu0 %v743
        %v3174 = vpop.f32.mrb[0].mxu0
        %v3175 = vadd.f32 0.0, %v3174
        %v3176 = vpop.f32.mrb[0].mxu0
        %3177 = vmatprep.mubr.f32.mxu0 0.0
        %3178 = vmatmul.mubr.f32.gmra.mrb[0].mxu0 %v746
        %v3179 = vpop.f32.mrb[0].mxu0
        %v3180 = vadd.f32 0.0, %v3179
        %v3181 = vpop.f32.mrb[0].mxu0
        %3182 = vmatprep.mubr.f32.mxu0 0.0
        %3183 = vmatmul.mubr.f32.gmra.mrb[0].mxu0 %v748
        %v3184 = vpop.f32.mrb[0].mxu0
        %v3185 = vadd.f32 0.0, %v3184
        %v3186 = vpop.f32.mrb[0].mxu0
        %3187 = vmatprep.mubr.f32.mxu0 0.0
        %3188 = vmatmul.mubr.f32.gmra.mrb[0].mxu0 %v751
        %v3189 = vpop.f32.mrb[0].mxu0
        %v3190 = vadd.f32 0.0, %v3189
        %v3191 = vpop.f32.mrb[0].mxu0
        %3192 = vmatprep.mubr.f32.mxu0 0.0
        %3193 = vmatmul.mubr.f32.gmra.mrb[0].mxu0 %v753
        %v3194 = vpop.f32.mrb[0].mxu0
        %v3195 = vadd.f32 0.0, %v3194
        %v3196 = vpop.f32.mrb[0].mxu0
        %3197 = vmatprep.mubr.f32.mxu0 0.0
        %3198 = vmatmul.mubr.f32.gmra.mrb[0].mxu0 %v756
        %v3199 = vpop.f32.mrb[0].mxu0
        %v3200 = vadd.f32 0.0, %v3199
        %v3201 = vpop.f32.mrb[0].mxu0
        %3202 = vmatprep.mubr.f32.mxu0 0.0
        %3203 = vmatmul.mubr.f32.gmra.mrb[0].mxu0 %v758
        %v3204 = vpop.f32.mrb[0].mxu0
        %v3205 = vadd.f32 0.0, %v3204
        %v3206 = vpop.f32.mrb[0].mxu0
        %3207 = vmatprep.mubr.f32.mxu0 0.0
        %3208 = vmatmul.mubr.f32.gmra.mrb[0].mxu0 %v761
        %v3209 = vpop.f32.mrb[0].mxu0
        %v3210 = vadd.f32 0.0, %v3209
        %v3211 = vpop.f32.mrb[0].mxu0
        %3212 = vmatprep.mubr.f32.mxu0 0.0
        %3213 = vmatmul.mubr.f32.gmra.mrb[0].mxu0 %v763
        %v3214 = vpop.f32.mrb[0].mxu0
        %v3215 = vadd.f32 0.0, %v3214
        %v3216 = vpop.f32.mrb[0].mxu0
        %3217 = vmatprep.mubr.f32.mxu0 0.0
        %3218 = vmatmul.mubr.f32.gmra.mrb[0].mxu0 %v1928
        %v3219 = vpop.f32.mrb[0].mxu0
        %v3220 = vadd.f32 0.0, %v3219
        %v3221 = vpop.f32.mrb[0].mxu0
        %3222 = vmatprep.mubr.f32.mxu0 0.0
        %3223 = vmatmul.mubr.f32.gmra.mrb[0].mxu0 %v1930
        %v3224 = vpop.f32.mrb[0].mxu0
        %v3225 = vadd.f32 0.0, %v3224
        %v3226 = vpop.f32.mrb[0].mxu0
        %3227 = vmatprep.mubr.f32.mxu0 0.0
        %3228 = vmatmul.mubr.f32.gmra.mrb[0].mxu0 %v2959
        %v3229 = vpop.f32.mrb[0].mxu0
        %v3230 = vadd.f32 0.0, %v3229
        %v3231 = vpop.f32.mrb[0].mxu0
        %3232 = vmatprep.mubr.f32.mxu0 0.0
        %3233 = vmatmul.mubr.f32.gmra.mrb[0].mxu0 %v2961
        %v3234 = vpop.f32.mrb[0].mxu0
        %v3235 = vadd.f32 0.0, %v3234
        %v3236 = vpop.f32.mrb[0].mxu0
        %3237 = vdwg.mxu0
        %v3238 = vadd.f32 %v2964, %v3080
        %v3239 = vadd.f32 %v2965, %v3085
        %v3240 = vadd.f32 %v2966, %v3090
        %v3241 = vadd.f32 %v2967, %v3095
        %v3242 = vadd.f32 %v2968, %v3100
        %v3243 = vadd.f32 %v2969, %v3105
        %v3244 = vadd.f32 %v2970, %v3110
        %v3245 = vadd.f32 %v2971, %v3115
        %v3246 = vadd.f32 %v2972, %v3120
        %v3247 = vadd.f32 %v2973, %v3125
        %v3248 = vadd.f32 %v2974, %v3130
        %v3249 = vadd.f32 %v2975, %v3135
        %v3250 = vadd.f32 %v2976, %v3140
        %v3251 = vadd.f32 %v2977, %v3145
        %v3252 = vadd.f32 %v2978, %v3150
        %v3253 = vadd.f32 %v2979, %v3155
        %v3254 = vadd.f32 %v2980, %v3160
        %v3255 = vadd.f32 %v2981, %v3165
        %v3256 = vadd.f32 %v2982, %v3170
        %v3257 = vadd.f32 %v2983, %v3175
        %v3258 = vadd.f32 %v2984, %v3180
        %v3259 = vadd.f32 %v2985, %v3185
        %v3260 = vadd.f32 %v2986, %v3190
        %v3261 = vadd.f32 %v2987, %v3195
        %v3262 = vadd.f32 %v2988, %v3200
        %v3263 = vadd.f32 %v2989, %v3205
        %v3264 = vadd.f32 %v2990, %v3210
        %v3265 = vadd.f32 %v2991, %v3215
        %v3266 = vadd.f32 %v2992, %v3220
        %v3267 = vadd.f32 %v2993, %v3225
        %v3268 = vadd.f32 %v2994, %v3230
        %v3269 = vadd.f32 %v2995, %v3235
        %3270 = vst [vmem:[#allocation2] sm:$0xff] %v3238
        %3271 = vst [vmem:[#allocation2 + $0x8] sm:$0xff] %v3239
        %3272 = vst [vmem:[#allocation2 + $0x10] sm:$0xff] %v3240
        %3273 = vst [vmem:[#allocation2 + $0x18] sm:$0xff] %v3241
        %3274 = vst [vmem:[#allocation2 + $0x20] sm:$0xff] %v3242
        %3275 = vst [vmem:[#allocation2 + $0x28] sm:$0xff] %v3243
        %3276 = vst [vmem:[#allocation2 + $0x30] sm:$0xff] %v3244
        %3277 = vst [vmem:[#allocation2 + $0x38] sm:$0xff] %v3245
        %3278 = vst [vmem:[#allocation2 + $0x40] sm:$0xff] %v3246
        %3279 = vst [vmem:[#allocation2 + $0x48] sm:$0xff] %v3247
        %3280 = vst [vmem:[#allocation2 + $0x50] sm:$0xff] %v3248
        %3281 = vst [vmem:[#allocation2 + $0x58] sm:$0xff] %v3249
        %3282 = vst [vmem:[#allocation2 + $0x60] sm:$0xff] %v3250
        %3283 = vst [vmem:[#allocation2 + $0x68] sm:$0xff] %v3251
        %3284 = vst [vmem:[#allocation2 + $0x70] sm:$0xff] %v3252
        %3285 = vst [vmem:[#allocation2 + $0x78] sm:$0xff] %v3253
        %3286 = vst [vmem:[#allocation2 + $0x80] sm:$0xff] %v3254
        %3287 = vst [vmem:[#allocation2 + $0x88] sm:$0xff] %v3255
        %3288 = vst [vmem:[#allocation2 + $0x90] sm:$0xff] %v3256
        %3289 = vst [vmem:[#allocation2 + $0x98] sm:$0xff] %v3257
        %3290 = vst [vmem:[#allocation2 + $0xa0] sm:$0xff] %v3258
        %3291 = vst [vmem:[#allocation2 + $0xa8] sm:$0xff] %v3259
        %3292 = vst [vmem:[#allocation2 + $0xb0] sm:$0xff] %v3260
        %3293 = vst [vmem:[#allocation2 + $0xb8] sm:$0xff] %v3261
        %3294 = vst [vmem:[#allocation2 + $0xc0] sm:$0xff] %v3262
        %3295 = vst [vmem:[#allocation2 + $0xc8] sm:$0xff] %v3263
        %3296 = vst [vmem:[#allocation2 + $0xd0] sm:$0xff] %v3264
        %3297 = vst [vmem:[#allocation2 + $0xd8] sm:$0xff] %v3265
        %3298 = vst [vmem:[#allocation2 + $0xe0] sm:$0xff] %v3266
        %3299 = vst [vmem:[#allocation2 + $0xe8] sm:$0xff] %v3267
        %3300 = vst [vmem:[#allocation2 + $0xf0] sm:$0xff] %v3268
        %3301 = vst [vmem:[#allocation2 + $0xf8] sm:$0xff] %v3269
        %v3302 = vrot.slane %v263, 2
        %v3303 = vrot.slane %v264, 2
        %v3304 = vsel %vm1134, %v3302, %v3303
        %v3305 = vrot.slane %v265, 2
        %v3306 = vsel %vm1134, %v3303, %v3305
        %v3309 = vld [vmem:[#allocation2] sm:$0xff]
        %v3310 = vld [vmem:[#allocation2 + $0x8] sm:$0xff]
        %v3311 = vld [vmem:[#allocation2 + $0x10] sm:$0xff]
        %v3312 = vld [vmem:[#allocation2 + $0x18] sm:$0xff]
        %v3313 = vld [vmem:[#allocation2 + $0x20] sm:$0xff]
        %v3314 = vld [vmem:[#allocation2 + $0x28] sm:$0xff]
        %v3315 = vld [vmem:[#allocation2 + $0x30] sm:$0xff]
        %v3316 = vld [vmem:[#allocation2 + $0x38] sm:$0xff]
        %v3317 = vld [vmem:[#allocation2 + $0x40] sm:$0xff]
        %v3318 = vld [vmem:[#allocation2 + $0x48] sm:$0xff]
        %v3319 = vld [vmem:[#allocation2 + $0x50] sm:$0xff]
        %v3320 = vld [vmem:[#allocation2 + $0x58] sm:$0xff]
        %v3321 = vld [vmem:[#allocation2 + $0x60] sm:$0xff]
        %v3322 = vld [vmem:[#allocation2 + $0x68] sm:$0xff]
        %v3323 = vld [vmem:[#allocation2 + $0x70] sm:$0xff]
        %v3324 = vld [vmem:[#allocation2 + $0x78] sm:$0xff]
        %v3325 = vld [vmem:[#allocation2 + $0x80] sm:$0xff]
        %v3326 = vld [vmem:[#allocation2 + $0x88] sm:$0xff]
        %v3327 = vld [vmem:[#allocation2 + $0x90] sm:$0xff]
        %v3328 = vld [vmem:[#allocation2 + $0x98] sm:$0xff]
        %v3329 = vld [vmem:[#allocation2 + $0xa0] sm:$0xff]
        %v3330 = vld [vmem:[#allocation2 + $0xa8] sm:$0xff]
        %v3331 = vld [vmem:[#allocation2 + $0xb0] sm:$0xff]
        %v3332 = vld [vmem:[#allocation2 + $0xb8] sm:$0xff]
        %v3333 = vld [vmem:[#allocation2 + $0xc0] sm:$0xff]
        %v3334 = vld [vmem:[#allocation2 + $0xc8] sm:$0xff]
        %v3335 = vld [vmem:[#allocation2 + $0xd0] sm:$0xff]
        %v3336 = vld [vmem:[#allocation2 + $0xd8] sm:$0xff]
        %v3337 = vld [vmem:[#allocation2 + $0xe0] sm:$0xff]
        %v3338 = vld [vmem:[#allocation2 + $0xe8] sm:$0xff]
        %v3339 = vld [vmem:[#allocation2 + $0xf0] sm:$0xff]
        %v3340 = vld [vmem:[#allocation2 + $0xf8] sm:$0xff]
        %s3341 = scalar_lea.vmem %s1, 1024
        %v3342 = vld [vmem:[%s3341] sm:$0xff]
        %v3343 = vld [vmem:[%s3341 + $0x8] sm:$0xff]
        %v3344 = vld [vmem:[%s3341 + $0x10] sm:$0xff]
        %v3345 = vld [vmem:[%s3341 + $0x18] sm:$0xff]
        %v3346 = vld [vmem:[%s3341 + $0x20] sm:$0xff]
        %v3347 = vld [vmem:[%s3341 + $0x28] sm:$0xff]
        %v3348 = vld [vmem:[%s3341 + $0x30] sm:$0xff]
        %v3349 = vld [vmem:[%s3341 + $0x38] sm:$0xff]
        %v3350 = vld [vmem:[%s3341 + $0x40] sm:$0xff]
        %v3351 = vld [vmem:[%s3341 + $0x48] sm:$0xff]
        %v3352 = vld [vmem:[%s3341 + $0x50] sm:$0xff]
        %v3353 = vld [vmem:[%s3341 + $0x58] sm:$0xff]
        %v3354 = vld [vmem:[%s3341 + $0x60] sm:$0xff]
        %v3355 = vld [vmem:[%s3341 + $0x68] sm:$0xff]
        %v3356 = vld [vmem:[%s3341 + $0x70] sm:$0xff]
        %v3357 = vld [vmem:[%s3341 + $0x78] sm:$0xff]
        %3358 = vmatprep.subr.mxu0 0.0
        %3359 = vmatpush1.msra.mxu0 %v3342
        %3360 = vmatprep.subr.mxu0 0.0
        %3361 = vmatpush1.msra.mxu0 %v3343
        %3362 = vmatprep.subr.mxu0 0.0
        %3363 = vmatpush1.msra.mxu0 %v3344
        %3364 = vmatprep.subr.mxu0 0.0
        %3365 = vmatpush1.msra.mxu0 %v3345
        %3366 = vmatprep.subr.mxu0 0.0
        %3367 = vmatpush1.msra.mxu0 %v3346
        %3368 = vmatprep.subr.mxu0 0.0
        %3369 = vmatpush1.msra.mxu0 %v3347
        %3370 = vmatprep.subr.mxu0 0.0
        %3371 = vmatpush1.msra.mxu0 %v3348
        %3372 = vmatprep.subr.mxu0 0.0
        %3373 = vmatpush1.msra.mxu0 %v3349
        %3374 = vmatprep.subr.mxu0 0.0
        %3375 = vmatpush1.msra.mxu0 %v3350
        %3376 = vmatprep.subr.mxu0 0.0
        %3377 = vmatpush1.msra.mxu0 %v3351
        %3378 = vmatprep.subr.mxu0 0.0
        %3379 = vmatpush1.msra.mxu0 %v3352
        %3380 = vmatprep.subr.mxu0 0.0
        %3381 = vmatpush1.msra.mxu0 %v3353
        %3382 = vmatprep.subr.mxu0 0.0
        %3383 = vmatpush1.msra.mxu0 %v3354
        %3384 = vmatprep.subr.mxu0 0.0
        %3385 = vmatpush1.msra.mxu0 %v3355
        %3386 = vmatprep.subr.mxu0 0.0
        %3387 = vmatpush1.msra.mxu0 %v3356
        %3388 = vmatprep.subr.mxu0 0.0
        %3389 = vmatpush1.msra.mxu0 %v3357
        %3390 = vmatprep.subr.mxu0 0.0
        %3391 = vmatpush1.msra.mxu0 0.0
        %3392 = vmatprep.subr.mxu0 0.0
        %3393 = vmatpush1.msra.mxu0 0.0
        %3394 = vmatprep.subr.mxu0 0.0
        %3395 = vmatpush1.msra.mxu0 0.0
        %3396 = vmatprep.subr.mxu0 0.0
        %3397 = vmatpush1.msra.mxu0 0.0
        %3398 = vmatprep.subr.mxu0 0.0
        %3399 = vmatpush1.msra.mxu0 0.0
        %3400 = vmatprep.subr.mxu0 0.0
        %3401 = vmatpush1.msra.mxu0 0.0
        %3402 = vmatprep.subr.mxu0 0.0
        %3403 = vmatpush1.msra.mxu0 0.0
        %3404 = vmatprep.subr.mxu0 0.0
        %3405 = vmatpush1.msra.mxu0 0.0
        %3406 = vmatprep.subr.mxu0 0.0
        %3407 = vmatpush1.msra.mxu0 0.0
        %3408 = vmatprep.subr.mxu0 0.0
        %3409 = vmatpush1.msra.mxu0 0.0
        %3410 = vmatprep.subr.mxu0 0.0
        %3411 = vmatpush1.msra.mxu0 0.0
        %3412 = vmatprep.subr.mxu0 0.0
        %3413 = vmatpush1.msra.mxu0 0.0
        %3414 = vmatprep.subr.mxu0 0.0
        %3415 = vmatpush1.msra.mxu0 0.0
        %3416 = vmatprep.subr.mxu0 0.0
        %3417 = vmatpush1.msra.mxu0 0.0
        %3418 = vmatprep.subr.mxu0 0.0
        %3419 = vmatpush1.msra.mxu0 0.0
        %3420 = vmatprep.subr.mxu0 0.0
        %3421 = vmatpush1.msra.mxu0 0.0
        %3422 = vmatprep.mubr.f32.mxu0 0.0
        %3423 = vmatmul.mubr.f32.gmra.mrb[0].mxu0 %v1147
        %v3424 = vpop.f32.mrb[0].mxu0
        %v3425 = vadd.f32 0.0, %v3424
        %v3426 = vpop.f32.mrb[0].mxu0
        %3427 = vmatprep.mubr.f32.mxu0 0.0
        %3428 = vmatmul.mubr.f32.gmra.mrb[0].mxu0 %v1149
        %v3429 = vpop.f32.mrb[0].mxu0
        %v3430 = vadd.f32 0.0, %v3429
        %v3431 = vpop.f32.mrb[0].mxu0
        %3432 = vmatprep.mubr.f32.mxu0 0.0
        %3433 = vmatmul.mubr.f32.gmra.mrb[0].mxu0 %v1152
        %v3434 = vpop.f32.mrb[0].mxu0
        %v3435 = vadd.f32 0.0, %v3434
        %v3436 = vpop.f32.mrb[0].mxu0
        %3437 = vmatprep.mubr.f32.mxu0 0.0
        %3438 = vmatmul.mubr.f32.gmra.mrb[0].mxu0 %v1154
        %v3439 = vpop.f32.mrb[0].mxu0
        %v3440 = vadd.f32 0.0, %v3439
        %v3441 = vpop.f32.mrb[0].mxu0
        %3442 = vmatprep.mubr.f32.mxu0 0.0
        %3443 = vmatmul.mubr.f32.gmra.mrb[0].mxu0 %v1157
        %v3444 = vpop.f32.mrb[0].mxu0
        %v3445 = vadd.f32 0.0, %v3444
        %v3446 = vpop.f32.mrb[0].mxu0
        %3447 = vmatprep.mubr.f32.mxu0 0.0
        %3448 = vmatmul.mubr.f32.gmra.mrb[0].mxu0 %v1159
        %v3449 = vpop.f32.mrb[0].mxu0
        %v3450 = vadd.f32 0.0, %v3449
        %v3451 = vpop.f32.mrb[0].mxu0
        %3452 = vmatprep.mubr.f32.mxu0 0.0
        %3453 = vmatmul.mubr.f32.gmra.mrb[0].mxu0 %v1162
        %v3454 = vpop.f32.mrb[0].mxu0
        %v3455 = vadd.f32 0.0, %v3454
        %v3456 = vpop.f32.mrb[0].mxu0
        %3457 = vmatprep.mubr.f32.mxu0 0.0
        %3458 = vmatmul.mubr.f32.gmra.mrb[0].mxu0 %v1164
        %v3459 = vpop.f32.mrb[0].mxu0
        %v3460 = vadd.f32 0.0, %v3459
        %v3461 = vpop.f32.mrb[0].mxu0
        %3462 = vmatprep.mubr.f32.mxu0 0.0
        %3463 = vmatmul.mubr.f32.gmra.mrb[0].mxu0 %v1167
        %v3464 = vpop.f32.mrb[0].mxu0
        %v3465 = vadd.f32 0.0, %v3464
        %v3466 = vpop.f32.mrb[0].mxu0
        %3467 = vmatprep.mubr.f32.mxu0 0.0
        %3468 = vmatmul.mubr.f32.gmra.mrb[0].mxu0 %v1169
        %v3469 = vpop.f32.mrb[0].mxu0
        %v3470 = vadd.f32 0.0, %v3469
        %v3471 = vpop.f32.mrb[0].mxu0
        %3472 = vmatprep.mubr.f32.mxu0 0.0
        %3473 = vmatmul.mubr.f32.gmra.mrb[0].mxu0 %v1172
        %v3474 = vpop.f32.mrb[0].mxu0
        %v3475 = vadd.f32 0.0, %v3474
        %v3476 = vpop.f32.mrb[0].mxu0
        %3477 = vmatprep.mubr.f32.mxu0 0.0
        %3478 = vmatmul.mubr.f32.gmra.mrb[0].mxu0 %v1174
        %v3479 = vpop.f32.mrb[0].mxu0
        %v3480 = vadd.f32 0.0, %v3479
        %v3481 = vpop.f32.mrb[0].mxu0
        %3482 = vmatprep.mubr.f32.mxu0 0.0
        %3483 = vmatmul.mubr.f32.gmra.mrb[0].mxu0 %v1177
        %v3484 = vpop.f32.mrb[0].mxu0
        %v3485 = vadd.f32 0.0, %v3484
        %v3486 = vpop.f32.mrb[0].mxu0
        %3487 = vmatprep.mubr.f32.mxu0 0.0
        %3488 = vmatmul.mubr.f32.gmra.mrb[0].mxu0 %v1179
        %v3489 = vpop.f32.mrb[0].mxu0
        %v3490 = vadd.f32 0.0, %v3489
        %v3491 = vpop.f32.mrb[0].mxu0
        %3492 = vmatprep.mubr.f32.mxu0 0.0
        %3493 = vmatmul.mubr.f32.gmra.mrb[0].mxu0 %v1182
        %v3494 = vpop.f32.mrb[0].mxu0
        %v3495 = vadd.f32 0.0, %v3494
        %v3496 = vpop.f32.mrb[0].mxu0
        %3497 = vmatprep.mubr.f32.mxu0 0.0
        %3498 = vmatmul.mubr.f32.gmra.mrb[0].mxu0 %v1184
        %v3499 = vpop.f32.mrb[0].mxu0
        %v3500 = vadd.f32 0.0, %v3499
        %v3501 = vpop.f32.mrb[0].mxu0
        %3502 = vmatprep.mubr.f32.mxu0 0.0
        %3503 = vmatmul.mubr.f32.gmra.mrb[0].mxu0 %v1187
        %v3504 = vpop.f32.mrb[0].mxu0
        %v3505 = vadd.f32 0.0, %v3504
        %v3506 = vpop.f32.mrb[0].mxu0
        %3507 = vmatprep.mubr.f32.mxu0 0.0
        %3508 = vmatmul.mubr.f32.gmra.mrb[0].mxu0 %v1189
        %v3509 = vpop.f32.mrb[0].mxu0
        %v3510 = vadd.f32 0.0, %v3509
        %v3511 = vpop.f32.mrb[0].mxu0
        %3512 = vmatprep.mubr.f32.mxu0 0.0
        %3513 = vmatmul.mubr.f32.gmra.mrb[0].mxu0 %v1192
        %v3514 = vpop.f32.mrb[0].mxu0
        %v3515 = vadd.f32 0.0, %v3514
        %v3516 = vpop.f32.mrb[0].mxu0
        %3517 = vmatprep.mubr.f32.mxu0 0.0
        %3518 = vmatmul.mubr.f32.gmra.mrb[0].mxu0 %v1194
        %v3519 = vpop.f32.mrb[0].mxu0
        %v3520 = vadd.f32 0.0, %v3519
        %v3521 = vpop.f32.mrb[0].mxu0
        %3522 = vmatprep.mubr.f32.mxu0 0.0
        %3523 = vmatmul.mubr.f32.gmra.mrb[0].mxu0 %v1197
        %v3524 = vpop.f32.mrb[0].mxu0
        %v3525 = vadd.f32 0.0, %v3524
        %v3526 = vpop.f32.mrb[0].mxu0
        %3527 = vmatprep.mubr.f32.mxu0 0.0
        %3528 = vmatmul.mubr.f32.gmra.mrb[0].mxu0 %v1199
        %v3529 = vpop.f32.mrb[0].mxu0
        %v3530 = vadd.f32 0.0, %v3529
        %v3531 = vpop.f32.mrb[0].mxu0
        %3532 = vmatprep.mubr.f32.mxu0 0.0
        %3533 = vmatmul.mubr.f32.gmra.mrb[0].mxu0 %v1202
        %v3534 = vpop.f32.mrb[0].mxu0
        %v3535 = vadd.f32 0.0, %v3534
        %v3536 = vpop.f32.mrb[0].mxu0
        %3537 = vmatprep.mubr.f32.mxu0 0.0
        %3538 = vmatmul.mubr.f32.gmra.mrb[0].mxu0 %v1204
        %v3539 = vpop.f32.mrb[0].mxu0
        %v3540 = vadd.f32 0.0, %v3539
        %v3541 = vpop.f32.mrb[0].mxu0
        %3542 = vmatprep.mubr.f32.mxu0 0.0
        %3543 = vmatmul.mubr.f32.gmra.mrb[0].mxu0 %v1207
        %v3544 = vpop.f32.mrb[0].mxu0
        %v3545 = vadd.f32 0.0, %v3544
        %v3546 = vpop.f32.mrb[0].mxu0
        %3547 = vmatprep.mubr.f32.mxu0 0.0
        %3548 = vmatmul.mubr.f32.gmra.mrb[0].mxu0 %v1209
        %v3549 = vpop.f32.mrb[0].mxu0
        %v3550 = vadd.f32 0.0, %v3549
        %v3551 = vpop.f32.mrb[0].mxu0
        %3552 = vmatprep.mubr.f32.mxu0 0.0
        %3553 = vmatmul.mubr.f32.gmra.mrb[0].mxu0 %v1212
        %v3554 = vpop.f32.mrb[0].mxu0
        %v3555 = vadd.f32 0.0, %v3554
        %v3556 = vpop.f32.mrb[0].mxu0
        %3557 = vmatprep.mubr.f32.mxu0 0.0
        %3558 = vmatmul.mubr.f32.gmra.mrb[0].mxu0 %v1214
        %v3559 = vpop.f32.mrb[0].mxu0
        %v3560 = vadd.f32 0.0, %v3559
        %v3561 = vpop.f32.mrb[0].mxu0
        %3562 = vmatprep.mubr.f32.mxu0 0.0
        %3563 = vmatmul.mubr.f32.gmra.mrb[0].mxu0 %v2273
        %v3564 = vpop.f32.mrb[0].mxu0
        %v3565 = vadd.f32 0.0, %v3564
        %v3566 = vpop.f32.mrb[0].mxu0
        %3567 = vmatprep.mubr.f32.mxu0 0.0
        %3568 = vmatmul.mubr.f32.gmra.mrb[0].mxu0 %v2275
        %v3569 = vpop.f32.mrb[0].mxu0
        %v3570 = vadd.f32 0.0, %v3569
        %v3571 = vpop.f32.mrb[0].mxu0
        %3572 = vmatprep.mubr.f32.mxu0 0.0
        %3573 = vmatmul.mubr.f32.gmra.mrb[0].mxu0 %v3304
        %v3574 = vpop.f32.mrb[0].mxu0
        %v3575 = vadd.f32 0.0, %v3574
        %v3576 = vpop.f32.mrb[0].mxu0
        %3577 = vmatprep.mubr.f32.mxu0 0.0
        %3578 = vmatmul.mubr.f32.gmra.mrb[0].mxu0 %v3306
        %v3579 = vpop.f32.mrb[0].mxu0
        %v3580 = vadd.f32 0.0, %v3579
        %v3581 = vpop.f32.mrb[0].mxu0
        %3582 = vdwg.mxu0
        %v3583 = vadd.f32 %v3309, %v3425
        %v3584 = vadd.f32 %v3310, %v3430
        %v3585 = vadd.f32 %v3311, %v3435
        %v3586 = vadd.f32 %v3312, %v3440
        %v3587 = vadd.f32 %v3313, %v3445
        %v3588 = vadd.f32 %v3314, %v3450
        %v3589 = vadd.f32 %v3315, %v3455
        %v3590 = vadd.f32 %v3316, %v3460
        %v3591 = vadd.f32 %v3317, %v3465
        %v3592 = vadd.f32 %v3318, %v3470
        %v3593 = vadd.f32 %v3319, %v3475
        %v3594 = vadd.f32 %v3320, %v3480
        %v3595 = vadd.f32 %v3321, %v3485
        %v3596 = vadd.f32 %v3322, %v3490
        %v3597 = vadd.f32 %v3323, %v3495
        %v3598 = vadd.f32 %v3324, %v3500
        %v3599 = vadd.f32 %v3325, %v3505
        %v3600 = vadd.f32 %v3326, %v3510
        %v3601 = vadd.f32 %v3327, %v3515
        %v3602 = vadd.f32 %v3328, %v3520
        %v3603 = vadd.f32 %v3329, %v3525
        %v3604 = vadd.f32 %v3330, %v3530
        %v3605 = vadd.f32 %v3331, %v3535
        %v3606 = vadd.f32 %v3332, %v3540
        %v3607 = vadd.f32 %v3333, %v3545
        %v3608 = vadd.f32 %v3334, %v3550
        %v3609 = vadd.f32 %v3335, %v3555
        %v3610 = vadd.f32 %v3336, %v3560
        %v3611 = vadd.f32 %v3337, %v3565
        %v3612 = vadd.f32 %v3338, %v3570
        %v3613 = vadd.f32 %v3339, %v3575
        %v3614 = vadd.f32 %v3340, %v3580
        %3615 = vst [vmem:[#allocation2] sm:$0xff] %v3583
        %3616 = vst [vmem:[#allocation2 + $0x8] sm:$0xff] %v3584
        %3617 = vst [vmem:[#allocation2 + $0x10] sm:$0xff] %v3585
        %3618 = vst [vmem:[#allocation2 + $0x18] sm:$0xff] %v3586
        %3619 = vst [vmem:[#allocation2 + $0x20] sm:$0xff] %v3587
        %3620 = vst [vmem:[#allocation2 + $0x28] sm:$0xff] %v3588
        %3621 = vst [vmem:[#allocation2 + $0x30] sm:$0xff] %v3589
        %3622 = vst [vmem:[#allocation2 + $0x38] sm:$0xff] %v3590
        %3623 = vst [vmem:[#allocation2 + $0x40] sm:$0xff] %v3591
        %3624 = vst [vmem:[#allocation2 + $0x48] sm:$0xff] %v3592
        %3625 = vst [vmem:[#allocation2 + $0x50] sm:$0xff] %v3593
        %3626 = vst [vmem:[#allocation2 + $0x58] sm:$0xff] %v3594
        %3627 = vst [vmem:[#allocation2 + $0x60] sm:$0xff] %v3595
        %3628 = vst [vmem:[#allocation2 + $0x68] sm:$0xff] %v3596
        %3629 = vst [vmem:[#allocation2 + $0x70] sm:$0xff] %v3597
        %3630 = vst [vmem:[#allocation2 + $0x78] sm:$0xff] %v3598
        %3631 = vst [vmem:[#allocation2 + $0x80] sm:$0xff] %v3599
        %3632 = vst [vmem:[#allocation2 + $0x88] sm:$0xff] %v3600
        %3633 = vst [vmem:[#allocation2 + $0x90] sm:$0xff] %v3601
        %3634 = vst [vmem:[#allocation2 + $0x98] sm:$0xff] %v3602
        %3635 = vst [vmem:[#allocation2 + $0xa0] sm:$0xff] %v3603
        %3636 = vst [vmem:[#allocation2 + $0xa8] sm:$0xff] %v3604
        %3637 = vst [vmem:[#allocation2 + $0xb0] sm:$0xff] %v3605
        %3638 = vst [vmem:[#allocation2 + $0xb8] sm:$0xff] %v3606
        %3639 = vst [vmem:[#allocation2 + $0xc0] sm:$0xff] %v3607
        %3640 = vst [vmem:[#allocation2 + $0xc8] sm:$0xff] %v3608
        %3641 = vst [vmem:[#allocation2 + $0xd0] sm:$0xff] %v3609
        %3642 = vst [vmem:[#allocation2 + $0xd8] sm:$0xff] %v3610
        %3643 = vst [vmem:[#allocation2 + $0xe0] sm:$0xff] %v3611
        %3644 = vst [vmem:[#allocation2 + $0xe8] sm:$0xff] %v3612
        %3645 = vst [vmem:[#allocation2 + $0xf0] sm:$0xff] %v3613
        %3646 = vst [vmem:[#allocation2 + $0xf8] sm:$0xff] %v3614
        %v3647 = vld [vmem:[#allocation2] sm:$0xff]
        %v3648 = vld [vmem:[#allocation2 + $0x8] sm:$0xff]
        %v3649 = vld [vmem:[#allocation2 + $0x10] sm:$0xff]
        %v3650 = vld [vmem:[#allocation2 + $0x18] sm:$0xff]
        %v3651 = vld [vmem:[#allocation2 + $0x20] sm:$0xff]
        %v3652 = vld [vmem:[#allocation2 + $0x28] sm:$0xff]
        %v3653 = vld [vmem:[#allocation2 + $0x30] sm:$0xff]
        %v3654 = vld [vmem:[#allocation2 + $0x38] sm:$0xff]
        %v3655 = vld [vmem:[#allocation2 + $0x40] sm:$0xff]
        %v3656 = vld [vmem:[#allocation2 + $0x48] sm:$0xff]
        %v3657 = vld [vmem:[#allocation2 + $0x50] sm:$0xff]
        %v3658 = vld [vmem:[#allocation2 + $0x58] sm:$0xff]
        %v3659 = vld [vmem:[#allocation2 + $0x60] sm:$0xff]
        %v3660 = vld [vmem:[#allocation2 + $0x68] sm:$0xff]
        %v3661 = vld [vmem:[#allocation2 + $0x70] sm:$0xff]
        %v3662 = vld [vmem:[#allocation2 + $0x78] sm:$0xff]
        %v3663 = vld [vmem:[#allocation2 + $0x80] sm:$0xff]
        %v3664 = vld [vmem:[#allocation2 + $0x88] sm:$0xff]
        %v3665 = vld [vmem:[#allocation2 + $0x90] sm:$0xff]
        %v3666 = vld [vmem:[#allocation2 + $0x98] sm:$0xff]
        %v3667 = vld [vmem:[#allocation2 + $0xa0] sm:$0xff]
        %v3668 = vld [vmem:[#allocation2 + $0xa8] sm:$0xff]
        %v3669 = vld [vmem:[#allocation2 + $0xb0] sm:$0xff]
        %v3670 = vld [vmem:[#allocation2 + $0xb8] sm:$0xff]
        %v3671 = vld [vmem:[#allocation2 + $0xc0] sm:$0xff]
        %v3672 = vld [vmem:[#allocation2 + $0xc8] sm:$0xff]
        %v3673 = vld [vmem:[#allocation2 + $0xd0] sm:$0xff]
        %v3674 = vld [vmem:[#allocation2 + $0xd8] sm:$0xff]
        %v3675 = vld [vmem:[#allocation2 + $0xe0] sm:$0xff]
        %v3676 = vld [vmem:[#allocation2 + $0xe8] sm:$0xff]
        %v3677 = vld [vmem:[#allocation2 + $0xf0] sm:$0xff]
        %v3678 = vld [vmem:[#allocation2 + $0xf8] sm:$0xff]
        %3679 = vst [vmem:[%s194] sm:$0xff] %v3647
        %3680 = vst [vmem:[%s194 + $0x8] sm:$0xff] %v3648
        %3681 = vst [vmem:[%s194 + $0x10] sm:$0xff] %v3649
        %3682 = vst [vmem:[%s194 + $0x18] sm:$0xff] %v3650
        %3683 = vst [vmem:[%s194 + $0x20] sm:$0xff] %v3651
        %3684 = vst [vmem:[%s194 + $0x28] sm:$0xff] %v3652
        %3685 = vst [vmem:[%s194 + $0x30] sm:$0xff] %v3653
        %3686 = vst [vmem:[%s194 + $0x38] sm:$0xff] %v3654
        %3687 = vst [vmem:[%s194 + $0x40] sm:$0xff] %v3655
        %3688 = vst [vmem:[%s194 + $0x48] sm:$0xff] %v3656
        %3689 = vst [vmem:[%s194 + $0x50] sm:$0xff] %v3657
        %3690 = vst [vmem:[%s194 + $0x58] sm:$0xff] %v3658
        %3691 = vst [vmem:[%s194 + $0x60] sm:$0xff] %v3659
        %3692 = vst [vmem:[%s194 + $0x68] sm:$0xff] %v3660
        %3693 = vst [vmem:[%s194 + $0x70] sm:$0xff] %v3661
        %3694 = vst [vmem:[%s194 + $0x78] sm:$0xff] %v3662
        %3695 = vst [vmem:[%s194 + $0x80] sm:$0xff] %v3663
        %3696 = vst [vmem:[%s194 + $0x88] sm:$0xff] %v3664
        %3697 = vst [vmem:[%s194 + $0x90] sm:$0xff] %v3665
        %3698 = vst [vmem:[%s194 + $0x98] sm:$0xff] %v3666
        %3699 = vst [vmem:[%s194 + $0xa0] sm:$0xff] %v3667
        %3700 = vst [vmem:[%s194 + $0xa8] sm:$0xff] %v3668
        %3701 = vst [vmem:[%s194 + $0xb0] sm:$0xff] %v3669
        %3702 = vst [vmem:[%s194 + $0xb8] sm:$0xff] %v3670
        %3703 = vst [vmem:[%s194 + $0xc0] sm:$0xff] %v3671
        %3704 = vst [vmem:[%s194 + $0xc8] sm:$0xff] %v3672
        %3705 = vst [vmem:[%s194 + $0xd0] sm:$0xff] %v3673
        %3706 = vst [vmem:[%s194 + $0xd8] sm:$0xff] %v3674
        %3707 = vst [vmem:[%s194 + $0xe0] sm:$0xff] %v3675
        %3708 = vst [vmem:[%s194 + $0xe8] sm:$0xff] %v3676
        %3709 = vst [vmem:[%s194 + $0xf0] sm:$0xff] %v3677
        %3710 = vst [vmem:[%s194 + $0xf8] sm:$0xff] %v3678
        %v3711 = vadd.f32 %v3647, %v3648
        %v3712 = vadd.f32 %v3711, %v3649
        %v3713 = vadd.f32 %v3712, %v3650
        %v3714 = vadd.f32 %v3713, %v3651
        %v3715 = vadd.f32 %v3714, %v3652
        %v3716 = vadd.f32 %v3715, %v3653
        %v3717 = vadd.f32 %v3716, %v3654
        %v3718 = vadd.f32 %v3717, %v3655
        %v3719 = vadd.f32 %v3718, %v3656
        %v3720 = vadd.f32 %v3719, %v3657
        %v3721 = vadd.f32 %v3720, %v3658
        %v3722 = vadd.f32 %v3721, %v3659
        %v3723 = vadd.f32 %v3722, %v3660
        %v3724 = vadd.f32 %v3723, %v3661
        %v3725 = vadd.f32 %v3724, %v3662
        %v3726 = vadd.f32 %v3725, %v3663
        %v3727 = vadd.f32 %v3726, %v3664
        %v3728 = vadd.f32 %v3727, %v3665
        %v3729 = vadd.f32 %v3728, %v3666
        %v3730 = vadd.f32 %v3729, %v3667
        %v3731 = vadd.f32 %v3730, %v3668
        %v3732 = vadd.f32 %v3731, %v3669
        %v3733 = vadd.f32 %v3732, %v3670
        %v3734 = vadd.f32 %v3733, %v3671
        %v3735 = vadd.f32 %v3734, %v3672
        %v3736 = vadd.f32 %v3735, %v3673
        %v3737 = vadd.f32 %v3736, %v3674
        %v3738 = vadd.f32 %v3737, %v3675
        %v3739 = vadd.f32 %v3738, %v3676
        %v3740 = vadd.f32 %v3739, %v3677
        %v3741 = vadd.f32 %v3740, %v3678
        %v3742 = vrot.slane %v3741, 4
        %v3743 = vadd.f32 %v3741, %v3742
        %v3744 = vrot.slane %v3743, 2
        %v3745 = vadd.f32 %v3743, %v3744
        %v3746 = vrot.slane %v3745, 1
        %v3747 = vadd.f32 %v3745, %v3746
        %3748 = vst [vmem:[%s200] sm:$0x1] %v3747
        %v3749 = vmul.f32 %v3647, %v3647
        %v3750 = vmul.f32 %v3648, %v3648
        %v3751 = vmul.f32 %v3649, %v3649
        %v3752 = vmul.f32 %v3650, %v3650
        %v3753 = vmul.f32 %v3651, %v3651
        %v3754 = vmul.f32 %v3652, %v3652
        %v3755 = vmul.f32 %v3653, %v3653
        %v3756 = vmul.f32 %v3654, %v3654
        %v3757 = vmul.f32 %v3655, %v3655
        %v3758 = vmul.f32 %v3656, %v3656
        %v3759 = vmul.f32 %v3657, %v3657
        %v3760 = vmul.f32 %v3658, %v3658
        %v3761 = vmul.f32 %v3659, %v3659
        %v3762 = vmul.f32 %v3660, %v3660
        %v3763 = vmul.f32 %v3661, %v3661
        %v3764 = vmul.f32 %v3662, %v3662
        %v3765 = vmul.f32 %v3663, %v3663
        %v3766 = vmul.f32 %v3664, %v3664
        %v3767 = vmul.f32 %v3665, %v3665
        %v3768 = vmul.f32 %v3666, %v3666
        %v3769 = vmul.f32 %v3667, %v3667
        %v3770 = vmul.f32 %v3668, %v3668
        %v3771 = vmul.f32 %v3669, %v3669
        %v3772 = vmul.f32 %v3670, %v3670
        %v3773 = vmul.f32 %v3671, %v3671
        %v3774 = vmul.f32 %v3672, %v3672
        %v3775 = vmul.f32 %v3673, %v3673
        %v3776 = vmul.f32 %v3674, %v3674
        %v3777 = vmul.f32 %v3675, %v3675
        %v3778 = vmul.f32 %v3676, %v3676
        %v3779 = vmul.f32 %v3677, %v3677
        %v3780 = vmul.f32 %v3678, %v3678
        %v3781 = vadd.f32 %v3749, %v3750
        %v3782 = vadd.f32 %v3781, %v3751
        %v3783 = vadd.f32 %v3782, %v3752
        %v3784 = vadd.f32 %v3783, %v3753
        %v3785 = vadd.f32 %v3784, %v3754
        %v3786 = vadd.f32 %v3785, %v3755
        %v3787 = vadd.f32 %v3786, %v3756
        %v3788 = vadd.f32 %v3787, %v3757
        %v3789 = vadd.f32 %v3788, %v3758
        %v3790 = vadd.f32 %v3789, %v3759
        %v3791 = vadd.f32 %v3790, %v3760
        %v3792 = vadd.f32 %v3791, %v3761
        %v3793 = vadd.f32 %v3792, %v3762
        %v3794 = vadd.f32 %v3793, %v3763
        %v3795 = vadd.f32 %v3794, %v3764
        %v3796 = vadd.f32 %v3795, %v3765
        %v3797 = vadd.f32 %v3796, %v3766
        %v3798 = vadd.f32 %v3797, %v3767
        %v3799 = vadd.f32 %v3798, %v3768
        %v3800 = vadd.f32 %v3799, %v3769
        %v3801 = vadd.f32 %v3800, %v3770
        %v3802 = vadd.f32 %v3801, %v3771
        %v3803 = vadd.f32 %v3802, %v3772
        %v3804 = vadd.f32 %v3803, %v3773
        %v3805 = vadd.f32 %v3804, %v3774
        %v3806 = vadd.f32 %v3805, %v3775
        %v3807 = vadd.f32 %v3806, %v3776
        %v3808 = vadd.f32 %v3807, %v3777
        %v3809 = vadd.f32 %v3808, %v3778
        %v3810 = vadd.f32 %v3809, %v3779
        %v3811 = vadd.f32 %v3810, %v3780
        %v3812 = vrot.slane %v3811, 4
        %v3813 = vadd.f32 %v3811, %v3812
        %v3814 = vrot.slane %v3813, 2
        %v3815 = vadd.f32 %v3813, %v3814
        %v3816 = vrot.slane %v3815, 1
        %v3817 = vadd.f32 %v3815, %v3816
        %3818 = vst [vmem:[%s206] sm:$0x1] %v3817
        %s3819 = sand.u32 %s77, 1
        %s3820 = scalar_lea.sflag [#allocation4], %s3819
        %s3821 = sand.u32 %s77, 1
        %s3822 = smul.addr %s3821, 256
        %s3823 = scalar_lea.vmem [#allocation3], %s3822
        %s3824 = sand.u32 %s22, 1
        %s3825 = scalar_lea.sflag [#allocation6], %s3824
        %s3826 = sand.u32 %s103, 1
        %s3827 = scalar_lea.vmem [#allocation5], %s3826
        %s3828 = sand.u32 %s22, 1
        %s3829 = scalar_lea.sflag [#allocation6], %s3828
        %s3830 = sand.u32 %s129, 1
        %s3831 = scalar_lea.vmem [#allocation7], %s3830
        // Predicated region
        $region29: #{tpu_custom_call.1} parent=27 // pred_check
          %p3832 = pneg %p87
        $region30: #{tpu_custom_call.1} parent=27 // pred_check_branch
          %3834 = sbr.rel (%p3832) target = $region32
        $region31: #{tpu_custom_call.1} parent=27 // pred_region
          %s3836 = ssub.s32 4096, 4096
          %3837 = vsyncadd %s3820, %s3836
          %s3838 = smul.addr %s22, 32
          %s3839 = smul.addr %s3838, 128
          %s3840 = scalar_lea.hbm %s2, %s3839
          %s3841 = sshll.u32 %s3823, 4
          %s3842 = int_to_ptr.vmem [resolvable:$true] %s3841
          %3847 = dma.vmem_to_hbm [thread:$0]  %s3842, 4096, %s3840, %s3820, 128, 128, 8
        $region32: #{tpu_custom_call.1} parent=27 // pred_fallthru
          _
        // Predicated region
        $region33: #{tpu_custom_call.1} parent=27 // pred_check
          %p3848 = pneg %p113
        $region34: #{tpu_custom_call.1} parent=27 // pred_check_branch
          %3850 = sbr.rel (%p3848) target = $region36
        $region35: #{tpu_custom_call.1} parent=27 // pred_region
          %s3852 = ssub.s32 16, 16
          %3853 = vsyncadd %s3825, %s3852
          %s3854 = smul.addr %s22, 16
          %s3855 = scalar_lea.hbm %s3, %s3854
          %s3857 = sshll.u32 %s3827, 4
          %s3858 = int_to_ptr.vmem [resolvable:$true] %s3857
          %3860 = dma.vmem_to_hbm [thread:$0]  %s3858, 16, %s3855, %s3825
        $region36: #{tpu_custom_call.1} parent=27 // pred_fallthru
          _
        // Predicated region
        $region37: #{tpu_custom_call.1} parent=27 // pred_check
          %p3861 = pneg %p139
        $region38: #{tpu_custom_call.1} parent=27 // pred_check_branch
          %3863 = sbr.rel (%p3861) target = $region40
        $region39: #{tpu_custom_call.1} parent=27 // pred_region
          %s3865 = ssub.s32 16, 16
          %3866 = vsyncadd %s3829, %s3865
          %s3867 = smul.addr %s22, 16
          %s3868 = scalar_lea.hbm %s4, %s3867
          %s3870 = sshll.u32 %s3831, 4
          %s3871 = int_to_ptr.vmem [resolvable:$true] %s3870
          %3873 = dma.vmem_to_hbm [thread:$0]  %s3871, 16, %s3868, %s3829
        $region40: #{tpu_custom_call.1} parent=27 // pred_fallthru
          _
      $region28: #{tpu_custom_call.1} parent=5 // pred_fallthru
        _
      %p3874 = scmp.le.s32.totalorder 2, %s17
      // Predicated region
      $region41: #{tpu_custom_call.1} parent=5 // pred_check
        %p3875 = pneg %p3874
      $region42: #{tpu_custom_call.1} parent=5 // pred_check_branch
        %3877 = sbr.rel (%p3875) target = $region44
      $region43: #{tpu_custom_call.1} parent=5 // pred_region
        %s3878 = ssub.s32 %s17, 2
        // Predicated region
        $region45: #{tpu_custom_call.1} parent=43 // pred_check
          %p3879 = pneg %p93
        $region46: #{tpu_custom_call.1} parent=43 // pred_check_branch
          %3881 = sbr.rel (%p3879) target = $region48
        $region47: #{tpu_custom_call.1} parent=43 // pred_region
          %s3882 = sand.u32 %s78, 1
          %s3883 = scalar_lea.sflag [#allocation4], %s3882
          %s3884 = sand.u32 %s78, 1
          %s3885 = smul.addr %s3884, 256
          %s3886 = scalar_lea.vmem [#allocation3], %s3885
          %3887 = dma.done %s3883, 4096
        $region48: #{tpu_custom_call.1} parent=43 // pred_fallthru
          _
        // Predicated region
        $region49: #{tpu_custom_call.1} parent=43 // pred_check
          %p3888 = pneg %p119
        $region50: #{tpu_custom_call.1} parent=43 // pred_check_branch
          %3890 = sbr.rel (%p3888) target = $region52
        $region51: #{tpu_custom_call.1} parent=43 // pred_region
          %s3891 = sand.u32 %s23, 1
          %s3892 = scalar_lea.sflag [#allocation6], %s3891
          %s3893 = sand.u32 %s104, 1
          %s3894 = scalar_lea.vmem [#allocation5], %s3893
          %3895 = dma.done %s3892, 16
        $region52: #{tpu_custom_call.1} parent=43 // pred_fallthru
          _
        // Predicated region
        $region53: #{tpu_custom_call.1} parent=43 // pred_check
          %p3896 = pneg %p145
        $region54: #{tpu_custom_call.1} parent=43 // pred_check_branch
          %3898 = sbr.rel (%p3896) target = $region56
        $region55: #{tpu_custom_call.1} parent=43 // pred_region
          %s3899 = sand.u32 %s23, 1
          %s3900 = scalar_lea.sflag [#allocation6], %s3899
          %s3901 = sand.u32 %s130, 1
          %s3902 = scalar_lea.vmem [#allocation7], %s3901
          %3903 = dma.done %s3900, 16
        $region56: #{tpu_custom_call.1} parent=43 // pred_fallthru
          _
      $region44: #{tpu_custom_call.1} parent=5 // pred_fallthru
        _
    $region6: #{tpu_custom_call.1} parent=1 // loop_footer
      %s21 = sadd.s32 1, %s17
    $region7: #{tpu_custom_call.1} parent=1 // loop_footer_branch
      %16 = sbr.rel target = $region3
    $region8: #{tpu_custom_call.1} parent=1 // loop_exit
      _
    %3904 = vsyncpa [#allocation4], 1
    %s3905 = scalar_lea.sflag [#allocation4], 1
    %3906 = vsyncpa %s3905, 1
    %3907 = vsyncpa [#allocation6], 1
    %s3908 = scalar_lea.sflag [#allocation6], 1
    %3909 = vsyncpa %s3908, 1

</llo_original>
